<compile_context>
chip_gen: v7x
topology: tpu7x:2x2x1
jax: 0.10.0
libtpu: 0.0.40
codegen_flags: <defaults>
</compile_context>

<pallas_src>
import jax
import jax.numpy as jnp
from jax.experimental import pallas as pl
from jax.experimental.pallas import tpu as pltpu


def _make_fixup_block_kernel(Ho, Wo, Cin, Cout, stride, equal, compute_dtype, Npad):
    """Fused FixupBasicBlock forward for one batch element (flat NHWC slabs in VMEM)."""
    Wp = Wo + 2          # per-row width incl. the 2 conv pad columns
    M = Ho * Wp          # flat slab rows per (phase-)image; output row r = i*Wp + j

    # Conv1 tap table: tap t = (kh, kw) -> (stride-phase row/col, sublane offset into
    # that phase's zero-padded slab).  Output row r reads slab row r + off.
    taps1 = []
    for kh in range(3):
        pr = (kh - 1) % stride
        dr = (kh - 1 - pr) // stride
        for kw in range(3):
            pc = (kw - 1) % stride
            dc = (kw - 1 - pc) // stride
            taps1.append((pr, pc, (dr + 1) * Wp + (dc + 1)))

    top_rows = Wp + 1        # slab rows [0, Wp+1) : zero halo (never written per-step)
    bot_start = Wp + 1 + M   # slab rows [Wp+1+M, Npad) : zero halo (never written)

    def kernel(*refs):
        if equal:
            (scal_ref, mask_ref, x_ref, w1_ref, w2_ref,
             out_ref, pad1_ref, pad2_ref, col1_ref, col2_ref) = refs
            ws_ref = None
        else:
            (scal_ref, mask_ref, x_ref, w1_ref, w2_ref, ws_ref,
             out_ref, pad1_ref, pad2_ref, col1_ref, col2_ref) = refs

        b1 = scal_ref[0]
        b2 = scal_ref[1]
        b3 = scal_ref[2]
        b4 = scal_ref[3]
        scale1 = scal_ref[4]
        # (M, 1) f32: 1.0 on valid W columns (j < Wo), 0.0 on the 2 pad columns.
        mask = mask_ref[...]

        # ---- relu1(bias1(x)) per stride-phase, written into zero-padded flat slabs --
        # x_ref block: (1, s, s, M, Cin); phase (pr, pc) row i*Wp + j = x[s*i+pr, s*j+pc]
        # (columns j >= Wo are wrapper zero padding; the mask re-zeroes them post-relu).
        shortcut = None
        for pr in range(stride):
            for pc in range(stride):
                a_ph = mask * jnp.maximum(
                    x_ref[0, pr, pc].astype(jnp.float32) + b1, 0.0)
                # halo-only zeroing (cheap); interior halo columns come from `mask`
                pad1_ref[pr, pc, 0:top_rows, :] = jnp.zeros((top_rows, Cin), jnp.float32)
                pad1_ref[pr, pc, bot_start:Npad, :] = jnp.zeros(
                    (Npad - bot_start, Cin), jnp.float32)
                pad1_ref[pr, pc, top_rows:bot_start, :] = a_ph
                if (not equal) and pr == 0 and pc == 0:
                    # convShortcut: 1x1 conv, stride=s, on relu1(bias1(x)); with the
                    # phase split that is exactly phase (0, 0).
                    shortcut = jnp.dot(a_ph.astype(compute_dtype), ws_ref[...],
                                       preferred_element_type=jnp.float32)

        # ---- conv1: single im2col matmul, K = 9*Cin ---------------------------------
        for t, (pr, pc, off) in enumerate(taps1):
            col1_ref[:, t * Cin:(t + 1) * Cin] = (
                pad1_ref[pr, pc, off:off + M, :].astype(compute_dtype))
        acc1 = jnp.dot(col1_ref[...], w1_ref[...], preferred_element_type=jnp.float32)

        # bias3(relu2(bias2(conv1))); W-pad columns forced back to zero before padding.
        mid = mask * (jnp.maximum(acc1 + b2, 0.0) + b3)
        # TODO(synk): F.dropout (droprate > 0) not implemented; module default is 0.0.

        # ---- conv2: stride 1, single im2col matmul, K = 9*Cout ----------------------
        pad2_ref[0:top_rows, :] = jnp.zeros((top_rows, Cout), jnp.float32)
        pad2_ref[bot_start:Npad, :] = jnp.zeros((Npad - bot_start, Cout), jnp.float32)
        pad2_ref[top_rows:bot_start, :] = mid
        for kh in range(3):
            for kw in range(3):
                t = kh * 3 + kw
                off = kh * Wp + kw
                col2_ref[:, t * Cout:(t + 1) * Cout] = (
                    pad2_ref[off:off + M, :].astype(compute_dtype))
        acc2 = jnp.dot(col2_ref[...], w2_ref[...], preferred_element_type=jnp.float32)

        # bias4(scale1(conv2)) + residual (all f32).
        out = acc2 * scale1 + b4
        if equal:
            shortcut = x_ref[0, 0, 0].astype(jnp.float32)   # identity: un-activated x
        out_ref[0] = (out + shortcut).astype(out_ref.dtype)

    return kernel


def fixup_basic_block(x_nchw, params, stride, compute_dtype=jnp.bfloat16):
    """FixupBasicBlock forward. x_nchw: (N, Cin, H, W) f32 -> (N, Cout, Ho, Wo) f32."""
    N, Cin, H, W = x_nchw.shape
    w1 = params["conv1_w"]            # (Cout, Cin, 3, 3)  PyTorch OIHW
    w2 = params["conv2_w"]            # (Cout, Cout, 3, 3)
    Cout = w1.shape[0]
    equal = (Cin == Cout)
    if equal:
        assert stride == 1, "equalInOut block needs stride 1 for the residual add"
    assert H % stride == 0 and W % stride == 0
    Ho, Wo = H // stride, W // stride
    Wp = Wo + 2
    M = Ho * Wp
    Npad = ((M + 2 * Wp + 2 + 7) // 8) * 8        # padded-slab rows (halo incl.)

    # --- plain-JAX layout plumbing: NCHW -> NHWC, space-to-depth, W-pad, flatten ----
    x_nhwc = jnp.transpose(x_nchw, (0, 2, 3, 1))
    x_s2d = x_nhwc.reshape(N, Ho, stride, Wo, stride, Cin).transpose(0, 2, 4, 1, 3, 5)
    x_s2d = jnp.pad(x_s2d, ((0, 0), (0, 0), (0, 0), (0, 0), (0, Wp - Wo), (0, 0)))
    x_slab = x_s2d.reshape(N, stride, stride, M, Cin).astype(compute_dtype)

    # im2col-ordered weights: row block t = kh*3+kw holds w[:, :, kh, kw]^T (C, Cout)
    w1_k = jnp.transpose(w1, (2, 3, 1, 0)).reshape(9 * Cin, Cout).astype(compute_dtype)
    w2_k = jnp.transpose(w2, (2, 3, 1, 0)).reshape(9 * Cout, Cout).astype(compute_dtype)
    scal = jnp.array([params["bias1"], params["bias2"], params["bias3"],
                      params["bias4"], params["scale1"]], dtype=jnp.float32)
    col_mask = (jnp.arange(M) % Wp < Wo).astype(jnp.float32).reshape(M, 1)

    in_specs = [
        pl.BlockSpec(memory_space=pltpu.MemorySpace.SMEM),                    # 5 scalars
        pl.BlockSpec((M, 1), lambda n: (0, 0)),                               # W-col mask
        pl.BlockSpec((1, stride, stride, M, Cin), lambda n: (n, 0, 0, 0, 0)), # x phases
        pl.BlockSpec((9 * Cin, Cout), lambda n: (0, 0)),                      # conv1 w
        pl.BlockSpec((9 * Cout, Cout), lambda n: (0, 0)),                     # conv2 w
    ]
    args = [scal, col_mask, x_slab, w1_k, w2_k]
    flops = 2 * N * M * (9 * Cin * Cout + 9 * Cout * Cout)
    if not equal:
        ws_k = jnp.transpose(params["convShortcut_w"].reshape(Cout, Cin),
                             (1, 0)).astype(compute_dtype)                    # (Cin, Cout)
        in_specs.append(pl.BlockSpec((Cin, Cout), lambda n: (0, 0)))
        args.append(ws_k)
        flops += 2 * N * M * Cin * Cout
    bytes_accessed = int(sum(int(a.size) * a.dtype.itemsize for a in args)
                         + N * M * Cout * 4)

    kernel = _make_fixup_block_kernel(Ho, Wo, Cin, Cout, stride, equal,
                                      compute_dtype, Npad)

    out_slab = pl.pallas_call(
        kernel,
        out_shape=jax.ShapeDtypeStruct((N, M, Cout), jnp.float32),
        grid=(N,),
        in_specs=in_specs,
        out_specs=pl.BlockSpec((1, M, Cout), lambda n: (n, 0, 0)),
        scratch_shapes=[
            pltpu.VMEM((stride, stride, Npad, Cin), jnp.float32),   # padded relu1 slabs
            pltpu.VMEM((Npad, Cout), jnp.float32),                  # padded mid slab
            pltpu.VMEM((M, 9 * Cin), compute_dtype),                # conv1 im2col
            pltpu.VMEM((M, 9 * Cout), compute_dtype),               # conv2 im2col
        ],
        compiler_params=pltpu.CompilerParams(
            dimension_semantics=("parallel",),
            vmem_limit_bytes=64 * 1024 * 1024),
        cost_estimate=pl.CostEstimate(flops=int(flops), transcendentals=0,
                                      bytes_accessed=bytes_accessed),
    )(*args)

    out = out_slab.reshape(N, Ho, Wp, Cout)[:, :, :Wo, :]   # drop the W pad columns
    return jnp.transpose(out, (0, 3, 1, 2))                 # back to NCHW


def fixup_basic_block_ref(x, params, stride):
    """Pure-JAX (XLA conv) f32 reference, NCHW, matching the PyTorch forward exactly."""
    conv = lambda a, w, s, pad: jax.lax.conv_general_dilated(
        a, w, (s, s), pad, dimension_numbers=("NCHW", "OIHW", "NCHW"),
        precision=jax.lax.Precision.HIGHEST)
    b1, b2, b3, b4, sc = (params["bias1"], params["bias2"], params["bias3"],
                          params["bias4"], params["scale1"])
    equal = x.shape[1] == params["conv1_w"].shape[0]
    a = jnp.maximum(x + b1, 0.0)
    o = conv(a, params["conv1_w"], stride, ((1, 1), (1, 1)))
    o = jnp.maximum(o + b2, 0.0) + b3
    o = conv(o, params["conv2_w"], 1, ((1, 1), (1, 1)))
    o = o * sc + b4
    if equal:
        return x + o
    return conv(a, params["convShortcut_w"], stride, ((0, 0), (0, 0))) + o


if __name__ == "__main__":
    key = jax.random.PRNGKey(0)
    ks = jax.random.split(key, 8)

    def make_params(k0, k1, k2, Cin, Cout, with_shortcut):
        p = {
            "conv1_w": 0.1 * jax.random.normal(k0, (Cout, Cin, 3, 3), jnp.float32),
            "conv2_w": 0.1 * jax.random.normal(k1, (Cout, Cout, 3, 3), jnp.float32),
            "bias1": 0.10, "bias2": -0.05, "bias3": 0.20, "bias4": 0.03,
            "scale1": 1.50,
        }
        if with_shortcut:
            p["convShortcut_w"] = 0.1 * jax.random.normal(
                k2, (Cout, Cin, 1, 1), jnp.float32)
        return p

    x = jax.random.normal(ks[0], (2, 4, 16, 16), jnp.float32)   # NCHW, like PyTorch

    cases = [
        # Case 1: equalInOut (4 -> 4, stride 1, identity shortcut)
        (make_params(ks[1], ks[2], ks[3], 4, 4, False), 1, (2, 4, 16, 16)),
        # Case 2: not equalInOut (4 -> 8, stride 2, 1x1 conv shortcut)
        (make_params(ks[4], ks[5], ks[6], 4, 8, True), 2, (2, 8, 8, 8)),
    ]
    for params, stride, oshape in cases:
        ref = fixup_basic_block_ref(x, params, stride)

        # exact-parity f32 MXU path
        y32 = jax.block_until_ready(
            fixup_basic_block(x, params, stride, compute_dtype=jnp.float32))
        assert y32.shape == oshape
        assert jnp.allclose(y32, ref, atol=1e-3, rtol=1e-3), \
            float(jnp.max(jnp.abs(y32 - ref)))

        # default bf16-MXU path (f32 accumulation, f32 Fixup epilogue + residual)
        y16 = jax.block_until_ready(fixup_basic_block(x, params, stride))
        assert y16.shape == oshape
        assert jnp.allclose(y16, ref, atol=5e-2, rtol=5e-2), \
            float(jnp.max(jnp.abs(y16 - ref)))

    print("KERNEL_OK")
</pallas_src>

<mosaic_0001>
module attributes {stable_mosaic.version = 11 : i64} {
  func.func @kernel(%arg0: i32, %arg1: memref<5xf32, #tpu.memory_space<smem>>, %arg2: memref<288x1xf32, #tpu.memory_space<vmem>>, %arg3: memref<1x1x1x288x4xf32, #tpu.memory_space<vmem>>, %arg4: memref<36x4xf32, #tpu.memory_space<vmem>>, %arg5: memref<36x4xf32, #tpu.memory_space<vmem>>, %arg6: memref<1x288x4xf32, #tpu.memory_space<vmem>>, %arg7: memref<1x1x328x4xf32, #tpu.memory_space<vmem>>, %arg8: memref<328x4xf32, #tpu.memory_space<vmem>>, %arg9: memref<288x36xf32, #tpu.memory_space<vmem>>, %arg10: memref<288x36xf32, #tpu.memory_space<vmem>>) attributes {dimension_semantics = [#tpu.dimension_semantics<parallel>], iteration_bounds = array<i64: 2>, scalar_prefetch = 0 : i64, scratch_operands = 4 : i64, tpu.core_type = #tpu.core_type<tc>, window_params = [{transform_indices = @transform_0, window_bounds = array<i64: 5>}, {pipeline_mode = #tpu.pipeline_mode<synchronous>, transform_indices = @transform_1, window_bounds = array<i64: 288, 1>}, {transform_indices = @transform_2, window_bounds = array<i64: 1, 1, 1, 288, 4>}, {pipeline_mode = #tpu.pipeline_mode<synchronous>, transform_indices = @transform_3, window_bounds = array<i64: 36, 4>}, {pipeline_mode = #tpu.pipeline_mode<synchronous>, transform_indices = @transform_4, window_bounds = array<i64: 36, 4>}, {transform_indices = @transform_5, window_bounds = array<i64: 1, 288, 4>}]} {
    %c0 = arith.constant 0 : index
    %0 = memref.load %arg1[%c0] : memref<5xf32, #tpu.memory_space<smem>>
    %c1 = arith.constant 1 : index
    %1 = memref.load %arg1[%c1] : memref<5xf32, #tpu.memory_space<smem>>
    %c2 = arith.constant 2 : index
    %2 = memref.load %arg1[%c2] : memref<5xf32, #tpu.memory_space<smem>>
    %c3 = arith.constant 3 : index
    %3 = memref.load %arg1[%c3] : memref<5xf32, #tpu.memory_space<smem>>
    %c4 = arith.constant 4 : index
    %4 = memref.load %arg1[%c4] : memref<5xf32, #tpu.memory_space<smem>>
    %c0_0 = arith.constant 0 : index
    %c0_1 = arith.constant 0 : index
    %5 = vector.load %arg2[%c0_0, %c0_1] : memref<288x1xf32, #tpu.memory_space<vmem>>, vector<288x1xf32>
    %c0_2 = arith.constant 0 : index
    %c0_3 = arith.constant 0 : index
    %c0_4 = arith.constant 0 : index
    %c0_5 = arith.constant 0 : index
    %c0_6 = arith.constant 0 : index
    %6 = vector.load %arg3[%c0_2, %c0_3, %c0_4, %c0_5, %c0_6] : memref<1x1x1x288x4xf32, #tpu.memory_space<vmem>>, vector<1x1x1x288x4xf32>
    %7 = vector.shape_cast %6 : vector<1x1x1x288x4xf32> to vector<288x4xf32>
    %8 = vector.broadcast %0 : f32 to vector<288x4xf32>
    %9 = arith.addf %7, %8 : vector<288x4xf32>
    %cst = arith.constant 0.000000e+00 : f32
    %10 = vector.broadcast %cst : f32 to vector<288x4xf32>
    %11 = arith.maximumf %9, %10 : vector<288x4xf32>
    %12 = vector.broadcast %5 : vector<288x1xf32> to vector<288x4xf32>
    %13 = arith.mulf %12, %11 : vector<288x4xf32>
    %cst_7 = arith.constant 0.000000e+00 : f32
    %14 = vector.broadcast %cst_7 : f32 to vector<19x4xf32>
    %c0_8 = arith.constant 0 : index
    %c0_9 = arith.constant 0 : index
    %c0_10 = arith.constant 0 : index
    %c0_11 = arith.constant 0 : index
    %15 = vector.load %arg7[%c0_8, %c0_9, %c0_10, %c0_11] : memref<1x1x328x4xf32, #tpu.memory_space<vmem>>, vector<1x1x19x4xf32>
    %16 = vector.shape_cast %15 : vector<1x1x19x4xf32> to vector<19x4xf32>
    %17 = vector.shape_cast %14 : vector<19x4xf32> to vector<1x1x19x4xf32>
    tpu.vector_store %arg7[%c0_8, %c0_9, %c0_10, %c0_11], %17 {strides = array<i32>} : memref<1x1x328x4xf32, #tpu.memory_space<vmem>>, vector<1x1x19x4xf32>,
    %cst_12 = arith.constant 0.000000e+00 : f32
    %18 = vector.broadcast %cst_12 : f32 to vector<21x4xf32>
    %c0_13 = arith.constant 0 : index
    %c0_14 = arith.constant 0 : index
    %c307 = arith.constant 307 : index
    %c0_15 = arith.constant 0 : index
    %19 = vector.load %arg7[%c0_13, %c0_14, %c307, %c0_15] : memref<1x1x328x4xf32, #tpu.memory_space<vmem>>, vector<1x1x21x4xf32>
    %20 = vector.shape_cast %19 : vector<1x1x21x4xf32> to vector<21x4xf32>
    %21 = vector.shape_cast %18 : vector<21x4xf32> to vector<1x1x21x4xf32>
    tpu.vector_store %arg7[%c0_13, %c0_14, %c307, %c0_15], %21 {strides = array<i32>} : memref<1x1x328x4xf32, #tpu.memory_space<vmem>>, vector<1x1x21x4xf32>,
    %c0_16 = arith.constant 0 : index
    %c0_17 = arith.constant 0 : index
    %c19 = arith.constant 19 : index
    %c0_18 = arith.constant 0 : index
    %22 = vector.load %arg7[%c0_16, %c0_17, %c19, %c0_18] : memref<1x1x328x4xf32, #tpu.memory_space<vmem>>, vector<1x1x288x4xf32>
    %23 = vector.shape_cast %22 : vector<1x1x288x4xf32> to vector<288x4xf32>
    %24 = vector.shape_cast %13 : vector<288x4xf32> to vector<1x1x288x4xf32>
    tpu.vector_store %arg7[%c0_16, %c0_17, %c19, %c0_18], %24 {strides = array<i32>} : memref<1x1x328x4xf32, #tpu.memory_space<vmem>>, vector<1x1x288x4xf32>,
    %c0_19 = arith.constant 0 : index
    %c0_20 = arith.constant 0 : index
    %c0_21 = arith.constant 0 : index
    %c0_22 = arith.constant 0 : index
    %25 = vector.load %arg7[%c0_19, %c0_20, %c0_21, %c0_22] : memref<1x1x328x4xf32, #tpu.memory_space<vmem>>, vector<1x1x288x4xf32>
    %26 = vector.shape_cast %25 : vector<1x1x288x4xf32> to vector<288x4xf32>
    %c0_23 = arith.constant 0 : index
    %c0_24 = arith.constant 0 : index
    %27 = vector.load %arg9[%c0_23, %c0_24] : memref<288x36xf32, #tpu.memory_space<vmem>>, vector<288x4xf32>
    tpu.vector_store %arg9[%c0_23, %c0_24], %26 {strides = array<i32>} : memref<288x36xf32, #tpu.memory_space<vmem>>, vector<288x4xf32>,
    %c0_25 = arith.constant 0 : index
    %c0_26 = arith.constant 0 : index
    %c1_27 = arith.constant 1 : index
    %c0_28 = arith.constant 0 : index
    %28 = vector.load %arg7[%c0_25, %c0_26, %c1_27, %c0_28] : memref<1x1x328x4xf32, #tpu.memory_space<vmem>>, vector<1x1x288x4xf32>
    %29 = vector.shape_cast %28 : vector<1x1x288x4xf32> to vector<288x4xf32>
    %c0_29 = arith.constant 0 : index
    %c4_30 = arith.constant 4 : index
    %30 = vector.load %arg9[%c0_29, %c4_30] : memref<288x36xf32, #tpu.memory_space<vmem>>, vector<288x4xf32>
    tpu.vector_store %arg9[%c0_29, %c4_30], %29 {strides = array<i32>} : memref<288x36xf32, #tpu.memory_space<vmem>>, vector<288x4xf32>,
    %c0_31 = arith.constant 0 : index
    %c0_32 = arith.constant 0 : index
    %c2_33 = arith.constant 2 : index
    %c0_34 = arith.constant 0 : index
    %31 = vector.load %arg7[%c0_31, %c0_32, %c2_33, %c0_34] : memref<1x1x328x4xf32, #tpu.memory_space<vmem>>, vector<1x1x288x4xf32>
    %32 = vector.shape_cast %31 : vector<1x1x288x4xf32> to vector<288x4xf32>
    %c0_35 = arith.constant 0 : index
    %c8 = arith.constant 8 : index
    %33 = vector.load %arg9[%c0_35, %c8] : memref<288x36xf32, #tpu.memory_space<vmem>>, vector<288x4xf32>
    tpu.vector_store %arg9[%c0_35, %c8], %32 {strides = array<i32>} : memref<288x36xf32, #tpu.memory_space<vmem>>, vector<288x4xf32>,
    %c0_36 = arith.constant 0 : index
    %c0_37 = arith.constant 0 : index
    %c18 = arith.constant 18 : index
    %c0_38 = arith.constant 0 : index
    %34 = vector.load %arg7[%c0_36, %c0_37, %c18, %c0_38] : memref<1x1x328x4xf32, #tpu.memory_space<vmem>>, vector<1x1x288x4xf32>
    %35 = vector.shape_cast %34 : vector<1x1x288x4xf32> to vector<288x4xf32>
    %c0_39 = arith.constant 0 : index
    %c12 = arith.constant 12 : index
    %36 = vector.load %arg9[%c0_39, %c12] : memref<288x36xf32, #tpu.memory_space<vmem>>, vector<288x4xf32>
    tpu.vector_store %arg9[%c0_39, %c12], %35 {strides = array<i32>} : memref<288x36xf32, #tpu.memory_space<vmem>>, vector<288x4xf32>,
    %c0_40 = arith.constant 0 : index
    %c0_41 = arith.constant 0 : index
    %c19_42 = arith.constant 19 : index
    %c0_43 = arith.constant 0 : index
    %37 = vector.load %arg7[%c0_40, %c0_41, %c19_42, %c0_43] : memref<1x1x328x4xf32, #tpu.memory_space<vmem>>, vector<1x1x288x4xf32>
    %38 = vector.shape_cast %37 : vector<1x1x288x4xf32> to vector<288x4xf32>
    %c0_44 = arith.constant 0 : index
    %c16 = arith.constant 16 : index
    %39 = vector.load %arg9[%c0_44, %c16] : memref<288x36xf32, #tpu.memory_space<vmem>>, vector<288x4xf32>
    tpu.vector_store %arg9[%c0_44, %c16], %38 {strides = array<i32>} : memref<288x36xf32, #tpu.memory_space<vmem>>, vector<288x4xf32>,
    %c0_45 = arith.constant 0 : index
    %c0_46 = arith.constant 0 : index
    %c20 = arith.constant 20 : index
    %c0_47 = arith.constant 0 : index
    %40 = vector.load %arg7[%c0_45, %c0_46, %c20, %c0_47] : memref<1x1x328x4xf32, #tpu.memory_space<vmem>>, vector<1x1x288x4xf32>
    %41 = vector.shape_cast %40 : vector<1x1x288x4xf32> to vector<288x4xf32>
    %c0_48 = arith.constant 0 : index
    %c20_49 = arith.constant 20 : index
    %42 = vector.load %arg9[%c0_48, %c20_49] : memref<288x36xf32, #tpu.memory_space<vmem>>, vector<288x4xf32>
    tpu.vector_store %arg9[%c0_48, %c20_49], %41 {strides = array<i32>} : memref<288x36xf32, #tpu.memory_space<vmem>>, vector<288x4xf32>,
    %c0_50 = arith.constant 0 : index
    %c0_51 = arith.constant 0 : index
    %c36 = arith.constant 36 : index
    %c0_52 = arith.constant 0 : index
    %43 = vector.load %arg7[%c0_50, %c0_51, %c36, %c0_52] : memref<1x1x328x4xf32, #tpu.memory_space<vmem>>, vector<1x1x288x4xf32>
    %44 = vector.shape_cast %43 : vector<1x1x288x4xf32> to vector<288x4xf32>
    %c0_53 = arith.constant 0 : index
    %c24 = arith.constant 24 : index
    %45 = vector.load %arg9[%c0_53, %c24] : memref<288x36xf32, #tpu.memory_space<vmem>>, vector<288x4xf32>
    tpu.vector_store %arg9[%c0_53, %c24], %44 {strides = array<i32>} : memref<288x36xf32, #tpu.memory_space<vmem>>, vector<288x4xf32>,
    %c0_54 = arith.constant 0 : index
    %c0_55 = arith.constant 0 : index
    %c37 = arith.constant 37 : index
    %c0_56 = arith.constant 0 : index
    %46 = vector.load %arg7[%c0_54, %c0_55, %c37, %c0_56] : memref<1x1x328x4xf32, #tpu.memory_space<vmem>>, vector<1x1x288x4xf32>
    %47 = vector.shape_cast %46 : vector<1x1x288x4xf32> to vector<288x4xf32>
    %c0_57 = arith.constant 0 : index
    %c28 = arith.constant 28 : index
    %48 = vector.load %arg9[%c0_57, %c28] : memref<288x36xf32, #tpu.memory_space<vmem>>, vector<288x4xf32>
    tpu.vector_store %arg9[%c0_57, %c28], %47 {strides = array<i32>} : memref<288x36xf32, #tpu.memory_space<vmem>>, vector<288x4xf32>,
    %c0_58 = arith.constant 0 : index
    %c0_59 = arith.constant 0 : index
    %c38 = arith.constant 38 : index
    %c0_60 = arith.constant 0 : index
    %49 = vector.load %arg7[%c0_58, %c0_59, %c38, %c0_60] : memref<1x1x328x4xf32, #tpu.memory_space<vmem>>, vector<1x1x288x4xf32>
    %50 = vector.shape_cast %49 : vector<1x1x288x4xf32> to vector<288x4xf32>
    %c0_61 = arith.constant 0 : index
    %c32 = arith.constant 32 : index
    %51 = vector.load %arg9[%c0_61, %c32] : memref<288x36xf32, #tpu.memory_space<vmem>>, vector<288x4xf32>
    tpu.vector_store %arg9[%c0_61, %c32], %50 {strides = array<i32>} : memref<288x36xf32, #tpu.memory_space<vmem>>, vector<288x4xf32>,
    %c0_62 = arith.constant 0 : index
    %c0_63 = arith.constant 0 : index
    %52 = vector.load %arg9[%c0_62, %c0_63] : memref<288x36xf32, #tpu.memory_space<vmem>>, vector<288x36xf32>
    %c0_64 = arith.constant 0 : index
    %c0_65 = arith.constant 0 : index
    %53 = vector.load %arg4[%c0_64, %c0_65] : memref<36x4xf32, #tpu.memory_space<vmem>>, vector<36x4xf32>
    %cst_66 = arith.constant dense<0.000000e+00> : vector<288x4xf32>
    %54 = tpu.matmul %52, %53, %cst_66 {dimension_numbers = #tpu.dot_dimension_numbers<[1], [0], [0], [1], [0, 0, 1, 1], [], []>} : vector<288x36xf32>, vector<36x4xf32>, vector<288x4xf32> -> vector<288x4xf32>
    %55 = vector.broadcast %1 : f32 to vector<288x4xf32>
    %56 = arith.addf %54, %55 : vector<288x4xf32>
    %cst_67 = arith.constant 0.000000e+00 : f32
    %57 = vector.broadcast %cst_67 : f32 to vector<288x4xf32>
    %58 = arith.maximumf %56, %57 : vector<288x4xf32>
    %59 = vector.broadcast %2 : f32 to vector<288x4xf32>
    %60 = arith.addf %58, %59 : vector<288x4xf32>
    %61 = vector.broadcast %5 : vector<288x1xf32> to vector<288x4xf32>
    %62 = arith.mulf %61, %60 : vector<288x4xf32>
    %cst_68 = arith.constant 0.000000e+00 : f32
    %63 = vector.broadcast %cst_68 : f32 to vector<19x4xf32>
    %c0_69 = arith.constant 0 : index
    %c0_70 = arith.constant 0 : index
    %64 = vector.load %arg8[%c0_69, %c0_70] : memref<328x4xf32, #tpu.memory_space<vmem>>, vector<19x4xf32>
    tpu.vector_store %arg8[%c0_69, %c0_70], %63 {strides = array<i32>} : memref<328x4xf32, #tpu.memory_space<vmem>>, vector<19x4xf32>,
    %cst_71 = arith.constant 0.000000e+00 : f32
    %65 = vector.broadcast %cst_71 : f32 to vector<21x4xf32>
    %c307_72 = arith.constant 307 : index
    %c0_73 = arith.constant 0 : index
    %66 = vector.load %arg8[%c307_72, %c0_73] : memref<328x4xf32, #tpu.memory_space<vmem>>, vector<21x4xf32>
    tpu.vector_store %arg8[%c307_72, %c0_73], %65 {strides = array<i32>} : memref<328x4xf32, #tpu.memory_space<vmem>>, vector<21x4xf32>,
    %c19_74 = arith.constant 19 : index
    %c0_75 = arith.constant 0 : index
    %67 = vector.load %arg8[%c19_74, %c0_75] : memref<328x4xf32, #tpu.memory_space<vmem>>, vector<288x4xf32>
    tpu.vector_store %arg8[%c19_74, %c0_75], %62 {strides = array<i32>} : memref<328x4xf32, #tpu.memory_space<vmem>>, vector<288x4xf32>,
    %c0_76 = arith.constant 0 : index
    %c0_77 = arith.constant 0 : index
    %68 = vector.load %arg8[%c0_76, %c0_77] : memref<328x4xf32, #tpu.memory_space<vmem>>, vector<288x4xf32>
    %c0_78 = arith.constant 0 : index
    %c0_79 = arith.constant 0 : index
    %69 = vector.load %arg10[%c0_78, %c0_79] : memref<288x36xf32, #tpu.memory_space<vmem>>, vector<288x4xf32>
    tpu.vector_store %arg10[%c0_78, %c0_79], %68 {strides = array<i32>} : memref<288x36xf32, #tpu.memory_space<vmem>>, vector<288x4xf32>,
    %c1_80 = arith.constant 1 : index
    %c0_81 = arith.constant 0 : index
    %70 = vector.load %arg8[%c1_80, %c0_81] : memref<328x4xf32, #tpu.memory_space<vmem>>, vector<288x4xf32>
    %c0_82 = arith.constant 0 : index
    %c4_83 = arith.constant 4 : index
    %71 = vector.load %arg10[%c0_82, %c4_83] : memref<288x36xf32, #tpu.memory_space<vmem>>, vector<288x4xf32>
    tpu.vector_store %arg10[%c0_82, %c4_83], %70 {strides = array<i32>} : memref<288x36xf32, #tpu.memory_space<vmem>>, vector<288x4xf32>,
    %c2_84 = arith.constant 2 : index
    %c0_85 = arith.constant 0 : index
    %72 = vector.load %arg8[%c2_84, %c0_85] : memref<328x4xf32, #tpu.memory_space<vmem>>, vector<288x4xf32>
    %c0_86 = arith.constant 0 : index
    %c8_87 = arith.constant 8 : index
    %73 = vector.load %arg10[%c0_86, %c8_87] : memref<288x36xf32, #tpu.memory_space<vmem>>, vector<288x4xf32>
    tpu.vector_store %arg10[%c0_86, %c8_87], %72 {strides = array<i32>} : memref<288x36xf32, #tpu.memory_space<vmem>>, vector<288x4xf32>,
    %c18_88 = arith.constant 18 : index
    %c0_89 = arith.constant 0 : index
    %74 = vector.load %arg8[%c18_88, %c0_89] : memref<328x4xf32, #tpu.memory_space<vmem>>, vector<288x4xf32>
    %c0_90 = arith.constant 0 : index
    %c12_91 = arith.constant 12 : index
    %75 = vector.load %arg10[%c0_90, %c12_91] : memref<288x36xf32, #tpu.memory_space<vmem>>, vector<288x4xf32>
    tpu.vector_store %arg10[%c0_90, %c12_91], %74 {strides = array<i32>} : memref<288x36xf32, #tpu.memory_space<vmem>>, vector<288x4xf32>,
    %c19_92 = arith.constant 19 : index
    %c0_93 = arith.constant 0 : index
    %76 = vector.load %arg8[%c19_92, %c0_93] : memref<328x4xf32, #tpu.memory_space<vmem>>, vector<288x4xf32>
    %c0_94 = arith.constant 0 : index
    %c16_95 = arith.constant 16 : index
    %77 = vector.load %arg10[%c0_94, %c16_95] : memref<288x36xf32, #tpu.memory_space<vmem>>, vector<288x4xf32>
    tpu.vector_store %arg10[%c0_94, %c16_95], %76 {strides = array<i32>} : memref<288x36xf32, #tpu.memory_space<vmem>>, vector<288x4xf32>,
    %c20_96 = arith.constant 20 : index
    %c0_97 = arith.constant 0 : index
    %78 = vector.load %arg8[%c20_96, %c0_97] : memref<328x4xf32, #tpu.memory_space<vmem>>, vector<288x4xf32>
    %c0_98 = arith.constant 0 : index
    %c20_99 = arith.constant 20 : index
    %79 = vector.load %arg10[%c0_98, %c20_99] : memref<288x36xf32, #tpu.memory_space<vmem>>, vector<288x4xf32>
    tpu.vector_store %arg10[%c0_98, %c20_99], %78 {strides = array<i32>} : memref<288x36xf32, #tpu.memory_space<vmem>>, vector<288x4xf32>,
    %c36_100 = arith.constant 36 : index
    %c0_101 = arith.constant 0 : index
    %80 = vector.load %arg8[%c36_100, %c0_101] : memref<328x4xf32, #tpu.memory_space<vmem>>, vector<288x4xf32>
    %c0_102 = arith.constant 0 : index
    %c24_103 = arith.constant 24 : index
    %81 = vector.load %arg10[%c0_102, %c24_103] : memref<288x36xf32, #tpu.memory_space<vmem>>, vector<288x4xf32>
    tpu.vector_store %arg10[%c0_102, %c24_103], %80 {strides = array<i32>} : memref<288x36xf32, #tpu.memory_space<vmem>>, vector<288x4xf32>,
    %c37_104 = arith.constant 37 : index
    %c0_105 = arith.constant 0 : index
    %82 = vector.load %arg8[%c37_104, %c0_105] : memref<328x4xf32, #tpu.memory_space<vmem>>, vector<288x4xf32>
    %c0_106 = arith.constant 0 : index
    %c28_107 = arith.constant 28 : index
    %83 = vector.load %arg10[%c0_106, %c28_107] : memref<288x36xf32, #tpu.memory_space<vmem>>, vector<288x4xf32>
    tpu.vector_store %arg10[%c0_106, %c28_107], %82 {strides = array<i32>} : memref<288x36xf32, #tpu.memory_space<vmem>>, vector<288x4xf32>,
    %c38_108 = arith.constant 38 : index
    %c0_109 = arith.constant 0 : index
    %84 = vector.load %arg8[%c38_108, %c0_109] : memref<328x4xf32, #tpu.memory_space<vmem>>, vector<288x4xf32>
    %c0_110 = arith.constant 0 : index
    %c32_111 = arith.constant 32 : index
    %85 = vector.load %arg10[%c0_110, %c32_111] : memref<288x36xf32, #tpu.memory_space<vmem>>, vector<288x4xf32>
    tpu.vector_store %arg10[%c0_110, %c32_111], %84 {strides = array<i32>} : memref<288x36xf32, #tpu.memory_space<vmem>>, vector<288x4xf32>,
    %c0_112 = arith.constant 0 : index
    %c0_113 = arith.constant 0 : index
    %86 = vector.load %arg10[%c0_112, %c0_113] : memref<288x36xf32, #tpu.memory_space<vmem>>, vector<288x36xf32>
    %c0_114 = arith.constant 0 : index
    %c0_115 = arith.constant 0 : index
    %87 = vector.load %arg5[%c0_114, %c0_115] : memref<36x4xf32, #tpu.memory_space<vmem>>, vector<36x4xf32>
    %cst_116 = arith.constant dense<0.000000e+00> : vector<288x4xf32>
    %88 = tpu.matmul %86, %87, %cst_116 {dimension_numbers = #tpu.dot_dimension_numbers<[1], [0], [0], [1], [0, 0, 1, 1], [], []>} : vector<288x36xf32>, vector<36x4xf32>, vector<288x4xf32> -> vector<288x4xf32>
    %89 = vector.broadcast %4 : f32 to vector<288x4xf32>
    %90 = arith.mulf %88, %89 : vector<288x4xf32>
    %91 = vector.broadcast %3 : f32 to vector<288x4xf32>
    %92 = arith.addf %90, %91 : vector<288x4xf32>
    %c0_117 = arith.constant 0 : index
    %c0_118 = arith.constant 0 : index
    %c0_119 = arith.constant 0 : index
    %c0_120 = arith.constant 0 : index
    %c0_121 = arith.constant 0 : index
    %93 = vector.load %arg3[%c0_117, %c0_118, %c0_119, %c0_120, %c0_121] : memref<1x1x1x288x4xf32, #tpu.memory_space<vmem>>, vector<1x1x1x288x4xf32>
    %94 = vector.shape_cast %93 : vector<1x1x1x288x4xf32> to vector<288x4xf32>
    %95 = arith.addf %92, %94 : vector<288x4xf32>
    %c0_122 = arith.constant 0 : index
    %c0_123 = arith.constant 0 : index
    %c0_124 = arith.constant 0 : index
    %96 = vector.load %arg6[%c0_122, %c0_123, %c0_124] : memref<1x288x4xf32, #tpu.memory_space<vmem>>, vector<1x288x4xf32>
    %97 = vector.shape_cast %96 : vector<1x288x4xf32> to vector<288x4xf32>
    %98 = vector.shape_cast %95 : vector<288x4xf32> to vector<1x288x4xf32>
    tpu.vector_store %arg6[%c0_122, %c0_123, %c0_124], %98 {strides = array<i32>} : memref<1x288x4xf32, #tpu.memory_space<vmem>>, vector<1x288x4xf32>,
    return
  }
  func.func @transform_0(%arg0: i32) -> i32 {
    %c0_i32 = arith.constant 0 : i32
    %c0_i32_0 = arith.constant 0 : i32
    return %c0_i32 : i32
  }
  func.func @transform_1(%arg0: i32) -> (i32, i32) {
    %c0_i32 = arith.constant 0 : i32
    %c0_i32_0 = arith.constant 0 : i32
    %c0_i32_1 = arith.constant 0 : i32
    return %c0_i32, %c0_i32_0 : i32, i32
  }
  func.func @transform_2(%arg0: i32) -> (i32, i32, i32, i32, i32) {
    %c0_i32 = arith.constant 0 : i32
    %c0_i32_0 = arith.constant 0 : i32
    %c0_i32_1 = arith.constant 0 : i32
    %c0_i32_2 = arith.constant 0 : i32
    %c0_i32_3 = arith.constant 0 : i32
    return %arg0, %c0_i32, %c0_i32_0, %c0_i32_1, %c0_i32_2 : i32, i32, i32, i32, i32
  }
  func.func @transform_3(%arg0: i32) -> (i32, i32) {
    %c0_i32 = arith.constant 0 : i32
    %c0_i32_0 = arith.constant 0 : i32
    %c0_i32_1 = arith.constant 0 : i32
    return %c0_i32, %c0_i32_0 : i32, i32
  }
  func.func @transform_4(%arg0: i32) -> (i32, i32) {
    %c0_i32 = arith.constant 0 : i32
    %c0_i32_0 = arith.constant 0 : i32
    %c0_i32_1 = arith.constant 0 : i32
    return %c0_i32, %c0_i32_0 : i32, i32
  }
  func.func @transform_5(%arg0: i32) -> (i32, i32, i32) {
    %c0_i32 = arith.constant 0 : i32
    %c0_i32_0 = arith.constant 0 : i32
    %c0_i32_1 = arith.constant 0 : i32
    return %arg0, %c0_i32, %c0_i32_0 : i32, i32, i32
  }
}

</mosaic_0001>

<llo_original>
// kernel: tpu_custom_call.1
$region0: #{tpu_custom_call.1}
  #allocation0 [shape = 'u32[]', space=smem, size = 0x4, offset = 0x4, fixed_abs, tag = 'smem constant byte address 0x4 - core index']
  #allocation1 [shape = 'u32[144,128]{1,0:T(1,128)}', space=vmem, size = 0x12000, scoped, tag = 'internal scratch']
  #allocation2 [shape = 'f32[1,1,328,4]{3,2,1,0:T(8,128)}', space=vmem, size = 0x29000, scoped, tag = 'scratch operand']
  #allocation3 [shape = 'f32[328,4]{1,0:T(8,128)}', space=vmem, size = 0x29000, scoped, tag = 'scratch operand']
  #allocation4 [shape = 'f32[288,36]{1,0:T(8,128)}', space=vmem, size = 0x24000, scoped, tag = 'scratch operand']
  #allocation5 [shape = 'f32[288,36]{1,0:T(8,128)}', space=vmem, size = 0x24000, scoped, tag = 'scratch operand']
  %s0 = inlined_call_operand.hbm [shape: f32[5], index: 0, kind: input, shape index: {}]
  %s1 = inlined_call_operand.hbm [shape: f32[288,1], index: 1, kind: input, shape index: {}]
  %s2 = inlined_call_operand.hbm [shape: f32[2,1,1,288,4], index: 2, kind: input, shape index: {}]
  %s3 = inlined_call_operand.hbm [shape: f32[36,4], index: 3, kind: input, shape index: {}]
  %s4 = inlined_call_operand.hbm [shape: f32[36,4], index: 4, kind: input, shape index: {}]
  %s5 = inlined_call_operand.hbm [shape: f32[2,288,4], index: 5, kind: output, shape index: {}]
  %s6 = sld [smem:[#allocation0]]
  $region73: #{tpu_custom_call.1} parent=0
    _
  %s8 = ssub.s32 1, %s6
  %s9 = scalar_select 0, %s8, %s6
  $region1: #{tpu_custom_call.1} parent=0
    #allocation6 [shape = 'u8[512]{0}', space=smem, size = 0x200, scoped, tag = 'input window, operand 0, single buffered']
    #allocation7 [shape = 's32[2]{0}', space=sflag, size = 0x8, scoped, tag = 'scoped memory for tpu_custom_call.1']
    #allocation8 [shape = 's32[2]{0}', space=sflag, size = 0x8, scoped, tag = 'scoped memory for tpu_custom_call.1']
    #allocation9 [shape = 's32[2]{0}', space=sflag, size = 0x8, scoped, tag = 'scoped memory for tpu_custom_call.1']
    #allocation10 [shape = 'u8[147456]{0}', space=vmem, size = 0x24000, scoped, tag = 'input window, operand 1, single buffered']
    #allocation11 [shape = 'u8[294912]{0}', space=vmem, size = 0x48000, scoped, tag = 'input window, operand 2']
    #allocation12 [shape = 's32[2]{0}', space=sflag, size = 0x8, scoped, tag = 'scoped memory for tpu_custom_call.1']
    #allocation13 [shape = 'u8[20480]{0}', space=vmem, size = 0x5000, scoped, tag = 'input window, operand 3, single buffered']
    #allocation14 [shape = 'u8[20480]{0}', space=vmem, size = 0x5000, scoped, tag = 'input window, operand 4, single buffered']
    #allocation15 [shape = 's32[1]{0}', space=sflag, size = 0x4, scoped, tag = 'scoped memory for tpu_custom_call.1']
    #allocation16 [shape = 'u8[294912]{0}', space=vmem, size = 0x48000, scoped, tag = 'output window, operand 0']
    %10 = vsyncpa [#allocation9], 0
    %11 = vsyncpa [#allocation7], 0
    %12 = vsyncpa [#allocation12], 0
    %s13 = scalar_lea.sflag [#allocation12], 1
    %14 = vsyncpa %s13, 0
    %15 = vsyncpa [#allocation15], 0
    %16 = vsyncpa [#allocation8], 0
    %s17 = scalar_lea.sflag [#allocation8], 1
    %18 = vsyncpa %s17, 0
    loop: start=0, step=1, limit=4
    $region2: #{tpu_custom_call.1} parent=1 // loop_pre_header
      _
    $region3: #{tpu_custom_call.1} parent=1 // loop_header
      %s20 = sphi 0, %s24
      %p21 = scmp.ge.s32.totalorder %s20, 4
      %s28 = sphi 0, %s28
      %s30 = sphi 0, %s28
      %s31 = sphi 0, %s30
      %s45 = sphi 0, %s31
      %s49 = sphi 0, %s49
      %s51 = sphi 0, %s49
      %s52 = sphi 0, %s51
      %s66 = sphi 0, %s52
      %s72 = sphi 0, %s74
      %s75 = sphi 0, %s72
      %s76 = sphi 0, %s75
      %s92 = sphi 0, %s76
      %s96 = sphi 0, %s96
      %s98 = sphi 0, %s96
      %s99 = sphi 0, %s98
      %s113 = sphi 0, %s99
      %s117 = sphi 0, %s117
      %s119 = sphi 0, %s117
      %s120 = sphi 0, %s119
      %s134 = sphi 0, %s120
      %s140 = sphi 0, %s142
      %s143 = sphi 0, %s140
      %s144 = sphi 0, %s143
      %s160 = sphi 0, %s144
    $region4: #{tpu_custom_call.1} parent=1 // loop_header_branch
      %23 = sbr.rel (%p21) target = $region8
    $region5: #{tpu_custom_call.1} parent=1 // loop_body
      %s25 = ssub.s32 %s20, 1
      %s26 = ssub.s32 %s20, 2
      %s27 = sadd.s32 %s20, 1
      %s29 = sadd.s32 %s28, 1
      %p32 = scmp.eq.s32.totalorder %s20, 1
      %p33 = scmp.ne.s32.totalorder %s28, %s30
      %p34 = scmp.eq.s32.totalorder %s20, 0
      %p35 = por %p33, %p34
      %p36 = scmp.ne.s32.totalorder %s28, %s30
      %p37 = scmp.eq.s32.totalorder %s25, 1
      %p38 = por %p36, %p37
      %p39 = scmp.ne.s32.totalorder %s30, %s31
      %p40 = scmp.eq.s32.totalorder %s25, 0
      %p41 = por %p39, %p40
      %p42 = scmp.ne.s32.totalorder %s30, %s31
      %p43 = scmp.eq.s32.totalorder %s26, 1
      %p44 = por %p42, %p43
      %p46 = scmp.ne.s32.totalorder %s31, %s45
      %p47 = scmp.eq.s32.totalorder %s26, 0
      %p48 = por %p46, %p47
      %s50 = sadd.s32 %s49, 1
      %p53 = scmp.eq.s32.totalorder %s20, 1
      %p54 = scmp.ne.s32.totalorder %s49, %s51
      %p55 = scmp.eq.s32.totalorder %s20, 0
      %p56 = por %p54, %p55
      %p57 = scmp.ne.s32.totalorder %s49, %s51
      %p58 = scmp.eq.s32.totalorder %s25, 1
      %p59 = por %p57, %p58
      %p60 = scmp.ne.s32.totalorder %s51, %s52
      %p61 = scmp.eq.s32.totalorder %s25, 0
      %p62 = por %p60, %p61
      %p63 = scmp.ne.s32.totalorder %s51, %s52
      %p64 = scmp.eq.s32.totalorder %s26, 1
      %p65 = por %p63, %p64
      %p67 = scmp.ne.s32.totalorder %s52, %s66
      %p68 = scmp.eq.s32.totalorder %s26, 0
      %p69 = por %p67, %p68
      %s70 = ssub.s32 %s20, %s27
      %p71 = scmp.eq.s32.totalorder %s70, 0
      %s73 = sadd.s32 %s72, 1
      %s74 = scalar_select %p71, %s72, %s73
      %p77 = pneg %p71
      %p78 = scmp.eq.s32.totalorder %s20, 1
      %p79 = por %p77, %p78
      %p80 = scmp.ne.s32.totalorder %s72, %s75
      %p81 = scmp.eq.s32.totalorder %s20, 0
      %p82 = por %p80, %p81
      %p83 = scmp.ne.s32.totalorder %s72, %s75
      %p84 = scmp.eq.s32.totalorder %s25, 1
      %p85 = por %p83, %p84
      %p86 = scmp.ne.s32.totalorder %s75, %s76
      %p87 = scmp.eq.s32.totalorder %s25, 0
      %p88 = por %p86, %p87
      %p89 = scmp.ne.s32.totalorder %s75, %s76
      %p90 = scmp.eq.s32.totalorder %s26, 1
      %p91 = por %p89, %p90
      %p93 = scmp.ne.s32.totalorder %s76, %s92
      %p94 = scmp.eq.s32.totalorder %s26, 0
      %p95 = por %p93, %p94
      %s97 = sadd.s32 %s96, 1
      %p100 = scmp.eq.s32.totalorder %s20, 1
      %p101 = scmp.ne.s32.totalorder %s96, %s98
      %p102 = scmp.eq.s32.totalorder %s20, 0
      %p103 = por %p101, %p102
      %p104 = scmp.ne.s32.totalorder %s96, %s98
      %p105 = scmp.eq.s32.totalorder %s25, 1
      %p106 = por %p104, %p105
      %p107 = scmp.ne.s32.totalorder %s98, %s99
      %p108 = scmp.eq.s32.totalorder %s25, 0
      %p109 = por %p107, %p108
      %p110 = scmp.ne.s32.totalorder %s98, %s99
      %p111 = scmp.eq.s32.totalorder %s26, 1
      %p112 = por %p110, %p111
      %p114 = scmp.ne.s32.totalorder %s99, %s113
      %p115 = scmp.eq.s32.totalorder %s26, 0
      %p116 = por %p114, %p115
      %s118 = sadd.s32 %s117, 1
      %p121 = scmp.eq.s32.totalorder %s20, 1
      %p122 = scmp.ne.s32.totalorder %s117, %s119
      %p123 = scmp.eq.s32.totalorder %s20, 0
      %p124 = por %p122, %p123
      %p125 = scmp.ne.s32.totalorder %s117, %s119
      %p126 = scmp.eq.s32.totalorder %s25, 1
      %p127 = por %p125, %p126
      %p128 = scmp.ne.s32.totalorder %s119, %s120
      %p129 = scmp.eq.s32.totalorder %s25, 0
      %p130 = por %p128, %p129
      %p131 = scmp.ne.s32.totalorder %s119, %s120
      %p132 = scmp.eq.s32.totalorder %s26, 1
      %p133 = por %p131, %p132
      %p135 = scmp.ne.s32.totalorder %s120, %s134
      %p136 = scmp.eq.s32.totalorder %s26, 0
      %p137 = por %p135, %p136
      %s138 = ssub.s32 %s20, %s27
      %p139 = scmp.eq.s32.totalorder %s138, 0
      %s141 = sadd.s32 %s140, 1
      %s142 = scalar_select %p139, %s140, %s141
      %p145 = pneg %p139
      %p146 = scmp.eq.s32.totalorder %s20, 1
      %p147 = por %p145, %p146
      %p148 = scmp.ne.s32.totalorder %s140, %s143
      %p149 = scmp.eq.s32.totalorder %s20, 0
      %p150 = por %p148, %p149
      %p151 = scmp.ne.s32.totalorder %s140, %s143
      %p152 = scmp.eq.s32.totalorder %s25, 1
      %p153 = por %p151, %p152
      %p154 = scmp.ne.s32.totalorder %s143, %s144
      %p155 = scmp.eq.s32.totalorder %s25, 0
      %p156 = por %p154, %p155
      %p157 = scmp.ne.s32.totalorder %s143, %s144
      %p158 = scmp.eq.s32.totalorder %s26, 1
      %p159 = por %p157, %p158
      %p161 = scmp.ne.s32.totalorder %s144, %s160
      %p162 = scmp.eq.s32.totalorder %s26, 0
      %p163 = por %p161, %p162
      %p164 = scmp.le.s32.totalorder 1, %s20
      %p165 = scmp.lt.s32.totalorder %s20, 3
      %p166 = pnand %p164, %p165
      %p167 = pneg %p166
      // Predicated region
      $region9: #{tpu_custom_call.1} parent=5 // pred_check
        _
      $region10: #{tpu_custom_call.1} parent=5 // pred_check_branch
        %169 = sbr.rel (%p166) target = $region12
      $region11: #{tpu_custom_call.1} parent=5 // pred_region
        %s170 = ssub.s32 %s20, 1
        // Predicated region
        $region13: #{tpu_custom_call.1} parent=11 // pred_check
          %p171 = pneg %p41
        $region14: #{tpu_custom_call.1} parent=11 // pred_check_branch
          %173 = sbr.rel (%p171) target = $region16
        $region15: #{tpu_custom_call.1} parent=11 // pred_region
          %s175 = ssub.s32 16, 16
          %176 = vsyncadd [#allocation9], %s175
          %179 = dma.hbm_to_smem %s0, 16, [#allocation6], [#allocation9]
        $region16: #{tpu_custom_call.1} parent=11 // pred_fallthru
          _
        // Predicated region
        $region17: #{tpu_custom_call.1} parent=11 // pred_check
          %p180 = pneg %p62
        $region18: #{tpu_custom_call.1} parent=11 // pred_check_branch
          %182 = sbr.rel (%p180) target = $region20
        $region19: #{tpu_custom_call.1} parent=11 // pred_region
          %s184 = ssub.s32 4608, 4608
          %185 = vsyncadd [#allocation7], %s184
          %s186 = sshll.u32 [#allocation10], 4
          %s187 = int_to_ptr.vmem [resolvable:$true] %s186
          %192 = dma.hbm_to_vmem [thread:$0]  %s1, 4608, %s187, [#allocation7], 128, 128, 8
        $region20: #{tpu_custom_call.1} parent=11 // pred_fallthru
          _
        // Predicated region
        $region21: #{tpu_custom_call.1} parent=11 // pred_check
          %p193 = pneg %p109
        $region22: #{tpu_custom_call.1} parent=11 // pred_check_branch
          %195 = sbr.rel (%p193) target = $region24
        $region23: #{tpu_custom_call.1} parent=11 // pred_region
          %s197 = ssub.s32 640, 640
          %198 = vsyncadd [#allocation12], %s197
          %s199 = sshll.u32 [#allocation13], 4
          %s200 = int_to_ptr.vmem [resolvable:$true] %s199
          %205 = dma.hbm_to_vmem [thread:$0]  %s3, 640, %s200, [#allocation12], 128, 128, 8
        $region24: #{tpu_custom_call.1} parent=11 // pred_fallthru
          _
        // Predicated region
        $region25: #{tpu_custom_call.1} parent=11 // pred_check
          %p206 = pneg %p130
        $region26: #{tpu_custom_call.1} parent=11 // pred_check_branch
          %208 = sbr.rel (%p206) target = $region28
        $region27: #{tpu_custom_call.1} parent=11 // pred_region
          %s210 = ssub.s32 640, 640
          %211 = vsyncadd [#allocation15], %s210
          %s212 = sshll.u32 [#allocation14], 4
          %s213 = int_to_ptr.vmem [resolvable:$true] %s212
          %218 = dma.hbm_to_vmem [thread:$0]  %s4, 640, %s213, [#allocation15], 128, 128, 8
        $region28: #{tpu_custom_call.1} parent=11 // pred_fallthru
          _
      $region12: #{tpu_custom_call.1} parent=5 // pred_fallthru
        _
      %p219 = scmp.lt.s32.totalorder %s20, 2
      // Predicated region
      $region29: #{tpu_custom_call.1} parent=5 // pred_check
        %p220 = pneg %p219
      $region30: #{tpu_custom_call.1} parent=5 // pred_check_branch
        %222 = sbr.rel (%p220) target = $region32
      $region31: #{tpu_custom_call.1} parent=5 // pred_region
        // Predicated region
        $region33: #{tpu_custom_call.1} parent=31 // pred_check
          %p223 = pneg %p82
        $region34: #{tpu_custom_call.1} parent=31 // pred_check_branch
          %225 = sbr.rel (%p223) target = $region36
        $region35: #{tpu_custom_call.1} parent=31 // pred_region
          %s226 = sand.u32 %s20, 1
          %s227 = scalar_lea.sflag [#allocation12], %s226
          %s228 = sand.u32 %s72, 1
          %s229 = smul.addr %s228, 288
          %s230 = scalar_lea.vmem [#allocation11], %s229
          %s232 = ssub.s32 4608, 4608
          %233 = vsyncadd %s227, %s232
          %s234 = smul.addr %s20, 36
          %s235 = smul.addr %s234, 128
          %s236 = scalar_lea.hbm %s2, %s235
          %s237 = sshll.u32 %s230, 4
          %s238 = int_to_ptr.vmem [resolvable:$true] %s237
          %243 = dma.hbm_to_vmem [thread:$0]  %s236, 4608, %s238, %s227, 128, 128, 8
        $region36: #{tpu_custom_call.1} parent=31 // pred_fallthru
          _
      $region32: #{tpu_custom_call.1} parent=5 // pred_fallthru
        _
      %p244 = scmp.le.s32.totalorder 1, %s20
      %p245 = scmp.lt.s32.totalorder %s20, 3
      %p246 = pnand %p244, %p245
      %p247 = pneg %p246
      // Predicated region
      $region37: #{tpu_custom_call.1} parent=5 // pred_check
        _
      $region38: #{tpu_custom_call.1} parent=5 // pred_check_branch
        %249 = sbr.rel (%p246) target = $region40
      $region39: #{tpu_custom_call.1} parent=5 // pred_region
        %s250 = ssub.s32 %s20, 1
        // Predicated region
        $region41: #{tpu_custom_call.1} parent=39 // pred_check
          %p251 = pneg %p41
        $region42: #{tpu_custom_call.1} parent=39 // pred_check_branch
          %253 = sbr.rel (%p251) target = $region44
        $region43: #{tpu_custom_call.1} parent=39 // pred_region
          %254 = dma.done [#allocation9], 16
        $region44: #{tpu_custom_call.1} parent=39 // pred_fallthru
          _
        // Predicated region
        $region45: #{tpu_custom_call.1} parent=39 // pred_check
          %p255 = pneg %p62
        $region46: #{tpu_custom_call.1} parent=39 // pred_check_branch
          %257 = sbr.rel (%p255) target = $region48
        $region47: #{tpu_custom_call.1} parent=39 // pred_region
          %258 = dma.done [#allocation7], 4608
        $region48: #{tpu_custom_call.1} parent=39 // pred_fallthru
          _
        %s259 = sand.u32 %s25, 1
        %s260 = scalar_lea.sflag [#allocation12], %s259
        %s261 = sand.u32 %s75, 1
        %s262 = smul.addr %s261, 288
        %s263 = scalar_lea.vmem [#allocation11], %s262
        // Predicated region
        $region49: #{tpu_custom_call.1} parent=39 // pred_check
          %p264 = pneg %p88
        $region50: #{tpu_custom_call.1} parent=39 // pred_check_branch
          %266 = sbr.rel (%p264) target = $region52
        $region51: #{tpu_custom_call.1} parent=39 // pred_region
          %267 = dma.done %s260, 4608
        $region52: #{tpu_custom_call.1} parent=39 // pred_fallthru
          _
        // Predicated region
        $region53: #{tpu_custom_call.1} parent=39 // pred_check
          %p268 = pneg %p109
        $region54: #{tpu_custom_call.1} parent=39 // pred_check_branch
          %270 = sbr.rel (%p268) target = $region56
        $region55: #{tpu_custom_call.1} parent=39 // pred_region
          %271 = dma.done [#allocation12], 640
        $region56: #{tpu_custom_call.1} parent=39 // pred_fallthru
          _
        // Predicated region
        $region57: #{tpu_custom_call.1} parent=39 // pred_check
          %p272 = pneg %p130
        $region58: #{tpu_custom_call.1} parent=39 // pred_check_branch
          %274 = sbr.rel (%p272) target = $region60
        $region59: #{tpu_custom_call.1} parent=39 // pred_region
          %275 = dma.done [#allocation15], 640
        $region60: #{tpu_custom_call.1} parent=39 // pred_fallthru
          _
        %276 = sfence
        %p277 = pneg %p41
        %p278 = pneg %p38
        %p279 = pneg %p62
        %p280 = pneg %p59
        %s281 = sand.u32 %s25, 1
        %s282 = scalar_lea.sflag [#allocation12], %s281
        %s283 = sand.u32 %s75, 1
        %s284 = smul.addr %s283, 288
        %s285 = scalar_lea.vmem [#allocation11], %s284
        %p286 = pneg %p88
        %p287 = pneg %p85
        %p288 = pneg %p109
        %p289 = pneg %p106
        %p290 = pneg %p130
        %p291 = pneg %p127
        %p292 = pneg %p156
        %p293 = pneg %p153
        %s294 = sand.u32 %s143, 1
        %s295 = scalar_lea.sflag [#allocation8], %s294
        %s296 = sand.u32 %s143, 1
        %s297 = smul.addr %s296, 288
        %s298 = scalar_lea.vmem [#allocation16], %s297
        %s299 = sld [smem:[#allocation6]]
        %s300 = sld [smem:[#allocation6 + $0x1]]
        %s301 = sld [smem:[#allocation6 + $0x2]]
        %s302 = sld [smem:[#allocation6 + $0x3]]
        %s303 = sld [smem:[#allocation6 + $0x4]]
        %v304 = vld [vmem:[#allocation10] sm:$0xff]
        %v305 = vld [vmem:[#allocation10 + $0x8] sm:$0xff]
        %v306 = vld [vmem:[#allocation10 + $0x10] sm:$0xff]
        %v307 = vld [vmem:[#allocation10 + $0x18] sm:$0xff]
        %v308 = vld [vmem:[#allocation10 + $0x20] sm:$0xff]
        %v309 = vld [vmem:[#allocation10 + $0x28] sm:$0xff]
        %v310 = vld [vmem:[#allocation10 + $0x30] sm:$0xff]
        %v311 = vld [vmem:[#allocation10 + $0x38] sm:$0xff]
        %v312 = vld [vmem:[#allocation10 + $0x40] sm:$0xff]
        %v313 = vld [vmem:[#allocation10 + $0x48] sm:$0xff]
        %v314 = vld [vmem:[#allocation10 + $0x50] sm:$0xff]
        %v315 = vld [vmem:[#allocation10 + $0x58] sm:$0xff]
        %v316 = vld [vmem:[#allocation10 + $0x60] sm:$0xff]
        %v317 = vld [vmem:[#allocation10 + $0x68] sm:$0xff]
        %v318 = vld [vmem:[#allocation10 + $0x70] sm:$0xff]
        %v319 = vld [vmem:[#allocation10 + $0x78] sm:$0xff]
        %v320 = vld [vmem:[#allocation10 + $0x80] sm:$0xff]
        %v321 = vld [vmem:[#allocation10 + $0x88] sm:$0xff]
        %v322 = vld [vmem:[#allocation10 + $0x90] sm:$0xff]
        %v323 = vld [vmem:[#allocation10 + $0x98] sm:$0xff]
        %v324 = vld [vmem:[#allocation10 + $0xa0] sm:$0xff]
        %v325 = vld [vmem:[#allocation10 + $0xa8] sm:$0xff]
        %v326 = vld [vmem:[#allocation10 + $0xb0] sm:$0xff]
        %v327 = vld [vmem:[#allocation10 + $0xb8] sm:$0xff]
        %v328 = vld [vmem:[#allocation10 + $0xc0] sm:$0xff]
        %v329 = vld [vmem:[#allocation10 + $0xc8] sm:$0xff]
        %v330 = vld [vmem:[#allocation10 + $0xd0] sm:$0xff]
        %v331 = vld [vmem:[#allocation10 + $0xd8] sm:$0xff]
        %v332 = vld [vmem:[#allocation10 + $0xe0] sm:$0xff]
        %v333 = vld [vmem:[#allocation10 + $0xe8] sm:$0xff]
        %v334 = vld [vmem:[#allocation10 + $0xf0] sm:$0xff]
        %v335 = vld [vmem:[#allocation10 + $0xf8] sm:$0xff]
        %v336 = vld [vmem:[#allocation10 + $0x100] sm:$0xff]
        %v337 = vld [vmem:[#allocation10 + $0x108] sm:$0xff]
        %v338 = vld [vmem:[#allocation10 + $0x110] sm:$0xff]
        %v339 = vld [vmem:[#allocation10 + $0x118] sm:$0xff]
        %v340 = vld [vmem:[%s263] sm:$0xff]
        %v341 = vld [vmem:[%s263 + $0x8] sm:$0xff]
        %v342 = vld [vmem:[%s263 + $0x10] sm:$0xff]
        %v343 = vld [vmem:[%s263 + $0x18] sm:$0xff]
        %v344 = vld [vmem:[%s263 + $0x20] sm:$0xff]
        %v345 = vld [vmem:[%s263 + $0x28] sm:$0xff]
        %v346 = vld [vmem:[%s263 + $0x30] sm:$0xff]
        %v347 = vld [vmem:[%s263 + $0x38] sm:$0xff]
        %v348 = vld [vmem:[%s263 + $0x40] sm:$0xff]
        %v349 = vld [vmem:[%s263 + $0x48] sm:$0xff]
        %v350 = vld [vmem:[%s263 + $0x50] sm:$0xff]
        %v351 = vld [vmem:[%s263 + $0x58] sm:$0xff]
        %v352 = vld [vmem:[%s263 + $0x60] sm:$0xff]
        %v353 = vld [vmem:[%s263 + $0x68] sm:$0xff]
        %v354 = vld [vmem:[%s263 + $0x70] sm:$0xff]
        %v355 = vld [vmem:[%s263 + $0x78] sm:$0xff]
        %v356 = vld [vmem:[%s263 + $0x80] sm:$0xff]
        %v357 = vld [vmem:[%s263 + $0x88] sm:$0xff]
        %v358 = vld [vmem:[%s263 + $0x90] sm:$0xff]
        %v359 = vld [vmem:[%s263 + $0x98] sm:$0xff]
        %v360 = vld [vmem:[%s263 + $0xa0] sm:$0xff]
        %v361 = vld [vmem:[%s263 + $0xa8] sm:$0xff]
        %v362 = vld [vmem:[%s263 + $0xb0] sm:$0xff]
        %v363 = vld [vmem:[%s263 + $0xb8] sm:$0xff]
        %v364 = vld [vmem:[%s263 + $0xc0] sm:$0xff]
        %v365 = vld [vmem:[%s263 + $0xc8] sm:$0xff]
        %v366 = vld [vmem:[%s263 + $0xd0] sm:$0xff]
        %v367 = vld [vmem:[%s263 + $0xd8] sm:$0xff]
        %v368 = vld [vmem:[%s263 + $0xe0] sm:$0xff]
        %v369 = vld [vmem:[%s263 + $0xe8] sm:$0xff]
        %v370 = vld [vmem:[%s263 + $0xf0] sm:$0xff]
        %v371 = vld [vmem:[%s263 + $0xf8] sm:$0xff]
        %v372 = vld [vmem:[%s263 + $0x100] sm:$0xff]
        %v373 = vld [vmem:[%s263 + $0x108] sm:$0xff]
        %v374 = vld [vmem:[%s263 + $0x110] sm:$0xff]
        %v375 = vld [vmem:[%s263 + $0x118] sm:$0xff]
        %v376 = vstv %s299
        %v377 = vadd.f32 %v340, %v376
        %v378 = vadd.f32 %v341, %v376
        %v379 = vadd.f32 %v342, %v376
        %v380 = vadd.f32 %v343, %v376
        %v381 = vadd.f32 %v344, %v376
        %v382 = vadd.f32 %v345, %v376
        %v383 = vadd.f32 %v346, %v376
        %v384 = vadd.f32 %v347, %v376
        %v385 = vadd.f32 %v348, %v376
        %v386 = vadd.f32 %v349, %v376
        %v387 = vadd.f32 %v350, %v376
        %v388 = vadd.f32 %v351, %v376
        %v389 = vadd.f32 %v352, %v376
        %v390 = vadd.f32 %v353, %v376
        %v391 = vadd.f32 %v354, %v376
        %v392 = vadd.f32 %v355, %v376
        %v393 = vadd.f32 %v356, %v376
        %v394 = vadd.f32 %v357, %v376
        %v395 = vadd.f32 %v358, %v376
        %v396 = vadd.f32 %v359, %v376
        %v397 = vadd.f32 %v360, %v376
        %v398 = vadd.f32 %v361, %v376
        %v399 = vadd.f32 %v362, %v376
        %v400 = vadd.f32 %v363, %v376
        %v401 = vadd.f32 %v364, %v376
        %v402 = vadd.f32 %v365, %v376
        %v403 = vadd.f32 %v366, %v376
        %v404 = vadd.f32 %v367, %v376
        %v405 = vadd.f32 %v368, %v376
        %v406 = vadd.f32 %v369, %v376
        %v407 = vadd.f32 %v370, %v376
        %v408 = vadd.f32 %v371, %v376
        %v409 = vadd.f32 %v372, %v376
        %v410 = vadd.f32 %v373, %v376
        %v411 = vadd.f32 %v374, %v376
        %v412 = vadd.f32 %v375, %v376
        %v413 = vmax.f32 %v377, 0.0
        %v414 = vmax.f32 %v378, 0.0
        %v415 = vmax.f32 %v379, 0.0
        %v416 = vmax.f32 %v380, 0.0
        %v417 = vmax.f32 %v381, 0.0
        %v418 = vmax.f32 %v382, 0.0
        %v419 = vmax.f32 %v383, 0.0
        %v420 = vmax.f32 %v384, 0.0
        %v421 = vmax.f32 %v385, 0.0
        %v422 = vmax.f32 %v386, 0.0
        %v423 = vmax.f32 %v387, 0.0
        %v424 = vmax.f32 %v388, 0.0
        %v425 = vmax.f32 %v389, 0.0
        %v426 = vmax.f32 %v390, 0.0
        %v427 = vmax.f32 %v391, 0.0
        %v428 = vmax.f32 %v392, 0.0
        %v429 = vmax.f32 %v393, 0.0
        %v430 = vmax.f32 %v394, 0.0
        %v431 = vmax.f32 %v395, 0.0
        %v432 = vmax.f32 %v396, 0.0
        %v433 = vmax.f32 %v397, 0.0
        %v434 = vmax.f32 %v398, 0.0
        %v435 = vmax.f32 %v399, 0.0
        %v436 = vmax.f32 %v400, 0.0
        %v437 = vmax.f32 %v401, 0.0
        %v438 = vmax.f32 %v402, 0.0
        %v439 = vmax.f32 %v403, 0.0
        %v440 = vmax.f32 %v404, 0.0
        %v441 = vmax.f32 %v405, 0.0
        %v442 = vmax.f32 %v406, 0.0
        %v443 = vmax.f32 %v407, 0.0
        %v444 = vmax.f32 %v408, 0.0
        %v445 = vmax.f32 %v409, 0.0
        %v446 = vmax.f32 %v410, 0.0
        %v447 = vmax.f32 %v411, 0.0
        %v448 = vmax.f32 %v412, 0.0
        %450 = vset.pattern.permute.xlu0 0
        %451 = vperm.xlu0 %450, %v304
        %v452 = vpop.permute.xlu0 %451
        %455 = vset.pattern.permute.xlu0 0
        %456 = vperm.xlu0 %455, %v305
        %v457 = vpop.permute.xlu0 %456
        %460 = vset.pattern.permute.xlu0 0
        %461 = vperm.xlu0 %460, %v306
        %v462 = vpop.permute.xlu0 %461
        %465 = vset.pattern.permute.xlu0 0
        %466 = vperm.xlu0 %465, %v307
        %v467 = vpop.permute.xlu0 %466
        %470 = vset.pattern.permute.xlu0 0
        %471 = vperm.xlu0 %470, %v308
        %v472 = vpop.permute.xlu0 %471
        %475 = vset.pattern.permute.xlu0 0
        %476 = vperm.xlu0 %475, %v309
        %v477 = vpop.permute.xlu0 %476
        %480 = vset.pattern.permute.xlu0 0
        %481 = vperm.xlu0 %480, %v310
        %v482 = vpop.permute.xlu0 %481
        %485 = vset.pattern.permute.xlu0 0
        %486 = vperm.xlu0 %485, %v311
        %v487 = vpop.permute.xlu0 %486
        %490 = vset.pattern.permute.xlu0 0
        %491 = vperm.xlu0 %490, %v312
        %v492 = vpop.permute.xlu0 %491
        %495 = vset.pattern.permute.xlu0 0
        %496 = vperm.xlu0 %495, %v313
        %v497 = vpop.permute.xlu0 %496
        %500 = vset.pattern.permute.xlu0 0
        %501 = vperm.xlu0 %500, %v314
        %v502 = vpop.permute.xlu0 %501
        %505 = vset.pattern.permute.xlu0 0
        %506 = vperm.xlu0 %505, %v315
        %v507 = vpop.permute.xlu0 %506
        %510 = vset.pattern.permute.xlu0 0
        %511 = vperm.xlu0 %510, %v316
        %v512 = vpop.permute.xlu0 %511
        %515 = vset.pattern.permute.xlu0 0
        %516 = vperm.xlu0 %515, %v317
        %v517 = vpop.permute.xlu0 %516
        %520 = vset.pattern.permute.xlu0 0
        %521 = vperm.xlu0 %520, %v318
        %v522 = vpop.permute.xlu0 %521
        %525 = vset.pattern.permute.xlu0 0
        %526 = vperm.xlu0 %525, %v319
        %v527 = vpop.permute.xlu0 %526
        %530 = vset.pattern.permute.xlu0 0
        %531 = vperm.xlu0 %530, %v320
        %v532 = vpop.permute.xlu0 %531
        %535 = vset.pattern.permute.xlu0 0
        %536 = vperm.xlu0 %535, %v321
        %v537 = vpop.permute.xlu0 %536
        %540 = vset.pattern.permute.xlu0 0
        %541 = vperm.xlu0 %540, %v322
        %v542 = vpop.permute.xlu0 %541
        %545 = vset.pattern.permute.xlu0 0
        %546 = vperm.xlu0 %545, %v323
        %v547 = vpop.permute.xlu0 %546
        %550 = vset.pattern.permute.xlu0 0
        %551 = vperm.xlu0 %550, %v324
        %v552 = vpop.permute.xlu0 %551
        %555 = vset.pattern.permute.xlu0 0
        %556 = vperm.xlu0 %555, %v325
        %v557 = vpop.permute.xlu0 %556
        %560 = vset.pattern.permute.xlu0 0
        %561 = vperm.xlu0 %560, %v326
        %v562 = vpop.permute.xlu0 %561
        %565 = vset.pattern.permute.xlu0 0
        %566 = vperm.xlu0 %565, %v327
        %v567 = vpop.permute.xlu0 %566
        %570 = vset.pattern.permute.xlu0 0
        %571 = vperm.xlu0 %570, %v328
        %v572 = vpop.permute.xlu0 %571
        %575 = vset.pattern.permute.xlu0 0
        %576 = vperm.xlu0 %575, %v329
        %v577 = vpop.permute.xlu0 %576
        %580 = vset.pattern.permute.xlu0 0
        %581 = vperm.xlu0 %580, %v330
        %v582 = vpop.permute.xlu0 %581
        %585 = vset.pattern.permute.xlu0 0
        %586 = vperm.xlu0 %585, %v331
        %v587 = vpop.permute.xlu0 %586
        %590 = vset.pattern.permute.xlu0 0
        %591 = vperm.xlu0 %590, %v332
        %v592 = vpop.permute.xlu0 %591
        %595 = vset.pattern.permute.xlu0 0
        %596 = vperm.xlu0 %595, %v333
        %v597 = vpop.permute.xlu0 %596
        %600 = vset.pattern.permute.xlu0 0
        %601 = vperm.xlu0 %600, %v334
        %v602 = vpop.permute.xlu0 %601
        %605 = vset.pattern.permute.xlu0 0
        %606 = vperm.xlu0 %605, %v335
        %v607 = vpop.permute.xlu0 %606
        %610 = vset.pattern.permute.xlu0 0
        %611 = vperm.xlu0 %610, %v336
        %v612 = vpop.permute.xlu0 %611
        %615 = vset.pattern.permute.xlu0 0
        %616 = vperm.xlu0 %615, %v337
        %v617 = vpop.permute.xlu0 %616
        %620 = vset.pattern.permute.xlu0 0
        %621 = vperm.xlu0 %620, %v338
        %v622 = vpop.permute.xlu0 %621
        %625 = vset.pattern.permute.xlu0 0
        %626 = vperm.xlu0 %625, %v339
        %v627 = vpop.permute.xlu0 %626
        %v629 = vmul.f32 %v452, %v413
        %v630 = vmul.f32 %v457, %v414
        %v631 = vmul.f32 %v462, %v415
        %v632 = vmul.f32 %v467, %v416
        %v633 = vmul.f32 %v472, %v417
        %v634 = vmul.f32 %v477, %v418
        %v635 = vmul.f32 %v482, %v419
        %v636 = vmul.f32 %v487, %v420
        %v637 = vmul.f32 %v492, %v421
        %v638 = vmul.f32 %v497, %v422
        %v639 = vmul.f32 %v502, %v423
        %v640 = vmul.f32 %v507, %v424
        %v641 = vmul.f32 %v512, %v425
        %v642 = vmul.f32 %v517, %v426
        %v643 = vmul.f32 %v522, %v427
        %v644 = vmul.f32 %v527, %v428
        %v645 = vmul.f32 %v532, %v429
        %v646 = vmul.f32 %v537, %v430
        %v647 = vmul.f32 %v542, %v431
        %v648 = vmul.f32 %v547, %v432
        %v649 = vmul.f32 %v552, %v433
        %v650 = vmul.f32 %v557, %v434
        %v651 = vmul.f32 %v562, %v435
        %v652 = vmul.f32 %v567, %v436
        %v653 = vmul.f32 %v572, %v437
        %v654 = vmul.f32 %v577, %v438
        %v655 = vmul.f32 %v582, %v439
        %v656 = vmul.f32 %v587, %v440
        %v657 = vmul.f32 %v592, %v441
        %v658 = vmul.f32 %v597, %v442
        %v659 = vmul.f32 %v602, %v443
        %v660 = vmul.f32 %v607, %v444
        %v661 = vmul.f32 %v612, %v445
        %v662 = vmul.f32 %v617, %v446
        %v663 = vmul.f32 %v622, %v447
        %v664 = vmul.f32 %v627, %v448
        %vm665 = vcmask 31744
        %666 = vst.msk [vmem:[#allocation2] sm:$0xff] %vm665, 0.0
        %667 = vst.msk [vmem:[#allocation2 + $0x8] sm:$0xff] %vm665, 0.0
        %vm668 = vcmask 26624
        %669 = vst.msk [vmem:[#allocation2 + $0x10] sm:$0x7] %vm668, 0.0
        %670 = vst.msk [vmem:[#allocation2 + $0x133] sm:$0xff] %vm665, 0.0
        %671 = vst.msk [vmem:[#allocation2 + $0x13b] sm:$0xff] %vm665, 0.0
        %vm672 = vcmask 28672
        %673 = vst.msk [vmem:[#allocation2 + $0x143] sm:$0x1f] %vm672, 0.0
        %674 = vst.msk [vmem:[#allocation2 + $0x13] sm:$0xff] %vm665, %v629
        %675 = vst.msk [vmem:[#allocation2 + $0x1b] sm:$0xff] %vm665, %v630
        %676 = vst.msk [vmem:[#allocation2 + $0x23] sm:$0xff] %vm665, %v631
        %677 = vst.msk [vmem:[#allocation2 + $0x2b] sm:$0xff] %vm665, %v632
        %678 = vst.msk [vmem:[#allocation2 + $0x33] sm:$0xff] %vm665, %v633
        %679 = vst.msk [vmem:[#allocation2 + $0x3b] sm:$0xff] %vm665, %v634
        %680 = vst.msk [vmem:[#allocation2 + $0x43] sm:$0xff] %vm665, %v635
        %681 = vst.msk [vmem:[#allocation2 + $0x4b] sm:$0xff] %vm665, %v636
        %682 = vst.msk [vmem:[#allocation2 + $0x53] sm:$0xff] %vm665, %v637
        %683 = vst.msk [vmem:[#allocation2 + $0x5b] sm:$0xff] %vm665, %v638
        %684 = vst.msk [vmem:[#allocation2 + $0x63] sm:$0xff] %vm665, %v639
        %685 = vst.msk [vmem:[#allocation2 + $0x6b] sm:$0xff] %vm665, %v640
        %686 = vst.msk [vmem:[#allocation2 + $0x73] sm:$0xff] %vm665, %v641
        %687 = vst.msk [vmem:[#allocation2 + $0x7b] sm:$0xff] %vm665, %v642
        %688 = vst.msk [vmem:[#allocation2 + $0x83] sm:$0xff] %vm665, %v643
        %689 = vst.msk [vmem:[#allocation2 + $0x8b] sm:$0xff] %vm665, %v644
        %690 = vst.msk [vmem:[#allocation2 + $0x93] sm:$0xff] %vm665, %v645
        %691 = vst.msk [vmem:[#allocation2 + $0x9b] sm:$0xff] %vm665, %v646
        %692 = vst.msk [vmem:[#allocation2 + $0xa3] sm:$0xff] %vm665, %v647
        %693 = vst.msk [vmem:[#allocation2 + $0xab] sm:$0xff] %vm665, %v648
        %694 = vst.msk [vmem:[#allocation2 + $0xb3] sm:$0xff] %vm665, %v649
        %695 = vst.msk [vmem:[#allocation2 + $0xbb] sm:$0xff] %vm665, %v650
        %696 = vst.msk [vmem:[#allocation2 + $0xc3] sm:$0xff] %vm665, %v651
        %697 = vst.msk [vmem:[#allocation2 + $0xcb] sm:$0xff] %vm665, %v652
        %698 = vst.msk [vmem:[#allocation2 + $0xd3] sm:$0xff] %vm665, %v653
        %699 = vst.msk [vmem:[#allocation2 + $0xdb] sm:$0xff] %vm665, %v654
        %700 = vst.msk [vmem:[#allocation2 + $0xe3] sm:$0xff] %vm665, %v655
        %701 = vst.msk [vmem:[#allocation2 + $0xeb] sm:$0xff] %vm665, %v656
        %702 = vst.msk [vmem:[#allocation2 + $0xf3] sm:$0xff] %vm665, %v657
        %703 = vst.msk [vmem:[#allocation2 + $0xfb] sm:$0xff] %vm665, %v658
        %704 = vst.msk [vmem:[#allocation2 + $0x103] sm:$0xff] %vm665, %v659
        %705 = vst.msk [vmem:[#allocation2 + $0x10b] sm:$0xff] %vm665, %v660
        %706 = vst.msk [vmem:[#allocation2 + $0x113] sm:$0xff] %vm665, %v661
        %707 = vst.msk [vmem:[#allocation2 + $0x11b] sm:$0xff] %vm665, %v662
        %708 = vst.msk [vmem:[#allocation2 + $0x123] sm:$0xff] %vm665, %v663
        %709 = vst.msk [vmem:[#allocation2 + $0x12b] sm:$0xff] %vm665, %v664
        %v710 = vld [vmem:[#allocation2] sm:$0xff]
        %v711 = vld [vmem:[#allocation2 + $0x8] sm:$0xff]
        %v712 = vld [vmem:[#allocation2 + $0x10] sm:$0xff]
        %v713 = vld [vmem:[#allocation2 + $0x18] sm:$0xff]
        %v714 = vld [vmem:[#allocation2 + $0x20] sm:$0xff]
        %v715 = vld [vmem:[#allocation2 + $0x28] sm:$0xff]
        %v716 = vld [vmem:[#allocation2 + $0x30] sm:$0xff]
        %v717 = vld [vmem:[#allocation2 + $0x38] sm:$0xff]
        %v718 = vld [vmem:[#allocation2 + $0x40] sm:$0xff]
        %v719 = vld [vmem:[#allocation2 + $0x48] sm:$0xff]
        %v720 = vld [vmem:[#allocation2 + $0x50] sm:$0xff]
        %v721 = vld [vmem:[#allocation2 + $0x58] sm:$0xff]
        %v722 = vld [vmem:[#allocation2 + $0x60] sm:$0xff]
        %v723 = vld [vmem:[#allocation2 + $0x68] sm:$0xff]
        %v724 = vld [vmem:[#allocation2 + $0x70] sm:$0xff]
        %v725 = vld [vmem:[#allocation2 + $0x78] sm:$0xff]
        %v726 = vld [vmem:[#allocation2 + $0x80] sm:$0xff]
        %v727 = vld [vmem:[#allocation2 + $0x88] sm:$0xff]
        %v728 = vld [vmem:[#allocation2 + $0x90] sm:$0xff]
        %v729 = vld [vmem:[#allocation2 + $0x98] sm:$0xff]
        %v730 = vld [vmem:[#allocation2 + $0xa0] sm:$0xff]
        %v731 = vld [vmem:[#allocation2 + $0xa8] sm:$0xff]
        %v732 = vld [vmem:[#allocation2 + $0xb0] sm:$0xff]
        %v733 = vld [vmem:[#allocation2 + $0xb8] sm:$0xff]
        %v734 = vld [vmem:[#allocation2 + $0xc0] sm:$0xff]
        %v735 = vld [vmem:[#allocation2 + $0xc8] sm:$0xff]
        %v736 = vld [vmem:[#allocation2 + $0xd0] sm:$0xff]
        %v737 = vld [vmem:[#allocation2 + $0xd8] sm:$0xff]
        %v738 = vld [vmem:[#allocation2 + $0xe0] sm:$0xff]
        %v739 = vld [vmem:[#allocation2 + $0xe8] sm:$0xff]
        %v740 = vld [vmem:[#allocation2 + $0xf0] sm:$0xff]
        %v741 = vld [vmem:[#allocation2 + $0xf8] sm:$0xff]
        %v742 = vld [vmem:[#allocation2 + $0x100] sm:$0xff]
        %v743 = vld [vmem:[#allocation2 + $0x108] sm:$0xff]
        %v744 = vld [vmem:[#allocation2 + $0x110] sm:$0xff]
        %v745 = vld [vmem:[#allocation2 + $0x118] sm:$0xff]
        %746 = vst.msk [vmem:[#allocation4] sm:$0xff] %vm665, %v710
        %747 = vst.msk [vmem:[#allocation4 + $0x8] sm:$0xff] %vm665, %v711
        %748 = vst.msk [vmem:[#allocation4 + $0x10] sm:$0xff] %vm665, %v712
        %749 = vst.msk [vmem:[#allocation4 + $0x18] sm:$0xff] %vm665, %v713
        %750 = vst.msk [vmem:[#allocation4 + $0x20] sm:$0xff] %vm665, %v714
        %751 = vst.msk [vmem:[#allocation4 + $0x28] sm:$0xff] %vm665, %v715
        %752 = vst.msk [vmem:[#allocation4 + $0x30] sm:$0xff] %vm665, %v716
        %753 = vst.msk [vmem:[#allocation4 + $0x38] sm:$0xff] %vm665, %v717
        %754 = vst.msk [vmem:[#allocation4 + $0x40] sm:$0xff] %vm665, %v718
        %755 = vst.msk [vmem:[#allocation4 + $0x48] sm:$0xff] %vm665, %v719
        %756 = vst.msk [vmem:[#allocation4 + $0x50] sm:$0xff] %vm665, %v720
        %757 = vst.msk [vmem:[#allocation4 + $0x58] sm:$0xff] %vm665, %v721
        %758 = vst.msk [vmem:[#allocation4 + $0x60] sm:$0xff] %vm665, %v722
        %759 = vst.msk [vmem:[#allocation4 + $0x68] sm:$0xff] %vm665, %v723
        %760 = vst.msk [vmem:[#allocation4 + $0x70] sm:$0xff] %vm665, %v724
        %761 = vst.msk [vmem:[#allocation4 + $0x78] sm:$0xff] %vm665, %v725
        %762 = vst.msk [vmem:[#allocation4 + $0x80] sm:$0xff] %vm665, %v726
        %763 = vst.msk [vmem:[#allocation4 + $0x88] sm:$0xff] %vm665, %v727
        %764 = vst.msk [vmem:[#allocation4 + $0x90] sm:$0xff] %vm665, %v728
        %765 = vst.msk [vmem:[#allocation4 + $0x98] sm:$0xff] %vm665, %v729
        %766 = vst.msk [vmem:[#allocation4 + $0xa0] sm:$0xff] %vm665, %v730
        %767 = vst.msk [vmem:[#allocation4 + $0xa8] sm:$0xff] %vm665, %v731
        %768 = vst.msk [vmem:[#allocation4 + $0xb0] sm:$0xff] %vm665, %v732
        %769 = vst.msk [vmem:[#allocation4 + $0xb8] sm:$0xff] %vm665, %v733
        %770 = vst.msk [vmem:[#allocation4 + $0xc0] sm:$0xff] %vm665, %v734
        %771 = vst.msk [vmem:[#allocation4 + $0xc8] sm:$0xff] %vm665, %v735
        %772 = vst.msk [vmem:[#allocation4 + $0xd0] sm:$0xff] %vm665, %v736
        %773 = vst.msk [vmem:[#allocation4 + $0xd8] sm:$0xff] %vm665, %v737
        %774 = vst.msk [vmem:[#allocation4 + $0xe0] sm:$0xff] %vm665, %v738
        %775 = vst.msk [vmem:[#allocation4 + $0xe8] sm:$0xff] %vm665, %v739
        %776 = vst.msk [vmem:[#allocation4 + $0xf0] sm:$0xff] %vm665, %v740
        %777 = vst.msk [vmem:[#allocation4 + $0xf8] sm:$0xff] %vm665, %v741
        %778 = vst.msk [vmem:[#allocation4 + $0x100] sm:$0xff] %vm665, %v742
        %779 = vst.msk [vmem:[#allocation4 + $0x108] sm:$0xff] %vm665, %v743
        %780 = vst.msk [vmem:[#allocation4 + $0x110] sm:$0xff] %vm665, %v744
        %781 = vst.msk [vmem:[#allocation4 + $0x118] sm:$0xff] %vm665, %v745
        %v782 = vld [vmem:[#allocation2 + $0x1] sm:$0xff]
        %v783 = vld [vmem:[#allocation2 + $0x9] sm:$0xff]
        %v784 = vld [vmem:[#allocation2 + $0x11] sm:$0xff]
        %v785 = vld [vmem:[#allocation2 + $0x19] sm:$0xff]
        %v786 = vld [vmem:[#allocation2 + $0x21] sm:$0xff]
        %v787 = vld [vmem:[#allocation2 + $0x29] sm:$0xff]
        %v788 = vld [vmem:[#allocation2 + $0x31] sm:$0xff]
        %v789 = vld [vmem:[#allocation2 + $0x39] sm:$0xff]
        %v790 = vld [vmem:[#allocation2 + $0x41] sm:$0xff]
        %v791 = vld [vmem:[#allocation2 + $0x49] sm:$0xff]
        %v792 = vld [vmem:[#allocation2 + $0x51] sm:$0xff]
        %v793 = vld [vmem:[#allocation2 + $0x59] sm:$0xff]
        %v794 = vld [vmem:[#allocation2 + $0x61] sm:$0xff]
        %v795 = vld [vmem:[#allocation2 + $0x69] sm:$0xff]
        %v796 = vld [vmem:[#allocation2 + $0x71] sm:$0xff]
        %v797 = vld [vmem:[#allocation2 + $0x79] sm:$0xff]
        %v798 = vld [vmem:[#allocation2 + $0x81] sm:$0xff]
        %v799 = vld [vmem:[#allocation2 + $0x89] sm:$0xff]
        %v800 = vld [vmem:[#allocation2 + $0x91] sm:$0xff]
        %v801 = vld [vmem:[#allocation2 + $0x99] sm:$0xff]
        %v802 = vld [vmem:[#allocation2 + $0xa1] sm:$0xff]
        %v803 = vld [vmem:[#allocation2 + $0xa9] sm:$0xff]
        %v804 = vld [vmem:[#allocation2 + $0xb1] sm:$0xff]
        %v805 = vld [vmem:[#allocation2 + $0xb9] sm:$0xff]
        %v806 = vld [vmem:[#allocation2 + $0xc1] sm:$0xff]
        %v807 = vld [vmem:[#allocation2 + $0xc9] sm:$0xff]
        %v808 = vld [vmem:[#allocation2 + $0xd1] sm:$0xff]
        %v809 = vld [vmem:[#allocation2 + $0xd9] sm:$0xff]
        %v810 = vld [vmem:[#allocation2 + $0xe1] sm:$0xff]
        %v811 = vld [vmem:[#allocation2 + $0xe9] sm:$0xff]
        %v812 = vld [vmem:[#allocation2 + $0xf1] sm:$0xff]
        %v813 = vld [vmem:[#allocation2 + $0xf9] sm:$0xff]
        %v814 = vld [vmem:[#allocation2 + $0x101] sm:$0xff]
        %v815 = vld [vmem:[#allocation2 + $0x109] sm:$0xff]
        %v816 = vld [vmem:[#allocation2 + $0x111] sm:$0xff]
        %v817 = vld [vmem:[#allocation2 + $0x119] sm:$0xff]
        %854 = vrot.lane.b32.xlu0 %v782, 4
        %v855 = vpop.permute.xlu0 %854
        %856 = vrot.lane.b32.xlu0 %v783, 4
        %v857 = vpop.permute.xlu0 %856
        %858 = vrot.lane.b32.xlu0 %v784, 4
        %v859 = vpop.permute.xlu0 %858
        %860 = vrot.lane.b32.xlu0 %v785, 4
        %v861 = vpop.permute.xlu0 %860
        %862 = vrot.lane.b32.xlu0 %v786, 4
        %v863 = vpop.permute.xlu0 %862
        %864 = vrot.lane.b32.xlu0 %v787, 4
        %v865 = vpop.permute.xlu0 %864
        %866 = vrot.lane.b32.xlu0 %v788, 4
        %v867 = vpop.permute.xlu0 %866
        %868 = vrot.lane.b32.xlu0 %v789, 4
        %v869 = vpop.permute.xlu0 %868
        %870 = vrot.lane.b32.xlu0 %v790, 4
        %v871 = vpop.permute.xlu0 %870
        %872 = vrot.lane.b32.xlu0 %v791, 4
        %v873 = vpop.permute.xlu0 %872
        %874 = vrot.lane.b32.xlu0 %v792, 4
        %v875 = vpop.permute.xlu0 %874
        %876 = vrot.lane.b32.xlu0 %v793, 4
        %v877 = vpop.permute.xlu0 %876
        %878 = vrot.lane.b32.xlu0 %v794, 4
        %v879 = vpop.permute.xlu0 %878
        %880 = vrot.lane.b32.xlu0 %v795, 4
        %v881 = vpop.permute.xlu0 %880
        %882 = vrot.lane.b32.xlu0 %v796, 4
        %v883 = vpop.permute.xlu0 %882
        %884 = vrot.lane.b32.xlu0 %v797, 4
        %v885 = vpop.permute.xlu0 %884
        %886 = vrot.lane.b32.xlu0 %v798, 4
        %v887 = vpop.permute.xlu0 %886
        %888 = vrot.lane.b32.xlu0 %v799, 4
        %v889 = vpop.permute.xlu0 %888
        %890 = vrot.lane.b32.xlu0 %v800, 4
        %v891 = vpop.permute.xlu0 %890
        %892 = vrot.lane.b32.xlu0 %v801, 4
        %v893 = vpop.permute.xlu0 %892
        %894 = vrot.lane.b32.xlu0 %v802, 4
        %v895 = vpop.permute.xlu0 %894
        %896 = vrot.lane.b32.xlu0 %v803, 4
        %v897 = vpop.permute.xlu0 %896
        %898 = vrot.lane.b32.xlu0 %v804, 4
        %v899 = vpop.permute.xlu0 %898
        %900 = vrot.lane.b32.xlu0 %v805, 4
        %v901 = vpop.permute.xlu0 %900
        %902 = vrot.lane.b32.xlu0 %v806, 4
        %v903 = vpop.permute.xlu0 %902
        %904 = vrot.lane.b32.xlu0 %v807, 4
        %v905 = vpop.permute.xlu0 %904
        %906 = vrot.lane.b32.xlu0 %v808, 4
        %v907 = vpop.permute.xlu0 %906
        %908 = vrot.lane.b32.xlu0 %v809, 4
        %v909 = vpop.permute.xlu0 %908
        %910 = vrot.lane.b32.xlu0 %v810, 4
        %v911 = vpop.permute.xlu0 %910
        %912 = vrot.lane.b32.xlu0 %v811, 4
        %v913 = vpop.permute.xlu0 %912
        %914 = vrot.lane.b32.xlu0 %v812, 4
        %v915 = vpop.permute.xlu0 %914
        %916 = vrot.lane.b32.xlu0 %v813, 4
        %v917 = vpop.permute.xlu0 %916
        %918 = vrot.lane.b32.xlu0 %v814, 4
        %v919 = vpop.permute.xlu0 %918
        %920 = vrot.lane.b32.xlu0 %v815, 4
        %v921 = vpop.permute.xlu0 %920
        %922 = vrot.lane.b32.xlu0 %v816, 4
        %v923 = vpop.permute.xlu0 %922
        %924 = vrot.lane.b32.xlu0 %v817, 4
        %v925 = vpop.permute.xlu0 %924
        %vm962 = vcmask 64544
        %963 = vst.msk [vmem:[#allocation4] sm:$0xff] %vm962, %v855
        %964 = vst.msk [vmem:[#allocation4 + $0x8] sm:$0xff] %vm962, %v857
        %965 = vst.msk [vmem:[#allocation4 + $0x10] sm:$0xff] %vm962, %v859
        %966 = vst.msk [vmem:[#allocation4 + $0x18] sm:$0xff] %vm962, %v861
        %967 = vst.msk [vmem:[#allocation4 + $0x20] sm:$0xff] %vm962, %v863
        %968 = vst.msk [vmem:[#allocation4 + $0x28] sm:$0xff] %vm962, %v865
        %969 = vst.msk [vmem:[#allocation4 + $0x30] sm:$0xff] %vm962, %v867
        %970 = vst.msk [vmem:[#allocation4 + $0x38] sm:$0xff] %vm962, %v869
        %971 = vst.msk [vmem:[#allocation4 + $0x40] sm:$0xff] %vm962, %v871
        %972 = vst.msk [vmem:[#allocation4 + $0x48] sm:$0xff] %vm962, %v873
        %973 = vst.msk [vmem:[#allocation4 + $0x50] sm:$0xff] %vm962, %v875
        %974 = vst.msk [vmem:[#allocation4 + $0x58] sm:$0xff] %vm962, %v877
        %975 = vst.msk [vmem:[#allocation4 + $0x60] sm:$0xff] %vm962, %v879
        %976 = vst.msk [vmem:[#allocation4 + $0x68] sm:$0xff] %vm962, %v881
        %977 = vst.msk [vmem:[#allocation4 + $0x70] sm:$0xff] %vm962, %v883
        %978 = vst.msk [vmem:[#allocation4 + $0x78] sm:$0xff] %vm962, %v885
        %979 = vst.msk [vmem:[#allocation4 + $0x80] sm:$0xff] %vm962, %v887
        %980 = vst.msk [vmem:[#allocation4 + $0x88] sm:$0xff] %vm962, %v889
        %981 = vst.msk [vmem:[#allocation4 + $0x90] sm:$0xff] %vm962, %v891
        %982 = vst.msk [vmem:[#allocation4 + $0x98] sm:$0xff] %vm962, %v893
        %983 = vst.msk [vmem:[#allocation4 + $0xa0] sm:$0xff] %vm962, %v895
        %984 = vst.msk [vmem:[#allocation4 + $0xa8] sm:$0xff] %vm962, %v897
        %985 = vst.msk [vmem:[#allocation4 + $0xb0] sm:$0xff] %vm962, %v899
        %986 = vst.msk [vmem:[#allocation4 + $0xb8] sm:$0xff] %vm962, %v901
        %987 = vst.msk [vmem:[#allocation4 + $0xc0] sm:$0xff] %vm962, %v903
        %988 = vst.msk [vmem:[#allocation4 + $0xc8] sm:$0xff] %vm962, %v905
        %989 = vst.msk [vmem:[#allocation4 + $0xd0] sm:$0xff] %vm962, %v907
        %990 = vst.msk [vmem:[#allocation4 + $0xd8] sm:$0xff] %vm962, %v909
        %991 = vst.msk [vmem:[#allocation4 + $0xe0] sm:$0xff] %vm962, %v911
        %992 = vst.msk [vmem:[#allocation4 + $0xe8] sm:$0xff] %vm962, %v913
        %993 = vst.msk [vmem:[#allocation4 + $0xf0] sm:$0xff] %vm962, %v915
        %994 = vst.msk [vmem:[#allocation4 + $0xf8] sm:$0xff] %vm962, %v917
        %995 = vst.msk [vmem:[#allocation4 + $0x100] sm:$0xff] %vm962, %v919
        %996 = vst.msk [vmem:[#allocation4 + $0x108] sm:$0xff] %vm962, %v921
        %997 = vst.msk [vmem:[#allocation4 + $0x110] sm:$0xff] %vm962, %v923
        %998 = vst.msk [vmem:[#allocation4 + $0x118] sm:$0xff] %vm962, %v925
        %v999 = vld [vmem:[#allocation2 + $0x2] sm:$0xff]
        %v1000 = vld [vmem:[#allocation2 + $0xa] sm:$0xff]
        %v1001 = vld [vmem:[#allocation2 + $0x12] sm:$0xff]
        %v1002 = vld [vmem:[#allocation2 + $0x1a] sm:$0xff]
        %v1003 = vld [vmem:[#allocation2 + $0x22] sm:$0xff]
        %v1004 = vld [vmem:[#allocation2 + $0x2a] sm:$0xff]
        %v1005 = vld [vmem:[#allocation2 + $0x32] sm:$0xff]
        %v1006 = vld [vmem:[#allocation2 + $0x3a] sm:$0xff]
        %v1007 = vld [vmem:[#allocation2 + $0x42] sm:$0xff]
        %v1008 = vld [vmem:[#allocation2 + $0x4a] sm:$0xff]
        %v1009 = vld [vmem:[#allocation2 + $0x52] sm:$0xff]
        %v1010 = vld [vmem:[#allocation2 + $0x5a] sm:$0xff]
        %v1011 = vld [vmem:[#allocation2 + $0x62] sm:$0xff]
        %v1012 = vld [vmem:[#allocation2 + $0x6a] sm:$0xff]
        %v1013 = vld [vmem:[#allocation2 + $0x72] sm:$0xff]
        %v1014 = vld [vmem:[#allocation2 + $0x7a] sm:$0xff]
        %v1015 = vld [vmem:[#allocation2 + $0x82] sm:$0xff]
        %v1016 = vld [vmem:[#allocation2 + $0x8a] sm:$0xff]
        %v1017 = vld [vmem:[#allocation2 + $0x92] sm:$0xff]
        %v1018 = vld [vmem:[#allocation2 + $0x9a] sm:$0xff]
        %v1019 = vld [vmem:[#allocation2 + $0xa2] sm:$0xff]
        %v1020 = vld [vmem:[#allocation2 + $0xaa] sm:$0xff]
        %v1021 = vld [vmem:[#allocation2 + $0xb2] sm:$0xff]
        %v1022 = vld [vmem:[#allocation2 + $0xba] sm:$0xff]
        %v1023 = vld [vmem:[#allocation2 + $0xc2] sm:$0xff]
        %v1024 = vld [vmem:[#allocation2 + $0xca] sm:$0xff]
        %v1025 = vld [vmem:[#allocation2 + $0xd2] sm:$0xff]
        %v1026 = vld [vmem:[#allocation2 + $0xda] sm:$0xff]
        %v1027 = vld [vmem:[#allocation2 + $0xe2] sm:$0xff]
        %v1028 = vld [vmem:[#allocation2 + $0xea] sm:$0xff]
        %v1029 = vld [vmem:[#allocation2 + $0xf2] sm:$0xff]
        %v1030 = vld [vmem:[#allocation2 + $0xfa] sm:$0xff]
        %v1031 = vld [vmem:[#allocation2 + $0x102] sm:$0xff]
        %v1032 = vld [vmem:[#allocation2 + $0x10a] sm:$0xff]
        %v1033 = vld [vmem:[#allocation2 + $0x112] sm:$0xff]
        %v1034 = vld [vmem:[#allocation2 + $0x11a] sm:$0xff]
        %1071 = vrot.lane.b32.xlu0 %v999, 8
        %v1072 = vpop.permute.xlu0 %1071
        %1073 = vrot.lane.b32.xlu0 %v1000, 8
        %v1074 = vpop.permute.xlu0 %1073
        %1075 = vrot.lane.b32.xlu0 %v1001, 8
        %v1076 = vpop.permute.xlu0 %1075
        %1077 = vrot.lane.b32.xlu0 %v1002, 8
        %v1078 = vpop.permute.xlu0 %1077
        %1079 = vrot.lane.b32.xlu0 %v1003, 8
        %v1080 = vpop.permute.xlu0 %1079
        %1081 = vrot.lane.b32.xlu0 %v1004, 8
        %v1082 = vpop.permute.xlu0 %1081
        %1083 = vrot.lane.b32.xlu0 %v1005, 8
        %v1084 = vpop.permute.xlu0 %1083
        %1085 = vrot.lane.b32.xlu0 %v1006, 8
        %v1086 = vpop.permute.xlu0 %1085
        %1087 = vrot.lane.b32.xlu0 %v1007, 8
        %v1088 = vpop.permute.xlu0 %1087
        %1089 = vrot.lane.b32.xlu0 %v1008, 8
        %v1090 = vpop.permute.xlu0 %1089
        %1091 = vrot.lane.b32.xlu0 %v1009, 8
        %v1092 = vpop.permute.xlu0 %1091
        %1093 = vrot.lane.b32.xlu0 %v1010, 8
        %v1094 = vpop.permute.xlu0 %1093
        %1095 = vrot.lane.b32.xlu0 %v1011, 8
        %v1096 = vpop.permute.xlu0 %1095
        %1097 = vrot.lane.b32.xlu0 %v1012, 8
        %v1098 = vpop.permute.xlu0 %1097
        %1099 = vrot.lane.b32.xlu0 %v1013, 8
        %v1100 = vpop.permute.xlu0 %1099
        %1101 = vrot.lane.b32.xlu0 %v1014, 8
        %v1102 = vpop.permute.xlu0 %1101
        %1103 = vrot.lane.b32.xlu0 %v1015, 8
        %v1104 = vpop.permute.xlu0 %1103
        %1105 = vrot.lane.b32.xlu0 %v1016, 8
        %v1106 = vpop.permute.xlu0 %1105
        %1107 = vrot.lane.b32.xlu0 %v1017, 8
        %v1108 = vpop.permute.xlu0 %1107
        %1109 = vrot.lane.b32.xlu0 %v1018, 8
        %v1110 = vpop.permute.xlu0 %1109
        %1111 = vrot.lane.b32.xlu0 %v1019, 8
        %v1112 = vpop.permute.xlu0 %1111
        %1113 = vrot.lane.b32.xlu0 %v1020, 8
        %v1114 = vpop.permute.xlu0 %1113
        %1115 = vrot.lane.b32.xlu0 %v1021, 8
        %v1116 = vpop.permute.xlu0 %1115
        %1117 = vrot.lane.b32.xlu0 %v1022, 8
        %v1118 = vpop.permute.xlu0 %1117
        %1119 = vrot.lane.b32.xlu0 %v1023, 8
        %v1120 = vpop.permute.xlu0 %1119
        %1121 = vrot.lane.b32.xlu0 %v1024, 8
        %v1122 = vpop.permute.xlu0 %1121
        %1123 = vrot.lane.b32.xlu0 %v1025, 8
        %v1124 = vpop.permute.xlu0 %1123
        %1125 = vrot.lane.b32.xlu0 %v1026, 8
        %v1126 = vpop.permute.xlu0 %1125
        %1127 = vrot.lane.b32.xlu0 %v1027, 8
        %v1128 = vpop.permute.xlu0 %1127
        %1129 = vrot.lane.b32.xlu0 %v1028, 8
        %v1130 = vpop.permute.xlu0 %1129
        %1131 = vrot.lane.b32.xlu0 %v1029, 8
        %v1132 = vpop.permute.xlu0 %1131
        %1133 = vrot.lane.b32.xlu0 %v1030, 8
        %v1134 = vpop.permute.xlu0 %1133
        %1135 = vrot.lane.b32.xlu0 %v1031, 8
        %v1136 = vpop.permute.xlu0 %1135
        %1137 = vrot.lane.b32.xlu0 %v1032, 8
        %v1138 = vpop.permute.xlu0 %1137
        %1139 = vrot.lane.b32.xlu0 %v1033, 8
        %v1140 = vpop.permute.xlu0 %1139
        %1141 = vrot.lane.b32.xlu0 %v1034, 8
        %v1142 = vpop.permute.xlu0 %1141
        %vm1179 = vcmask 97344
        %1180 = vst.msk [vmem:[#allocation4] sm:$0xff] %vm1179, %v1072
        %1181 = vst.msk [vmem:[#allocation4 + $0x8] sm:$0xff] %vm1179, %v1074
        %1182 = vst.msk [vmem:[#allocation4 + $0x10] sm:$0xff] %vm1179, %v1076
        %1183 = vst.msk [vmem:[#allocation4 + $0x18] sm:$0xff] %vm1179, %v1078
        %1184 = vst.msk [vmem:[#allocation4 + $0x20] sm:$0xff] %vm1179, %v1080
        %1185 = vst.msk [vmem:[#allocation4 + $0x28] sm:$0xff] %vm1179, %v1082
        %1186 = vst.msk [vmem:[#allocation4 + $0x30] sm:$0xff] %vm1179, %v1084
        %1187 = vst.msk [vmem:[#allocation4 + $0x38] sm:$0xff] %vm1179, %v1086
        %1188 = vst.msk [vmem:[#allocation4 + $0x40] sm:$0xff] %vm1179, %v1088
        %1189 = vst.msk [vmem:[#allocation4 + $0x48] sm:$0xff] %vm1179, %v1090
        %1190 = vst.msk [vmem:[#allocation4 + $0x50] sm:$0xff] %vm1179, %v1092
        %1191 = vst.msk [vmem:[#allocation4 + $0x58] sm:$0xff] %vm1179, %v1094
        %1192 = vst.msk [vmem:[#allocation4 + $0x60] sm:$0xff] %vm1179, %v1096
        %1193 = vst.msk [vmem:[#allocation4 + $0x68] sm:$0xff] %vm1179, %v1098
        %1194 = vst.msk [vmem:[#allocation4 + $0x70] sm:$0xff] %vm1179, %v1100
        %1195 = vst.msk [vmem:[#allocation4 + $0x78] sm:$0xff] %vm1179, %v1102
        %1196 = vst.msk [vmem:[#allocation4 + $0x80] sm:$0xff] %vm1179, %v1104
        %1197 = vst.msk [vmem:[#allocation4 + $0x88] sm:$0xff] %vm1179, %v1106
        %1198 = vst.msk [vmem:[#allocation4 + $0x90] sm:$0xff] %vm1179, %v1108
        %1199 = vst.msk [vmem:[#allocation4 + $0x98] sm:$0xff] %vm1179, %v1110
        %1200 = vst.msk [vmem:[#allocation4 + $0xa0] sm:$0xff] %vm1179, %v1112
        %1201 = vst.msk [vmem:[#allocation4 + $0xa8] sm:$0xff] %vm1179, %v1114
        %1202 = vst.msk [vmem:[#allocation4 + $0xb0] sm:$0xff] %vm1179, %v1116
        %1203 = vst.msk [vmem:[#allocation4 + $0xb8] sm:$0xff] %vm1179, %v1118
        %1204 = vst.msk [vmem:[#allocation4 + $0xc0] sm:$0xff] %vm1179, %v1120
        %1205 = vst.msk [vmem:[#allocation4 + $0xc8] sm:$0xff] %vm1179, %v1122
        %1206 = vst.msk [vmem:[#allocation4 + $0xd0] sm:$0xff] %vm1179, %v1124
        %1207 = vst.msk [vmem:[#allocation4 + $0xd8] sm:$0xff] %vm1179, %v1126
        %1208 = vst.msk [vmem:[#allocation4 + $0xe0] sm:$0xff] %vm1179, %v1128
        %1209 = vst.msk [vmem:[#allocation4 + $0xe8] sm:$0xff] %vm1179, %v1130
        %1210 = vst.msk [vmem:[#allocation4 + $0xf0] sm:$0xff] %vm1179, %v1132
        %1211 = vst.msk [vmem:[#allocation4 + $0xf8] sm:$0xff] %vm1179, %v1134
        %1212 = vst.msk [vmem:[#allocation4 + $0x100] sm:$0xff] %vm1179, %v1136
        %1213 = vst.msk [vmem:[#allocation4 + $0x108] sm:$0xff] %vm1179, %v1138
        %1214 = vst.msk [vmem:[#allocation4 + $0x110] sm:$0xff] %vm1179, %v1140
        %1215 = vst.msk [vmem:[#allocation4 + $0x118] sm:$0xff] %vm1179, %v1142
        %v1216 = vld [vmem:[#allocation2 + $0x12] sm:$0xff]
        %v1217 = vld [vmem:[#allocation2 + $0x1a] sm:$0xff]
        %v1218 = vld [vmem:[#allocation2 + $0x22] sm:$0xff]
        %v1219 = vld [vmem:[#allocation2 + $0x2a] sm:$0xff]
        %v1220 = vld [vmem:[#allocation2 + $0x32] sm:$0xff]
        %v1221 = vld [vmem:[#allocation2 + $0x3a] sm:$0xff]
        %v1222 = vld [vmem:[#allocation2 + $0x42] sm:$0xff]
        %v1223 = vld [vmem:[#allocation2 + $0x4a] sm:$0xff]
        %v1224 = vld [vmem:[#allocation2 + $0x52] sm:$0xff]
        %v1225 = vld [vmem:[#allocation2 + $0x5a] sm:$0xff]
        %v1226 = vld [vmem:[#allocation2 + $0x62] sm:$0xff]
        %v1227 = vld [vmem:[#allocation2 + $0x6a] sm:$0xff]
        %v1228 = vld [vmem:[#allocation2 + $0x72] sm:$0xff]
        %v1229 = vld [vmem:[#allocation2 + $0x7a] sm:$0xff]
        %v1230 = vld [vmem:[#allocation2 + $0x82] sm:$0xff]
        %v1231 = vld [vmem:[#allocation2 + $0x8a] sm:$0xff]
        %v1232 = vld [vmem:[#allocation2 + $0x92] sm:$0xff]
        %v1233 = vld [vmem:[#allocation2 + $0x9a] sm:$0xff]
        %v1234 = vld [vmem:[#allocation2 + $0xa2] sm:$0xff]
        %v1235 = vld [vmem:[#allocation2 + $0xaa] sm:$0xff]
        %v1236 = vld [vmem:[#allocation2 + $0xb2] sm:$0xff]
        %v1237 = vld [vmem:[#allocation2 + $0xba] sm:$0xff]
        %v1238 = vld [vmem:[#allocation2 + $0xc2] sm:$0xff]
        %v1239 = vld [vmem:[#allocation2 + $0xca] sm:$0xff]
        %v1240 = vld [vmem:[#allocation2 + $0xd2] sm:$0xff]
        %v1241 = vld [vmem:[#allocation2 + $0xda] sm:$0xff]
        %v1242 = vld [vmem:[#allocation2 + $0xe2] sm:$0xff]
        %v1243 = vld [vmem:[#allocation2 + $0xea] sm:$0xff]
        %v1244 = vld [vmem:[#allocation2 + $0xf2] sm:$0xff]
        %v1245 = vld [vmem:[#allocation2 + $0xfa] sm:$0xff]
        %v1246 = vld [vmem:[#allocation2 + $0x102] sm:$0xff]
        %v1247 = vld [vmem:[#allocation2 + $0x10a] sm:$0xff]
        %v1248 = vld [vmem:[#allocation2 + $0x112] sm:$0xff]
        %v1249 = vld [vmem:[#allocation2 + $0x11a] sm:$0xff]
        %v1250 = vld [vmem:[#allocation2 + $0x122] sm:$0xff]
        %v1251 = vld [vmem:[#allocation2 + $0x12a] sm:$0xff]
        %1288 = vrot.lane.b32.xlu0 %v1216, 12
        %v1289 = vpop.permute.xlu0 %1288
        %1290 = vrot.lane.b32.xlu0 %v1217, 12
        %v1291 = vpop.permute.xlu0 %1290
        %1292 = vrot.lane.b32.xlu0 %v1218, 12
        %v1293 = vpop.permute.xlu0 %1292
        %1294 = vrot.lane.b32.xlu0 %v1219, 12
        %v1295 = vpop.permute.xlu0 %1294
        %1296 = vrot.lane.b32.xlu0 %v1220, 12
        %v1297 = vpop.permute.xlu0 %1296
        %1298 = vrot.lane.b32.xlu0 %v1221, 12
        %v1299 = vpop.permute.xlu0 %1298
        %1300 = vrot.lane.b32.xlu0 %v1222, 12
        %v1301 = vpop.permute.xlu0 %1300
        %1302 = vrot.lane.b32.xlu0 %v1223, 12
        %v1303 = vpop.permute.xlu0 %1302
        %1304 = vrot.lane.b32.xlu0 %v1224, 12
        %v1305 = vpop.permute.xlu0 %1304
        %1306 = vrot.lane.b32.xlu0 %v1225, 12
        %v1307 = vpop.permute.xlu0 %1306
        %1308 = vrot.lane.b32.xlu0 %v1226, 12
        %v1309 = vpop.permute.xlu0 %1308
        %1310 = vrot.lane.b32.xlu0 %v1227, 12
        %v1311 = vpop.permute.xlu0 %1310
        %1312 = vrot.lane.b32.xlu0 %v1228, 12
        %v1313 = vpop.permute.xlu0 %1312
        %1314 = vrot.lane.b32.xlu0 %v1229, 12
        %v1315 = vpop.permute.xlu0 %1314
        %1316 = vrot.lane.b32.xlu0 %v1230, 12
        %v1317 = vpop.permute.xlu0 %1316
        %1318 = vrot.lane.b32.xlu0 %v1231, 12
        %v1319 = vpop.permute.xlu0 %1318
        %1320 = vrot.lane.b32.xlu0 %v1232, 12
        %v1321 = vpop.permute.xlu0 %1320
        %1322 = vrot.lane.b32.xlu0 %v1233, 12
        %v1323 = vpop.permute.xlu0 %1322
        %1324 = vrot.lane.b32.xlu0 %v1234, 12
        %v1325 = vpop.permute.xlu0 %1324
        %1326 = vrot.lane.b32.xlu0 %v1235, 12
        %v1327 = vpop.permute.xlu0 %1326
        %1328 = vrot.lane.b32.xlu0 %v1236, 12
        %v1329 = vpop.permute.xlu0 %1328
        %1330 = vrot.lane.b32.xlu0 %v1237, 12
        %v1331 = vpop.permute.xlu0 %1330
        %1332 = vrot.lane.b32.xlu0 %v1238, 12
        %v1333 = vpop.permute.xlu0 %1332
        %1334 = vrot.lane.b32.xlu0 %v1239, 12
        %v1335 = vpop.permute.xlu0 %1334
        %1336 = vrot.lane.b32.xlu0 %v1240, 12
        %v1337 = vpop.permute.xlu0 %1336
        %1338 = vrot.lane.b32.xlu0 %v1241, 12
        %v1339 = vpop.permute.xlu0 %1338
        %1340 = vrot.lane.b32.xlu0 %v1242, 12
        %v1341 = vpop.permute.xlu0 %1340
        %1342 = vrot.lane.b32.xlu0 %v1243, 12
        %v1343 = vpop.permute.xlu0 %1342
        %1344 = vrot.lane.b32.xlu0 %v1244, 12
        %v1345 = vpop.permute.xlu0 %1344
        %1346 = vrot.lane.b32.xlu0 %v1245, 12
        %v1347 = vpop.permute.xlu0 %1346
        %1348 = vrot.lane.b32.xlu0 %v1246, 12
        %v1349 = vpop.permute.xlu0 %1348
        %1350 = vrot.lane.b32.xlu0 %v1247, 12
        %v1351 = vpop.permute.xlu0 %1350
        %1352 = vrot.lane.b32.xlu0 %v1248, 12
        %v1353 = vpop.permute.xlu0 %1352
        %1354 = vrot.lane.b32.xlu0 %v1249, 12
        %v1355 = vpop.permute.xlu0 %1354
        %1356 = vrot.lane.b32.xlu0 %v1250, 12
        %v1357 = vpop.permute.xlu0 %1356
        %1358 = vrot.lane.b32.xlu0 %v1251, 12
        %v1359 = vpop.permute.xlu0 %1358
        %vm1396 = vcmask 130144
        %1397 = vst.msk [vmem:[#allocation4] sm:$0xff] %vm1396, %v1289
        %1398 = vst.msk [vmem:[#allocation4 + $0x8] sm:$0xff] %vm1396, %v1291
        %1399 = vst.msk [vmem:[#allocation4 + $0x10] sm:$0xff] %vm1396, %v1293
        %1400 = vst.msk [vmem:[#allocation4 + $0x18] sm:$0xff] %vm1396, %v1295
        %1401 = vst.msk [vmem:[#allocation4 + $0x20] sm:$0xff] %vm1396, %v1297
        %1402 = vst.msk [vmem:[#allocation4 + $0x28] sm:$0xff] %vm1396, %v1299
        %1403 = vst.msk [vmem:[#allocation4 + $0x30] sm:$0xff] %vm1396, %v1301
        %1404 = vst.msk [vmem:[#allocation4 + $0x38] sm:$0xff] %vm1396, %v1303
        %1405 = vst.msk [vmem:[#allocation4 + $0x40] sm:$0xff] %vm1396, %v1305
        %1406 = vst.msk [vmem:[#allocation4 + $0x48] sm:$0xff] %vm1396, %v1307
        %1407 = vst.msk [vmem:[#allocation4 + $0x50] sm:$0xff] %vm1396, %v1309
        %1408 = vst.msk [vmem:[#allocation4 + $0x58] sm:$0xff] %vm1396, %v1311
        %1409 = vst.msk [vmem:[#allocation4 + $0x60] sm:$0xff] %vm1396, %v1313
        %1410 = vst.msk [vmem:[#allocation4 + $0x68] sm:$0xff] %vm1396, %v1315
        %1411 = vst.msk [vmem:[#allocation4 + $0x70] sm:$0xff] %vm1396, %v1317
        %1412 = vst.msk [vmem:[#allocation4 + $0x78] sm:$0xff] %vm1396, %v1319
        %1413 = vst.msk [vmem:[#allocation4 + $0x80] sm:$0xff] %vm1396, %v1321
        %1414 = vst.msk [vmem:[#allocation4 + $0x88] sm:$0xff] %vm1396, %v1323
        %1415 = vst.msk [vmem:[#allocation4 + $0x90] sm:$0xff] %vm1396, %v1325
        %1416 = vst.msk [vmem:[#allocation4 + $0x98] sm:$0xff] %vm1396, %v1327
        %1417 = vst.msk [vmem:[#allocation4 + $0xa0] sm:$0xff] %vm1396, %v1329
        %1418 = vst.msk [vmem:[#allocation4 + $0xa8] sm:$0xff] %vm1396, %v1331
        %1419 = vst.msk [vmem:[#allocation4 + $0xb0] sm:$0xff] %vm1396, %v1333
        %1420 = vst.msk [vmem:[#allocation4 + $0xb8] sm:$0xff] %vm1396, %v1335
        %1421 = vst.msk [vmem:[#allocation4 + $0xc0] sm:$0xff] %vm1396, %v1337
        %1422 = vst.msk [vmem:[#allocation4 + $0xc8] sm:$0xff] %vm1396, %v1339
        %1423 = vst.msk [vmem:[#allocation4 + $0xd0] sm:$0xff] %vm1396, %v1341
        %1424 = vst.msk [vmem:[#allocation4 + $0xd8] sm:$0xff] %vm1396, %v1343
        %1425 = vst.msk [vmem:[#allocation4 + $0xe0] sm:$0xff] %vm1396, %v1345
        %1426 = vst.msk [vmem:[#allocation4 + $0xe8] sm:$0xff] %vm1396, %v1347
        %1427 = vst.msk [vmem:[#allocation4 + $0xf0] sm:$0xff] %vm1396, %v1349
        %1428 = vst.msk [vmem:[#allocation4 + $0xf8] sm:$0xff] %vm1396, %v1351
        %1429 = vst.msk [vmem:[#allocation4 + $0x100] sm:$0xff] %vm1396, %v1353
        %1430 = vst.msk [vmem:[#allocation4 + $0x108] sm:$0xff] %vm1396, %v1355
        %1431 = vst.msk [vmem:[#allocation4 + $0x110] sm:$0xff] %vm1396, %v1357
        %1432 = vst.msk [vmem:[#allocation4 + $0x118] sm:$0xff] %vm1396, %v1359
        %v1433 = vld [vmem:[#allocation2 + $0x13] sm:$0xff]
        %v1434 = vld [vmem:[#allocation2 + $0x1b] sm:$0xff]
        %v1435 = vld [vmem:[#allocation2 + $0x23] sm:$0xff]
        %v1436 = vld [vmem:[#allocation2 + $0x2b] sm:$0xff]
        %v1437 = vld [vmem:[#allocation2 + $0x33] sm:$0xff]
        %v1438 = vld [vmem:[#allocation2 + $0x3b] sm:$0xff]
        %v1439 = vld [vmem:[#allocation2 + $0x43] sm:$0xff]
        %v1440 = vld [vmem:[#allocation2 + $0x4b] sm:$0xff]
        %v1441 = vld [vmem:[#allocation2 + $0x53] sm:$0xff]
        %v1442 = vld [vmem:[#allocation2 + $0x5b] sm:$0xff]
        %v1443 = vld [vmem:[#allocation2 + $0x63] sm:$0xff]
        %v1444 = vld [vmem:[#allocation2 + $0x6b] sm:$0xff]
        %v1445 = vld [vmem:[#allocation2 + $0x73] sm:$0xff]
        %v1446 = vld [vmem:[#allocation2 + $0x7b] sm:$0xff]
        %v1447 = vld [vmem:[#allocation2 + $0x83] sm:$0xff]
        %v1448 = vld [vmem:[#allocation2 + $0x8b] sm:$0xff]
        %v1449 = vld [vmem:[#allocation2 + $0x93] sm:$0xff]
        %v1450 = vld [vmem:[#allocation2 + $0x9b] sm:$0xff]
        %v1451 = vld [vmem:[#allocation2 + $0xa3] sm:$0xff]
        %v1452 = vld [vmem:[#allocation2 + $0xab] sm:$0xff]
        %v1453 = vld [vmem:[#allocation2 + $0xb3] sm:$0xff]
        %v1454 = vld [vmem:[#allocation2 + $0xbb] sm:$0xff]
        %v1455 = vld [vmem:[#allocation2 + $0xc3] sm:$0xff]
        %v1456 = vld [vmem:[#allocation2 + $0xcb] sm:$0xff]
        %v1457 = vld [vmem:[#allocation2 + $0xd3] sm:$0xff]
        %v1458 = vld [vmem:[#allocation2 + $0xdb] sm:$0xff]
        %v1459 = vld [vmem:[#allocation2 + $0xe3] sm:$0xff]
        %v1460 = vld [vmem:[#allocation2 + $0xeb] sm:$0xff]
        %v1461 = vld [vmem:[#allocation2 + $0xf3] sm:$0xff]
        %v1462 = vld [vmem:[#allocation2 + $0xfb] sm:$0xff]
        %v1463 = vld [vmem:[#allocation2 + $0x103] sm:$0xff]
        %v1464 = vld [vmem:[#allocation2 + $0x10b] sm:$0xff]
        %v1465 = vld [vmem:[#allocation2 + $0x113] sm:$0xff]
        %v1466 = vld [vmem:[#allocation2 + $0x11b] sm:$0xff]
        %v1467 = vld [vmem:[#allocation2 + $0x123] sm:$0xff]
        %v1468 = vld [vmem:[#allocation2 + $0x12b] sm:$0xff]
        %1505 = vrot.lane.b32.xlu0 %v1433, 16
        %v1506 = vpop.permute.xlu0 %1505
        %1507 = vrot.lane.b32.xlu0 %v1434, 16
        %v1508 = vpop.permute.xlu0 %1507
        %1509 = vrot.lane.b32.xlu0 %v1435, 16
        %v1510 = vpop.permute.xlu0 %1509
        %1511 = vrot.lane.b32.xlu0 %v1436, 16
        %v1512 = vpop.permute.xlu0 %1511
        %1513 = vrot.lane.b32.xlu0 %v1437, 16
        %v1514 = vpop.permute.xlu0 %1513
        %1515 = vrot.lane.b32.xlu0 %v1438, 16
        %v1516 = vpop.permute.xlu0 %1515
        %1517 = vrot.lane.b32.xlu0 %v1439, 16
        %v1518 = vpop.permute.xlu0 %1517
        %1519 = vrot.lane.b32.xlu0 %v1440, 16
        %v1520 = vpop.permute.xlu0 %1519
        %1521 = vrot.lane.b32.xlu0 %v1441, 16
        %v1522 = vpop.permute.xlu0 %1521
        %1523 = vrot.lane.b32.xlu0 %v1442, 16
        %v1524 = vpop.permute.xlu0 %1523
        %1525 = vrot.lane.b32.xlu0 %v1443, 16
        %v1526 = vpop.permute.xlu0 %1525
        %1527 = vrot.lane.b32.xlu0 %v1444, 16
        %v1528 = vpop.permute.xlu0 %1527
        %1529 = vrot.lane.b32.xlu0 %v1445, 16
        %v1530 = vpop.permute.xlu0 %1529
        %1531 = vrot.lane.b32.xlu0 %v1446, 16
        %v1532 = vpop.permute.xlu0 %1531
        %1533 = vrot.lane.b32.xlu0 %v1447, 16
        %v1534 = vpop.permute.xlu0 %1533
        %1535 = vrot.lane.b32.xlu0 %v1448, 16
        %v1536 = vpop.permute.xlu0 %1535
        %1537 = vrot.lane.b32.xlu0 %v1449, 16
        %v1538 = vpop.permute.xlu0 %1537
        %1539 = vrot.lane.b32.xlu0 %v1450, 16
        %v1540 = vpop.permute.xlu0 %1539
        %1541 = vrot.lane.b32.xlu0 %v1451, 16
        %v1542 = vpop.permute.xlu0 %1541
        %1543 = vrot.lane.b32.xlu0 %v1452, 16
        %v1544 = vpop.permute.xlu0 %1543
        %1545 = vrot.lane.b32.xlu0 %v1453, 16
        %v1546 = vpop.permute.xlu0 %1545
        %1547 = vrot.lane.b32.xlu0 %v1454, 16
        %v1548 = vpop.permute.xlu0 %1547
        %1549 = vrot.lane.b32.xlu0 %v1455, 16
        %v1550 = vpop.permute.xlu0 %1549
        %1551 = vrot.lane.b32.xlu0 %v1456, 16
        %v1552 = vpop.permute.xlu0 %1551
        %1553 = vrot.lane.b32.xlu0 %v1457, 16
        %v1554 = vpop.permute.xlu0 %1553
        %1555 = vrot.lane.b32.xlu0 %v1458, 16
        %v1556 = vpop.permute.xlu0 %1555
        %1557 = vrot.lane.b32.xlu0 %v1459, 16
        %v1558 = vpop.permute.xlu0 %1557
        %1559 = vrot.lane.b32.xlu0 %v1460, 16
        %v1560 = vpop.permute.xlu0 %1559
        %1561 = vrot.lane.b32.xlu0 %v1461, 16
        %v1562 = vpop.permute.xlu0 %1561
        %1563 = vrot.lane.b32.xlu0 %v1462, 16
        %v1564 = vpop.permute.xlu0 %1563
        %1565 = vrot.lane.b32.xlu0 %v1463, 16
        %v1566 = vpop.permute.xlu0 %1565
        %1567 = vrot.lane.b32.xlu0 %v1464, 16
        %v1568 = vpop.permute.xlu0 %1567
        %1569 = vrot.lane.b32.xlu0 %v1465, 16
        %v1570 = vpop.permute.xlu0 %1569
        %1571 = vrot.lane.b32.xlu0 %v1466, 16
        %v1572 = vpop.permute.xlu0 %1571
        %1573 = vrot.lane.b32.xlu0 %v1467, 16
        %v1574 = vpop.permute.xlu0 %1573
        %1575 = vrot.lane.b32.xlu0 %v1468, 16
        %v1576 = vpop.permute.xlu0 %1575
        %vm1613 = vcmask 162944
        %1614 = vst.msk [vmem:[#allocation4] sm:$0xff] %vm1613, %v1506
        %1615 = vst.msk [vmem:[#allocation4 + $0x8] sm:$0xff] %vm1613, %v1508
        %1616 = vst.msk [vmem:[#allocation4 + $0x10] sm:$0xff] %vm1613, %v1510
        %1617 = vst.msk [vmem:[#allocation4 + $0x18] sm:$0xff] %vm1613, %v1512
        %1618 = vst.msk [vmem:[#allocation4 + $0x20] sm:$0xff] %vm1613, %v1514
        %1619 = vst.msk [vmem:[#allocation4 + $0x28] sm:$0xff] %vm1613, %v1516
        %1620 = vst.msk [vmem:[#allocation4 + $0x30] sm:$0xff] %vm1613, %v1518
        %1621 = vst.msk [vmem:[#allocation4 + $0x38] sm:$0xff] %vm1613, %v1520
        %1622 = vst.msk [vmem:[#allocation4 + $0x40] sm:$0xff] %vm1613, %v1522
        %1623 = vst.msk [vmem:[#allocation4 + $0x48] sm:$0xff] %vm1613, %v1524
        %1624 = vst.msk [vmem:[#allocation4 + $0x50] sm:$0xff] %vm1613, %v1526
        %1625 = vst.msk [vmem:[#allocation4 + $0x58] sm:$0xff] %vm1613, %v1528
        %1626 = vst.msk [vmem:[#allocation4 + $0x60] sm:$0xff] %vm1613, %v1530
        %1627 = vst.msk [vmem:[#allocation4 + $0x68] sm:$0xff] %vm1613, %v1532
        %1628 = vst.msk [vmem:[#allocation4 + $0x70] sm:$0xff] %vm1613, %v1534
        %1629 = vst.msk [vmem:[#allocation4 + $0x78] sm:$0xff] %vm1613, %v1536
        %1630 = vst.msk [vmem:[#allocation4 + $0x80] sm:$0xff] %vm1613, %v1538
        %1631 = vst.msk [vmem:[#allocation4 + $0x88] sm:$0xff] %vm1613, %v1540
        %1632 = vst.msk [vmem:[#allocation4 + $0x90] sm:$0xff] %vm1613, %v1542
        %1633 = vst.msk [vmem:[#allocation4 + $0x98] sm:$0xff] %vm1613, %v1544
        %1634 = vst.msk [vmem:[#allocation4 + $0xa0] sm:$0xff] %vm1613, %v1546
        %1635 = vst.msk [vmem:[#allocation4 + $0xa8] sm:$0xff] %vm1613, %v1548
        %1636 = vst.msk [vmem:[#allocation4 + $0xb0] sm:$0xff] %vm1613, %v1550
        %1637 = vst.msk [vmem:[#allocation4 + $0xb8] sm:$0xff] %vm1613, %v1552
        %1638 = vst.msk [vmem:[#allocation4 + $0xc0] sm:$0xff] %vm1613, %v1554
        %1639 = vst.msk [vmem:[#allocation4 + $0xc8] sm:$0xff] %vm1613, %v1556
        %1640 = vst.msk [vmem:[#allocation4 + $0xd0] sm:$0xff] %vm1613, %v1558
        %1641 = vst.msk [vmem:[#allocation4 + $0xd8] sm:$0xff] %vm1613, %v1560
        %1642 = vst.msk [vmem:[#allocation4 + $0xe0] sm:$0xff] %vm1613, %v1562
        %1643 = vst.msk [vmem:[#allocation4 + $0xe8] sm:$0xff] %vm1613, %v1564
        %1644 = vst.msk [vmem:[#allocation4 + $0xf0] sm:$0xff] %vm1613, %v1566
        %1645 = vst.msk [vmem:[#allocation4 + $0xf8] sm:$0xff] %vm1613, %v1568
        %1646 = vst.msk [vmem:[#allocation4 + $0x100] sm:$0xff] %vm1613, %v1570
        %1647 = vst.msk [vmem:[#allocation4 + $0x108] sm:$0xff] %vm1613, %v1572
        %1648 = vst.msk [vmem:[#allocation4 + $0x110] sm:$0xff] %vm1613, %v1574
        %1649 = vst.msk [vmem:[#allocation4 + $0x118] sm:$0xff] %vm1613, %v1576
        %v1650 = vld [vmem:[#allocation2 + $0x14] sm:$0xff]
        %v1651 = vld [vmem:[#allocation2 + $0x1c] sm:$0xff]
        %v1652 = vld [vmem:[#allocation2 + $0x24] sm:$0xff]
        %v1653 = vld [vmem:[#allocation2 + $0x2c] sm:$0xff]
        %v1654 = vld [vmem:[#allocation2 + $0x34] sm:$0xff]
        %v1655 = vld [vmem:[#allocation2 + $0x3c] sm:$0xff]
        %v1656 = vld [vmem:[#allocation2 + $0x44] sm:$0xff]
        %v1657 = vld [vmem:[#allocation2 + $0x4c] sm:$0xff]
        %v1658 = vld [vmem:[#allocation2 + $0x54] sm:$0xff]
        %v1659 = vld [vmem:[#allocation2 + $0x5c] sm:$0xff]
        %v1660 = vld [vmem:[#allocation2 + $0x64] sm:$0xff]
        %v1661 = vld [vmem:[#allocation2 + $0x6c] sm:$0xff]
        %v1662 = vld [vmem:[#allocation2 + $0x74] sm:$0xff]
        %v1663 = vld [vmem:[#allocation2 + $0x7c] sm:$0xff]
        %v1664 = vld [vmem:[#allocation2 + $0x84] sm:$0xff]
        %v1665 = vld [vmem:[#allocation2 + $0x8c] sm:$0xff]
        %v1666 = vld [vmem:[#allocation2 + $0x94] sm:$0xff]
        %v1667 = vld [vmem:[#allocation2 + $0x9c] sm:$0xff]
        %v1668 = vld [vmem:[#allocation2 + $0xa4] sm:$0xff]
        %v1669 = vld [vmem:[#allocation2 + $0xac] sm:$0xff]
        %v1670 = vld [vmem:[#allocation2 + $0xb4] sm:$0xff]
        %v1671 = vld [vmem:[#allocation2 + $0xbc] sm:$0xff]
        %v1672 = vld [vmem:[#allocation2 + $0xc4] sm:$0xff]
        %v1673 = vld [vmem:[#allocation2 + $0xcc] sm:$0xff]
        %v1674 = vld [vmem:[#allocation2 + $0xd4] sm:$0xff]
        %v1675 = vld [vmem:[#allocation2 + $0xdc] sm:$0xff]
        %v1676 = vld [vmem:[#allocation2 + $0xe4] sm:$0xff]
        %v1677 = vld [vmem:[#allocation2 + $0xec] sm:$0xff]
        %v1678 = vld [vmem:[#allocation2 + $0xf4] sm:$0xff]
        %v1679 = vld [vmem:[#allocation2 + $0xfc] sm:$0xff]
        %v1680 = vld [vmem:[#allocation2 + $0x104] sm:$0xff]
        %v1681 = vld [vmem:[#allocation2 + $0x10c] sm:$0xff]
        %v1682 = vld [vmem:[#allocation2 + $0x114] sm:$0xff]
        %v1683 = vld [vmem:[#allocation2 + $0x11c] sm:$0xff]
        %v1684 = vld [vmem:[#allocation2 + $0x124] sm:$0xff]
        %v1685 = vld [vmem:[#allocation2 + $0x12c] sm:$0xff]
        %1722 = vrot.lane.b32.xlu0 %v1650, 20
        %v1723 = vpop.permute.xlu0 %1722
        %1724 = vrot.lane.b32.xlu0 %v1651, 20
        %v1725 = vpop.permute.xlu0 %1724
        %1726 = vrot.lane.b32.xlu0 %v1652, 20
        %v1727 = vpop.permute.xlu0 %1726
        %1728 = vrot.lane.b32.xlu0 %v1653, 20
        %v1729 = vpop.permute.xlu0 %1728
        %1730 = vrot.lane.b32.xlu0 %v1654, 20
        %v1731 = vpop.permute.xlu0 %1730
        %1732 = vrot.lane.b32.xlu0 %v1655, 20
        %v1733 = vpop.permute.xlu0 %1732
        %1734 = vrot.lane.b32.xlu0 %v1656, 20
        %v1735 = vpop.permute.xlu0 %1734
        %1736 = vrot.lane.b32.xlu0 %v1657, 20
        %v1737 = vpop.permute.xlu0 %1736
        %1738 = vrot.lane.b32.xlu0 %v1658, 20
        %v1739 = vpop.permute.xlu0 %1738
        %1740 = vrot.lane.b32.xlu0 %v1659, 20
        %v1741 = vpop.permute.xlu0 %1740
        %1742 = vrot.lane.b32.xlu0 %v1660, 20
        %v1743 = vpop.permute.xlu0 %1742
        %1744 = vrot.lane.b32.xlu0 %v1661, 20
        %v1745 = vpop.permute.xlu0 %1744
        %1746 = vrot.lane.b32.xlu0 %v1662, 20
        %v1747 = vpop.permute.xlu0 %1746
        %1748 = vrot.lane.b32.xlu0 %v1663, 20
        %v1749 = vpop.permute.xlu0 %1748
        %1750 = vrot.lane.b32.xlu0 %v1664, 20
        %v1751 = vpop.permute.xlu0 %1750
        %1752 = vrot.lane.b32.xlu0 %v1665, 20
        %v1753 = vpop.permute.xlu0 %1752
        %1754 = vrot.lane.b32.xlu0 %v1666, 20
        %v1755 = vpop.permute.xlu0 %1754
        %1756 = vrot.lane.b32.xlu0 %v1667, 20
        %v1757 = vpop.permute.xlu0 %1756
        %1758 = vrot.lane.b32.xlu0 %v1668, 20
        %v1759 = vpop.permute.xlu0 %1758
        %1760 = vrot.lane.b32.xlu0 %v1669, 20
        %v1761 = vpop.permute.xlu0 %1760
        %1762 = vrot.lane.b32.xlu0 %v1670, 20
        %v1763 = vpop.permute.xlu0 %1762
        %1764 = vrot.lane.b32.xlu0 %v1671, 20
        %v1765 = vpop.permute.xlu0 %1764
        %1766 = vrot.lane.b32.xlu0 %v1672, 20
        %v1767 = vpop.permute.xlu0 %1766
        %1768 = vrot.lane.b32.xlu0 %v1673, 20
        %v1769 = vpop.permute.xlu0 %1768
        %1770 = vrot.lane.b32.xlu0 %v1674, 20
        %v1771 = vpop.permute.xlu0 %1770
        %1772 = vrot.lane.b32.xlu0 %v1675, 20
        %v1773 = vpop.permute.xlu0 %1772
        %1774 = vrot.lane.b32.xlu0 %v1676, 20
        %v1775 = vpop.permute.xlu0 %1774
        %1776 = vrot.lane.b32.xlu0 %v1677, 20
        %v1777 = vpop.permute.xlu0 %1776
        %1778 = vrot.lane.b32.xlu0 %v1678, 20
        %v1779 = vpop.permute.xlu0 %1778
        %1780 = vrot.lane.b32.xlu0 %v1679, 20
        %v1781 = vpop.permute.xlu0 %1780
        %1782 = vrot.lane.b32.xlu0 %v1680, 20
        %v1783 = vpop.permute.xlu0 %1782
        %1784 = vrot.lane.b32.xlu0 %v1681, 20
        %v1785 = vpop.permute.xlu0 %1784
        %1786 = vrot.lane.b32.xlu0 %v1682, 20
        %v1787 = vpop.permute.xlu0 %1786
        %1788 = vrot.lane.b32.xlu0 %v1683, 20
        %v1789 = vpop.permute.xlu0 %1788
        %1790 = vrot.lane.b32.xlu0 %v1684, 20
        %v1791 = vpop.permute.xlu0 %1790
        %1792 = vrot.lane.b32.xlu0 %v1685, 20
        %v1793 = vpop.permute.xlu0 %1792
        %vm1830 = vcmask 195744
        %1831 = vst.msk [vmem:[#allocation4] sm:$0xff] %vm1830, %v1723
        %1832 = vst.msk [vmem:[#allocation4 + $0x8] sm:$0xff] %vm1830, %v1725
        %1833 = vst.msk [vmem:[#allocation4 + $0x10] sm:$0xff] %vm1830, %v1727
        %1834 = vst.msk [vmem:[#allocation4 + $0x18] sm:$0xff] %vm1830, %v1729
        %1835 = vst.msk [vmem:[#allocation4 + $0x20] sm:$0xff] %vm1830, %v1731
        %1836 = vst.msk [vmem:[#allocation4 + $0x28] sm:$0xff] %vm1830, %v1733
        %1837 = vst.msk [vmem:[#allocation4 + $0x30] sm:$0xff] %vm1830, %v1735
        %1838 = vst.msk [vmem:[#allocation4 + $0x38] sm:$0xff] %vm1830, %v1737
        %1839 = vst.msk [vmem:[#allocation4 + $0x40] sm:$0xff] %vm1830, %v1739
        %1840 = vst.msk [vmem:[#allocation4 + $0x48] sm:$0xff] %vm1830, %v1741
        %1841 = vst.msk [vmem:[#allocation4 + $0x50] sm:$0xff] %vm1830, %v1743
        %1842 = vst.msk [vmem:[#allocation4 + $0x58] sm:$0xff] %vm1830, %v1745
        %1843 = vst.msk [vmem:[#allocation4 + $0x60] sm:$0xff] %vm1830, %v1747
        %1844 = vst.msk [vmem:[#allocation4 + $0x68] sm:$0xff] %vm1830, %v1749
        %1845 = vst.msk [vmem:[#allocation4 + $0x70] sm:$0xff] %vm1830, %v1751
        %1846 = vst.msk [vmem:[#allocation4 + $0x78] sm:$0xff] %vm1830, %v1753
        %1847 = vst.msk [vmem:[#allocation4 + $0x80] sm:$0xff] %vm1830, %v1755
        %1848 = vst.msk [vmem:[#allocation4 + $0x88] sm:$0xff] %vm1830, %v1757
        %1849 = vst.msk [vmem:[#allocation4 + $0x90] sm:$0xff] %vm1830, %v1759
        %1850 = vst.msk [vmem:[#allocation4 + $0x98] sm:$0xff] %vm1830, %v1761
        %1851 = vst.msk [vmem:[#allocation4 + $0xa0] sm:$0xff] %vm1830, %v1763
        %1852 = vst.msk [vmem:[#allocation4 + $0xa8] sm:$0xff] %vm1830, %v1765
        %1853 = vst.msk [vmem:[#allocation4 + $0xb0] sm:$0xff] %vm1830, %v1767
        %1854 = vst.msk [vmem:[#allocation4 + $0xb8] sm:$0xff] %vm1830, %v1769
        %1855 = vst.msk [vmem:[#allocation4 + $0xc0] sm:$0xff] %vm1830, %v1771
        %1856 = vst.msk [vmem:[#allocation4 + $0xc8] sm:$0xff] %vm1830, %v1773
        %1857 = vst.msk [vmem:[#allocation4 + $0xd0] sm:$0xff] %vm1830, %v1775
        %1858 = vst.msk [vmem:[#allocation4 + $0xd8] sm:$0xff] %vm1830, %v1777
        %1859 = vst.msk [vmem:[#allocation4 + $0xe0] sm:$0xff] %vm1830, %v1779
        %1860 = vst.msk [vmem:[#allocation4 + $0xe8] sm:$0xff] %vm1830, %v1781
        %1861 = vst.msk [vmem:[#allocation4 + $0xf0] sm:$0xff] %vm1830, %v1783
        %1862 = vst.msk [vmem:[#allocation4 + $0xf8] sm:$0xff] %vm1830, %v1785
        %1863 = vst.msk [vmem:[#allocation4 + $0x100] sm:$0xff] %vm1830, %v1787
        %1864 = vst.msk [vmem:[#allocation4 + $0x108] sm:$0xff] %vm1830, %v1789
        %1865 = vst.msk [vmem:[#allocation4 + $0x110] sm:$0xff] %vm1830, %v1791
        %1866 = vst.msk [vmem:[#allocation4 + $0x118] sm:$0xff] %vm1830, %v1793
        %v1867 = vld [vmem:[#allocation2 + $0x24] sm:$0xff]
        %v1868 = vld [vmem:[#allocation2 + $0x2c] sm:$0xff]
        %v1869 = vld [vmem:[#allocation2 + $0x34] sm:$0xff]
        %v1870 = vld [vmem:[#allocation2 + $0x3c] sm:$0xff]
        %v1871 = vld [vmem:[#allocation2 + $0x44] sm:$0xff]
        %v1872 = vld [vmem:[#allocation2 + $0x4c] sm:$0xff]
        %v1873 = vld [vmem:[#allocation2 + $0x54] sm:$0xff]
        %v1874 = vld [vmem:[#allocation2 + $0x5c] sm:$0xff]
        %v1875 = vld [vmem:[#allocation2 + $0x64] sm:$0xff]
        %v1876 = vld [vmem:[#allocation2 + $0x6c] sm:$0xff]
        %v1877 = vld [vmem:[#allocation2 + $0x74] sm:$0xff]
        %v1878 = vld [vmem:[#allocation2 + $0x7c] sm:$0xff]
        %v1879 = vld [vmem:[#allocation2 + $0x84] sm:$0xff]
        %v1880 = vld [vmem:[#allocation2 + $0x8c] sm:$0xff]
        %v1881 = vld [vmem:[#allocation2 + $0x94] sm:$0xff]
        %v1882 = vld [vmem:[#allocation2 + $0x9c] sm:$0xff]
        %v1883 = vld [vmem:[#allocation2 + $0xa4] sm:$0xff]
        %v1884 = vld [vmem:[#allocation2 + $0xac] sm:$0xff]
        %v1885 = vld [vmem:[#allocation2 + $0xb4] sm:$0xff]
        %v1886 = vld [vmem:[#allocation2 + $0xbc] sm:$0xff]
        %v1887 = vld [vmem:[#allocation2 + $0xc4] sm:$0xff]
        %v1888 = vld [vmem:[#allocation2 + $0xcc] sm:$0xff]
        %v1889 = vld [vmem:[#allocation2 + $0xd4] sm:$0xff]
        %v1890 = vld [vmem:[#allocation2 + $0xdc] sm:$0xff]
        %v1891 = vld [vmem:[#allocation2 + $0xe4] sm:$0xff]
        %v1892 = vld [vmem:[#allocation2 + $0xec] sm:$0xff]
        %v1893 = vld [vmem:[#allocation2 + $0xf4] sm:$0xff]
        %v1894 = vld [vmem:[#allocation2 + $0xfc] sm:$0xff]
        %v1895 = vld [vmem:[#allocation2 + $0x104] sm:$0xff]
        %v1896 = vld [vmem:[#allocation2 + $0x10c] sm:$0xff]
        %v1897 = vld [vmem:[#allocation2 + $0x114] sm:$0xff]
        %v1898 = vld [vmem:[#allocation2 + $0x11c] sm:$0xff]
        %v1899 = vld [vmem:[#allocation2 + $0x124] sm:$0xff]
        %v1900 = vld [vmem:[#allocation2 + $0x12c] sm:$0xff]
        %v1901 = vld [vmem:[#allocation2 + $0x134] sm:$0xff]
        %v1902 = vld [vmem:[#allocation2 + $0x13c] sm:$0xff]
        %1939 = vrot.lane.b32.xlu0 %v1867, 24
        %v1940 = vpop.permute.xlu0 %1939
        %1941 = vrot.lane.b32.xlu0 %v1868, 24
        %v1942 = vpop.permute.xlu0 %1941
        %1943 = vrot.lane.b32.xlu0 %v1869, 24
        %v1944 = vpop.permute.xlu0 %1943
        %1945 = vrot.lane.b32.xlu0 %v1870, 24
        %v1946 = vpop.permute.xlu0 %1945
        %1947 = vrot.lane.b32.xlu0 %v1871, 24
        %v1948 = vpop.permute.xlu0 %1947
        %1949 = vrot.lane.b32.xlu0 %v1872, 24
        %v1950 = vpop.permute.xlu0 %1949
        %1951 = vrot.lane.b32.xlu0 %v1873, 24
        %v1952 = vpop.permute.xlu0 %1951
        %1953 = vrot.lane.b32.xlu0 %v1874, 24
        %v1954 = vpop.permute.xlu0 %1953
        %1955 = vrot.lane.b32.xlu0 %v1875, 24
        %v1956 = vpop.permute.xlu0 %1955
        %1957 = vrot.lane.b32.xlu0 %v1876, 24
        %v1958 = vpop.permute.xlu0 %1957
        %1959 = vrot.lane.b32.xlu0 %v1877, 24
        %v1960 = vpop.permute.xlu0 %1959
        %1961 = vrot.lane.b32.xlu0 %v1878, 24
        %v1962 = vpop.permute.xlu0 %1961
        %1963 = vrot.lane.b32.xlu0 %v1879, 24
        %v1964 = vpop.permute.xlu0 %1963
        %1965 = vrot.lane.b32.xlu0 %v1880, 24
        %v1966 = vpop.permute.xlu0 %1965
        %1967 = vrot.lane.b32.xlu0 %v1881, 24
        %v1968 = vpop.permute.xlu0 %1967
        %1969 = vrot.lane.b32.xlu0 %v1882, 24
        %v1970 = vpop.permute.xlu0 %1969
        %1971 = vrot.lane.b32.xlu0 %v1883, 24
        %v1972 = vpop.permute.xlu0 %1971
        %1973 = vrot.lane.b32.xlu0 %v1884, 24
        %v1974 = vpop.permute.xlu0 %1973
        %1975 = vrot.lane.b32.xlu0 %v1885, 24
        %v1976 = vpop.permute.xlu0 %1975
        %1977 = vrot.lane.b32.xlu0 %v1886, 24
        %v1978 = vpop.permute.xlu0 %1977
        %1979 = vrot.lane.b32.xlu0 %v1887, 24
        %v1980 = vpop.permute.xlu0 %1979
        %1981 = vrot.lane.b32.xlu0 %v1888, 24
        %v1982 = vpop.permute.xlu0 %1981
        %1983 = vrot.lane.b32.xlu0 %v1889, 24
        %v1984 = vpop.permute.xlu0 %1983
        %1985 = vrot.lane.b32.xlu0 %v1890, 24
        %v1986 = vpop.permute.xlu0 %1985
        %1987 = vrot.lane.b32.xlu0 %v1891, 24
        %v1988 = vpop.permute.xlu0 %1987
        %1989 = vrot.lane.b32.xlu0 %v1892, 24
        %v1990 = vpop.permute.xlu0 %1989
        %1991 = vrot.lane.b32.xlu0 %v1893, 24
        %v1992 = vpop.permute.xlu0 %1991
        %1993 = vrot.lane.b32.xlu0 %v1894, 24
        %v1994 = vpop.permute.xlu0 %1993
        %1995 = vrot.lane.b32.xlu0 %v1895, 24
        %v1996 = vpop.permute.xlu0 %1995
        %1997 = vrot.lane.b32.xlu0 %v1896, 24
        %v1998 = vpop.permute.xlu0 %1997
        %1999 = vrot.lane.b32.xlu0 %v1897, 24
        %v2000 = vpop.permute.xlu0 %1999
        %2001 = vrot.lane.b32.xlu0 %v1898, 24
        %v2002 = vpop.permute.xlu0 %2001
        %2003 = vrot.lane.b32.xlu0 %v1899, 24
        %v2004 = vpop.permute.xlu0 %2003
        %2005 = vrot.lane.b32.xlu0 %v1900, 24
        %v2006 = vpop.permute.xlu0 %2005
        %2007 = vrot.lane.b32.xlu0 %v1901, 24
        %v2008 = vpop.permute.xlu0 %2007
        %2009 = vrot.lane.b32.xlu0 %v1902, 24
        %v2010 = vpop.permute.xlu0 %2009
        %vm2047 = vcmask 228544
        %2048 = vst.msk [vmem:[#allocation4] sm:$0xff] %vm2047, %v1940
        %2049 = vst.msk [vmem:[#allocation4 + $0x8] sm:$0xff] %vm2047, %v1942
        %2050 = vst.msk [vmem:[#allocation4 + $0x10] sm:$0xff] %vm2047, %v1944
        %2051 = vst.msk [vmem:[#allocation4 + $0x18] sm:$0xff] %vm2047, %v1946
        %2052 = vst.msk [vmem:[#allocation4 + $0x20] sm:$0xff] %vm2047, %v1948
        %2053 = vst.msk [vmem:[#allocation4 + $0x28] sm:$0xff] %vm2047, %v1950
        %2054 = vst.msk [vmem:[#allocation4 + $0x30] sm:$0xff] %vm2047, %v1952
        %2055 = vst.msk [vmem:[#allocation4 + $0x38] sm:$0xff] %vm2047, %v1954
        %2056 = vst.msk [vmem:[#allocation4 + $0x40] sm:$0xff] %vm2047, %v1956
        %2057 = vst.msk [vmem:[#allocation4 + $0x48] sm:$0xff] %vm2047, %v1958
        %2058 = vst.msk [vmem:[#allocation4 + $0x50] sm:$0xff] %vm2047, %v1960
        %2059 = vst.msk [vmem:[#allocation4 + $0x58] sm:$0xff] %vm2047, %v1962
        %2060 = vst.msk [vmem:[#allocation4 + $0x60] sm:$0xff] %vm2047, %v1964
        %2061 = vst.msk [vmem:[#allocation4 + $0x68] sm:$0xff] %vm2047, %v1966
        %2062 = vst.msk [vmem:[#allocation4 + $0x70] sm:$0xff] %vm2047, %v1968
        %2063 = vst.msk [vmem:[#allocation4 + $0x78] sm:$0xff] %vm2047, %v1970
        %2064 = vst.msk [vmem:[#allocation4 + $0x80] sm:$0xff] %vm2047, %v1972
        %2065 = vst.msk [vmem:[#allocation4 + $0x88] sm:$0xff] %vm2047, %v1974
        %2066 = vst.msk [vmem:[#allocation4 + $0x90] sm:$0xff] %vm2047, %v1976
        %2067 = vst.msk [vmem:[#allocation4 + $0x98] sm:$0xff] %vm2047, %v1978
        %2068 = vst.msk [vmem:[#allocation4 + $0xa0] sm:$0xff] %vm2047, %v1980
        %2069 = vst.msk [vmem:[#allocation4 + $0xa8] sm:$0xff] %vm2047, %v1982
        %2070 = vst.msk [vmem:[#allocation4 + $0xb0] sm:$0xff] %vm2047, %v1984
        %2071 = vst.msk [vmem:[#allocation4 + $0xb8] sm:$0xff] %vm2047, %v1986
        %2072 = vst.msk [vmem:[#allocation4 + $0xc0] sm:$0xff] %vm2047, %v1988
        %2073 = vst.msk [vmem:[#allocation4 + $0xc8] sm:$0xff] %vm2047, %v1990
        %2074 = vst.msk [vmem:[#allocation4 + $0xd0] sm:$0xff] %vm2047, %v1992
        %2075 = vst.msk [vmem:[#allocation4 + $0xd8] sm:$0xff] %vm2047, %v1994
        %2076 = vst.msk [vmem:[#allocation4 + $0xe0] sm:$0xff] %vm2047, %v1996
        %2077 = vst.msk [vmem:[#allocation4 + $0xe8] sm:$0xff] %vm2047, %v1998
        %2078 = vst.msk [vmem:[#allocation4 + $0xf0] sm:$0xff] %vm2047, %v2000
        %2079 = vst.msk [vmem:[#allocation4 + $0xf8] sm:$0xff] %vm2047, %v2002
        %2080 = vst.msk [vmem:[#allocation4 + $0x100] sm:$0xff] %vm2047, %v2004
        %2081 = vst.msk [vmem:[#allocation4 + $0x108] sm:$0xff] %vm2047, %v2006
        %2082 = vst.msk [vmem:[#allocation4 + $0x110] sm:$0xff] %vm2047, %v2008
        %2083 = vst.msk [vmem:[#allocation4 + $0x118] sm:$0xff] %vm2047, %v2010
        %v2084 = vld [vmem:[#allocation2 + $0x25] sm:$0xff]
        %v2085 = vld [vmem:[#allocation2 + $0x2d] sm:$0xff]
        %v2086 = vld [vmem:[#allocation2 + $0x35] sm:$0xff]
        %v2087 = vld [vmem:[#allocation2 + $0x3d] sm:$0xff]
        %v2088 = vld [vmem:[#allocation2 + $0x45] sm:$0xff]
        %v2089 = vld [vmem:[#allocation2 + $0x4d] sm:$0xff]
        %v2090 = vld [vmem:[#allocation2 + $0x55] sm:$0xff]
        %v2091 = vld [vmem:[#allocation2 + $0x5d] sm:$0xff]
        %v2092 = vld [vmem:[#allocation2 + $0x65] sm:$0xff]
        %v2093 = vld [vmem:[#allocation2 + $0x6d] sm:$0xff]
        %v2094 = vld [vmem:[#allocation2 + $0x75] sm:$0xff]
        %v2095 = vld [vmem:[#allocation2 + $0x7d] sm:$0xff]
        %v2096 = vld [vmem:[#allocation2 + $0x85] sm:$0xff]
        %v2097 = vld [vmem:[#allocation2 + $0x8d] sm:$0xff]
        %v2098 = vld [vmem:[#allocation2 + $0x95] sm:$0xff]
        %v2099 = vld [vmem:[#allocation2 + $0x9d] sm:$0xff]
        %v2100 = vld [vmem:[#allocation2 + $0xa5] sm:$0xff]
        %v2101 = vld [vmem:[#allocation2 + $0xad] sm:$0xff]
        %v2102 = vld [vmem:[#allocation2 + $0xb5] sm:$0xff]
        %v2103 = vld [vmem:[#allocation2 + $0xbd] sm:$0xff]
        %v2104 = vld [vmem:[#allocation2 + $0xc5] sm:$0xff]
        %v2105 = vld [vmem:[#allocation2 + $0xcd] sm:$0xff]
        %v2106 = vld [vmem:[#allocation2 + $0xd5] sm:$0xff]
        %v2107 = vld [vmem:[#allocation2 + $0xdd] sm:$0xff]
        %v2108 = vld [vmem:[#allocation2 + $0xe5] sm:$0xff]
        %v2109 = vld [vmem:[#allocation2 + $0xed] sm:$0xff]
        %v2110 = vld [vmem:[#allocation2 + $0xf5] sm:$0xff]
        %v2111 = vld [vmem:[#allocation2 + $0xfd] sm:$0xff]
        %v2112 = vld [vmem:[#allocation2 + $0x105] sm:$0xff]
        %v2113 = vld [vmem:[#allocation2 + $0x10d] sm:$0xff]
        %v2114 = vld [vmem:[#allocation2 + $0x115] sm:$0xff]
        %v2115 = vld [vmem:[#allocation2 + $0x11d] sm:$0xff]
        %v2116 = vld [vmem:[#allocation2 + $0x125] sm:$0xff]
        %v2117 = vld [vmem:[#allocation2 + $0x12d] sm:$0xff]
        %v2118 = vld [vmem:[#allocation2 + $0x135] sm:$0xff]
        %v2119 = vld [vmem:[#allocation2 + $0x13d] sm:$0xff]
        %2156 = vrot.lane.b32.xlu0 %v2084, 28
        %v2157 = vpop.permute.xlu0 %2156
        %2158 = vrot.lane.b32.xlu0 %v2085, 28
        %v2159 = vpop.permute.xlu0 %2158
        %2160 = vrot.lane.b32.xlu0 %v2086, 28
        %v2161 = vpop.permute.xlu0 %2160
        %2162 = vrot.lane.b32.xlu0 %v2087, 28
        %v2163 = vpop.permute.xlu0 %2162
        %2164 = vrot.lane.b32.xlu0 %v2088, 28
        %v2165 = vpop.permute.xlu0 %2164
        %2166 = vrot.lane.b32.xlu0 %v2089, 28
        %v2167 = vpop.permute.xlu0 %2166
        %2168 = vrot.lane.b32.xlu0 %v2090, 28
        %v2169 = vpop.permute.xlu0 %2168
        %2170 = vrot.lane.b32.xlu0 %v2091, 28
        %v2171 = vpop.permute.xlu0 %2170
        %2172 = vrot.lane.b32.xlu0 %v2092, 28
        %v2173 = vpop.permute.xlu0 %2172
        %2174 = vrot.lane.b32.xlu0 %v2093, 28
        %v2175 = vpop.permute.xlu0 %2174
        %2176 = vrot.lane.b32.xlu0 %v2094, 28
        %v2177 = vpop.permute.xlu0 %2176
        %2178 = vrot.lane.b32.xlu0 %v2095, 28
        %v2179 = vpop.permute.xlu0 %2178
        %2180 = vrot.lane.b32.xlu0 %v2096, 28
        %v2181 = vpop.permute.xlu0 %2180
        %2182 = vrot.lane.b32.xlu0 %v2097, 28
        %v2183 = vpop.permute.xlu0 %2182
        %2184 = vrot.lane.b32.xlu0 %v2098, 28
        %v2185 = vpop.permute.xlu0 %2184
        %2186 = vrot.lane.b32.xlu0 %v2099, 28
        %v2187 = vpop.permute.xlu0 %2186
        %2188 = vrot.lane.b32.xlu0 %v2100, 28
        %v2189 = vpop.permute.xlu0 %2188
        %2190 = vrot.lane.b32.xlu0 %v2101, 28
        %v2191 = vpop.permute.xlu0 %2190
        %2192 = vrot.lane.b32.xlu0 %v2102, 28
        %v2193 = vpop.permute.xlu0 %2192
        %2194 = vrot.lane.b32.xlu0 %v2103, 28
        %v2195 = vpop.permute.xlu0 %2194
        %2196 = vrot.lane.b32.xlu0 %v2104, 28
        %v2197 = vpop.permute.xlu0 %2196
        %2198 = vrot.lane.b32.xlu0 %v2105, 28
        %v2199 = vpop.permute.xlu0 %2198
        %2200 = vrot.lane.b32.xlu0 %v2106, 28
        %v2201 = vpop.permute.xlu0 %2200
        %2202 = vrot.lane.b32.xlu0 %v2107, 28
        %v2203 = vpop.permute.xlu0 %2202
        %2204 = vrot.lane.b32.xlu0 %v2108, 28
        %v2205 = vpop.permute.xlu0 %2204
        %2206 = vrot.lane.b32.xlu0 %v2109, 28
        %v2207 = vpop.permute.xlu0 %2206
        %2208 = vrot.lane.b32.xlu0 %v2110, 28
        %v2209 = vpop.permute.xlu0 %2208
        %2210 = vrot.lane.b32.xlu0 %v2111, 28
        %v2211 = vpop.permute.xlu0 %2210
        %2212 = vrot.lane.b32.xlu0 %v2112, 28
        %v2213 = vpop.permute.xlu0 %2212
        %2214 = vrot.lane.b32.xlu0 %v2113, 28
        %v2215 = vpop.permute.xlu0 %2214
        %2216 = vrot.lane.b32.xlu0 %v2114, 28
        %v2217 = vpop.permute.xlu0 %2216
        %2218 = vrot.lane.b32.xlu0 %v2115, 28
        %v2219 = vpop.permute.xlu0 %2218
        %2220 = vrot.lane.b32.xlu0 %v2116, 28
        %v2221 = vpop.permute.xlu0 %2220
        %2222 = vrot.lane.b32.xlu0 %v2117, 28
        %v2223 = vpop.permute.xlu0 %2222
        %2224 = vrot.lane.b32.xlu0 %v2118, 28
        %v2225 = vpop.permute.xlu0 %2224
        %2226 = vrot.lane.b32.xlu0 %v2119, 28
        %v2227 = vpop.permute.xlu0 %2226
        %vm2264 = vcmask 261344
        %2265 = vst.msk [vmem:[#allocation4] sm:$0xff] %vm2264, %v2157
        %2266 = vst.msk [vmem:[#allocation4 + $0x8] sm:$0xff] %vm2264, %v2159
        %2267 = vst.msk [vmem:[#allocation4 + $0x10] sm:$0xff] %vm2264, %v2161
        %2268 = vst.msk [vmem:[#allocation4 + $0x18] sm:$0xff] %vm2264, %v2163
        %2269 = vst.msk [vmem:[#allocation4 + $0x20] sm:$0xff] %vm2264, %v2165
        %2270 = vst.msk [vmem:[#allocation4 + $0x28] sm:$0xff] %vm2264, %v2167
        %2271 = vst.msk [vmem:[#allocation4 + $0x30] sm:$0xff] %vm2264, %v2169
        %2272 = vst.msk [vmem:[#allocation4 + $0x38] sm:$0xff] %vm2264, %v2171
        %2273 = vst.msk [vmem:[#allocation4 + $0x40] sm:$0xff] %vm2264, %v2173
        %2274 = vst.msk [vmem:[#allocation4 + $0x48] sm:$0xff] %vm2264, %v2175
        %2275 = vst.msk [vmem:[#allocation4 + $0x50] sm:$0xff] %vm2264, %v2177
        %2276 = vst.msk [vmem:[#allocation4 + $0x58] sm:$0xff] %vm2264, %v2179
        %2277 = vst.msk [vmem:[#allocation4 + $0x60] sm:$0xff] %vm2264, %v2181
        %2278 = vst.msk [vmem:[#allocation4 + $0x68] sm:$0xff] %vm2264, %v2183
        %2279 = vst.msk [vmem:[#allocation4 + $0x70] sm:$0xff] %vm2264, %v2185
        %2280 = vst.msk [vmem:[#allocation4 + $0x78] sm:$0xff] %vm2264, %v2187
        %2281 = vst.msk [vmem:[#allocation4 + $0x80] sm:$0xff] %vm2264, %v2189
        %2282 = vst.msk [vmem:[#allocation4 + $0x88] sm:$0xff] %vm2264, %v2191
        %2283 = vst.msk [vmem:[#allocation4 + $0x90] sm:$0xff] %vm2264, %v2193
        %2284 = vst.msk [vmem:[#allocation4 + $0x98] sm:$0xff] %vm2264, %v2195
        %2285 = vst.msk [vmem:[#allocation4 + $0xa0] sm:$0xff] %vm2264, %v2197
        %2286 = vst.msk [vmem:[#allocation4 + $0xa8] sm:$0xff] %vm2264, %v2199
        %2287 = vst.msk [vmem:[#allocation4 + $0xb0] sm:$0xff] %vm2264, %v2201
        %2288 = vst.msk [vmem:[#allocation4 + $0xb8] sm:$0xff] %vm2264, %v2203
        %2289 = vst.msk [vmem:[#allocation4 + $0xc0] sm:$0xff] %vm2264, %v2205
        %2290 = vst.msk [vmem:[#allocation4 + $0xc8] sm:$0xff] %vm2264, %v2207
        %2291 = vst.msk [vmem:[#allocation4 + $0xd0] sm:$0xff] %vm2264, %v2209
        %2292 = vst.msk [vmem:[#allocation4 + $0xd8] sm:$0xff] %vm2264, %v2211
        %2293 = vst.msk [vmem:[#allocation4 + $0xe0] sm:$0xff] %vm2264, %v2213
        %2294 = vst.msk [vmem:[#allocation4 + $0xe8] sm:$0xff] %vm2264, %v2215
        %2295 = vst.msk [vmem:[#allocation4 + $0xf0] sm:$0xff] %vm2264, %v2217
        %2296 = vst.msk [vmem:[#allocation4 + $0xf8] sm:$0xff] %vm2264, %v2219
        %2297 = vst.msk [vmem:[#allocation4 + $0x100] sm:$0xff] %vm2264, %v2221
        %2298 = vst.msk [vmem:[#allocation4 + $0x108] sm:$0xff] %vm2264, %v2223
        %2299 = vst.msk [vmem:[#allocation4 + $0x110] sm:$0xff] %vm2264, %v2225
        %2300 = vst.msk [vmem:[#allocation4 + $0x118] sm:$0xff] %vm2264, %v2227
        %v2301 = vld [vmem:[#allocation2 + $0x26] sm:$0xff]
        %v2302 = vld [vmem:[#allocation2 + $0x2e] sm:$0xff]
        %v2303 = vld [vmem:[#allocation2 + $0x36] sm:$0xff]
        %v2304 = vld [vmem:[#allocation2 + $0x3e] sm:$0xff]
        %v2305 = vld [vmem:[#allocation2 + $0x46] sm:$0xff]
        %v2306 = vld [vmem:[#allocation2 + $0x4e] sm:$0xff]
        %v2307 = vld [vmem:[#allocation2 + $0x56] sm:$0xff]
        %v2308 = vld [vmem:[#allocation2 + $0x5e] sm:$0xff]
        %v2309 = vld [vmem:[#allocation2 + $0x66] sm:$0xff]
        %v2310 = vld [vmem:[#allocation2 + $0x6e] sm:$0xff]
        %v2311 = vld [vmem:[#allocation2 + $0x76] sm:$0xff]
        %v2312 = vld [vmem:[#allocation2 + $0x7e] sm:$0xff]
        %v2313 = vld [vmem:[#allocation2 + $0x86] sm:$0xff]
        %v2314 = vld [vmem:[#allocation2 + $0x8e] sm:$0xff]
        %v2315 = vld [vmem:[#allocation2 + $0x96] sm:$0xff]
        %v2316 = vld [vmem:[#allocation2 + $0x9e] sm:$0xff]
        %v2317 = vld [vmem:[#allocation2 + $0xa6] sm:$0xff]
        %v2318 = vld [vmem:[#allocation2 + $0xae] sm:$0xff]
        %v2319 = vld [vmem:[#allocation2 + $0xb6] sm:$0xff]
        %v2320 = vld [vmem:[#allocation2 + $0xbe] sm:$0xff]
        %v2321 = vld [vmem:[#allocation2 + $0xc6] sm:$0xff]
        %v2322 = vld [vmem:[#allocation2 + $0xce] sm:$0xff]
        %v2323 = vld [vmem:[#allocation2 + $0xd6] sm:$0xff]
        %v2324 = vld [vmem:[#allocation2 + $0xde] sm:$0xff]
        %v2325 = vld [vmem:[#allocation2 + $0xe6] sm:$0xff]
        %v2326 = vld [vmem:[#allocation2 + $0xee] sm:$0xff]
        %v2327 = vld [vmem:[#allocation2 + $0xf6] sm:$0xff]
        %v2328 = vld [vmem:[#allocation2 + $0xfe] sm:$0xff]
        %v2329 = vld [vmem:[#allocation2 + $0x106] sm:$0xff]
        %v2330 = vld [vmem:[#allocation2 + $0x10e] sm:$0xff]
        %v2331 = vld [vmem:[#allocation2 + $0x116] sm:$0xff]
        %v2332 = vld [vmem:[#allocation2 + $0x11e] sm:$0xff]
        %v2333 = vld [vmem:[#allocation2 + $0x126] sm:$0xff]
        %v2334 = vld [vmem:[#allocation2 + $0x12e] sm:$0xff]
        %v2335 = vld [vmem:[#allocation2 + $0x136] sm:$0xff]
        %v2336 = vld [vmem:[#allocation2 + $0x13e] sm:$0xff]
        %2373 = vrot.lane.b32.xlu0 %v2301, 32
        %v2374 = vpop.permute.xlu0 %2373
        %2375 = vrot.lane.b32.xlu0 %v2302, 32
        %v2376 = vpop.permute.xlu0 %2375
        %2377 = vrot.lane.b32.xlu0 %v2303, 32
        %v2378 = vpop.permute.xlu0 %2377
        %2379 = vrot.lane.b32.xlu0 %v2304, 32
        %v2380 = vpop.permute.xlu0 %2379
        %2381 = vrot.lane.b32.xlu0 %v2305, 32
        %v2382 = vpop.permute.xlu0 %2381
        %2383 = vrot.lane.b32.xlu0 %v2306, 32
        %v2384 = vpop.permute.xlu0 %2383
        %2385 = vrot.lane.b32.xlu0 %v2307, 32
        %v2386 = vpop.permute.xlu0 %2385
        %2387 = vrot.lane.b32.xlu0 %v2308, 32
        %v2388 = vpop.permute.xlu0 %2387
        %2389 = vrot.lane.b32.xlu0 %v2309, 32
        %v2390 = vpop.permute.xlu0 %2389
        %2391 = vrot.lane.b32.xlu0 %v2310, 32
        %v2392 = vpop.permute.xlu0 %2391
        %2393 = vrot.lane.b32.xlu0 %v2311, 32
        %v2394 = vpop.permute.xlu0 %2393
        %2395 = vrot.lane.b32.xlu0 %v2312, 32
        %v2396 = vpop.permute.xlu0 %2395
        %2397 = vrot.lane.b32.xlu0 %v2313, 32
        %v2398 = vpop.permute.xlu0 %2397
        %2399 = vrot.lane.b32.xlu0 %v2314, 32
        %v2400 = vpop.permute.xlu0 %2399
        %2401 = vrot.lane.b32.xlu0 %v2315, 32
        %v2402 = vpop.permute.xlu0 %2401
        %2403 = vrot.lane.b32.xlu0 %v2316, 32
        %v2404 = vpop.permute.xlu0 %2403
        %2405 = vrot.lane.b32.xlu0 %v2317, 32
        %v2406 = vpop.permute.xlu0 %2405
        %2407 = vrot.lane.b32.xlu0 %v2318, 32
        %v2408 = vpop.permute.xlu0 %2407
        %2409 = vrot.lane.b32.xlu0 %v2319, 32
        %v2410 = vpop.permute.xlu0 %2409
        %2411 = vrot.lane.b32.xlu0 %v2320, 32
        %v2412 = vpop.permute.xlu0 %2411
        %2413 = vrot.lane.b32.xlu0 %v2321, 32
        %v2414 = vpop.permute.xlu0 %2413
        %2415 = vrot.lane.b32.xlu0 %v2322, 32
        %v2416 = vpop.permute.xlu0 %2415
        %2417 = vrot.lane.b32.xlu0 %v2323, 32
        %v2418 = vpop.permute.xlu0 %2417
        %2419 = vrot.lane.b32.xlu0 %v2324, 32
        %v2420 = vpop.permute.xlu0 %2419
        %2421 = vrot.lane.b32.xlu0 %v2325, 32
        %v2422 = vpop.permute.xlu0 %2421
        %2423 = vrot.lane.b32.xlu0 %v2326, 32
        %v2424 = vpop.permute.xlu0 %2423
        %2425 = vrot.lane.b32.xlu0 %v2327, 32
        %v2426 = vpop.permute.xlu0 %2425
        %2427 = vrot.lane.b32.xlu0 %v2328, 32
        %v2428 = vpop.permute.xlu0 %2427
        %2429 = vrot.lane.b32.xlu0 %v2329, 32
        %v2430 = vpop.permute.xlu0 %2429
        %2431 = vrot.lane.b32.xlu0 %v2330, 32
        %v2432 = vpop.permute.xlu0 %2431
        %2433 = vrot.lane.b32.xlu0 %v2331, 32
        %v2434 = vpop.permute.xlu0 %2433
        %2435 = vrot.lane.b32.xlu0 %v2332, 32
        %v2436 = vpop.permute.xlu0 %2435
        %2437 = vrot.lane.b32.xlu0 %v2333, 32
        %v2438 = vpop.permute.xlu0 %2437
        %2439 = vrot.lane.b32.xlu0 %v2334, 32
        %v2440 = vpop.permute.xlu0 %2439
        %2441 = vrot.lane.b32.xlu0 %v2335, 32
        %v2442 = vpop.permute.xlu0 %2441
        %2443 = vrot.lane.b32.xlu0 %v2336, 32
        %v2444 = vpop.permute.xlu0 %2443
        %vm2481 = vcmask 294144
        %2482 = vst.msk [vmem:[#allocation4] sm:$0xff] %vm2481, %v2374
        %2483 = vst.msk [vmem:[#allocation4 + $0x8] sm:$0xff] %vm2481, %v2376
        %2484 = vst.msk [vmem:[#allocation4 + $0x10] sm:$0xff] %vm2481, %v2378
        %2485 = vst.msk [vmem:[#allocation4 + $0x18] sm:$0xff] %vm2481, %v2380
        %2486 = vst.msk [vmem:[#allocation4 + $0x20] sm:$0xff] %vm2481, %v2382
        %2487 = vst.msk [vmem:[#allocation4 + $0x28] sm:$0xff] %vm2481, %v2384
        %2488 = vst.msk [vmem:[#allocation4 + $0x30] sm:$0xff] %vm2481, %v2386
        %2489 = vst.msk [vmem:[#allocation4 + $0x38] sm:$0xff] %vm2481, %v2388
        %2490 = vst.msk [vmem:[#allocation4 + $0x40] sm:$0xff] %vm2481, %v2390
        %2491 = vst.msk [vmem:[#allocation4 + $0x48] sm:$0xff] %vm2481, %v2392
        %2492 = vst.msk [vmem:[#allocation4 + $0x50] sm:$0xff] %vm2481, %v2394
        %2493 = vst.msk [vmem:[#allocation4 + $0x58] sm:$0xff] %vm2481, %v2396
        %2494 = vst.msk [vmem:[#allocation4 + $0x60] sm:$0xff] %vm2481, %v2398
        %2495 = vst.msk [vmem:[#allocation4 + $0x68] sm:$0xff] %vm2481, %v2400
        %2496 = vst.msk [vmem:[#allocation4 + $0x70] sm:$0xff] %vm2481, %v2402
        %2497 = vst.msk [vmem:[#allocation4 + $0x78] sm:$0xff] %vm2481, %v2404
        %2498 = vst.msk [vmem:[#allocation4 + $0x80] sm:$0xff] %vm2481, %v2406
        %2499 = vst.msk [vmem:[#allocation4 + $0x88] sm:$0xff] %vm2481, %v2408
        %2500 = vst.msk [vmem:[#allocation4 + $0x90] sm:$0xff] %vm2481, %v2410
        %2501 = vst.msk [vmem:[#allocation4 + $0x98] sm:$0xff] %vm2481, %v2412
        %2502 = vst.msk [vmem:[#allocation4 + $0xa0] sm:$0xff] %vm2481, %v2414
        %2503 = vst.msk [vmem:[#allocation4 + $0xa8] sm:$0xff] %vm2481, %v2416
        %2504 = vst.msk [vmem:[#allocation4 + $0xb0] sm:$0xff] %vm2481, %v2418
        %2505 = vst.msk [vmem:[#allocation4 + $0xb8] sm:$0xff] %vm2481, %v2420
        %2506 = vst.msk [vmem:[#allocation4 + $0xc0] sm:$0xff] %vm2481, %v2422
        %2507 = vst.msk [vmem:[#allocation4 + $0xc8] sm:$0xff] %vm2481, %v2424
        %2508 = vst.msk [vmem:[#allocation4 + $0xd0] sm:$0xff] %vm2481, %v2426
        %2509 = vst.msk [vmem:[#allocation4 + $0xd8] sm:$0xff] %vm2481, %v2428
        %2510 = vst.msk [vmem:[#allocation4 + $0xe0] sm:$0xff] %vm2481, %v2430
        %2511 = vst.msk [vmem:[#allocation4 + $0xe8] sm:$0xff] %vm2481, %v2432
        %2512 = vst.msk [vmem:[#allocation4 + $0xf0] sm:$0xff] %vm2481, %v2434
        %2513 = vst.msk [vmem:[#allocation4 + $0xf8] sm:$0xff] %vm2481, %v2436
        %2514 = vst.msk [vmem:[#allocation4 + $0x100] sm:$0xff] %vm2481, %v2438
        %2515 = vst.msk [vmem:[#allocation4 + $0x108] sm:$0xff] %vm2481, %v2440
        %2516 = vst.msk [vmem:[#allocation4 + $0x110] sm:$0xff] %vm2481, %v2442
        %2517 = vst.msk [vmem:[#allocation4 + $0x118] sm:$0xff] %vm2481, %v2444
        %v2518 = vld [vmem:[#allocation4] sm:$0xff]
        %v2519 = vld [vmem:[#allocation4 + $0x8] sm:$0xff]
        %v2520 = vld [vmem:[#allocation4 + $0x10] sm:$0xff]
        %v2521 = vld [vmem:[#allocation4 + $0x18] sm:$0xff]
        %v2522 = vld [vmem:[#allocation4 + $0x20] sm:$0xff]
        %v2523 = vld [vmem:[#allocation4 + $0x28] sm:$0xff]
        %v2524 = vld [vmem:[#allocation4 + $0x30] sm:$0xff]
        %v2525 = vld [vmem:[#allocation4 + $0x38] sm:$0xff]
        %v2526 = vld [vmem:[#allocation4 + $0x40] sm:$0xff]
        %v2527 = vld [vmem:[#allocation4 + $0x48] sm:$0xff]
        %v2528 = vld [vmem:[#allocation4 + $0x50] sm:$0xff]
        %v2529 = vld [vmem:[#allocation4 + $0x58] sm:$0xff]
        %v2530 = vld [vmem:[#allocation4 + $0x60] sm:$0xff]
        %v2531 = vld [vmem:[#allocation4 + $0x68] sm:$0xff]
        %v2532 = vld [vmem:[#allocation4 + $0x70] sm:$0xff]
        %v2533 = vld [vmem:[#allocation4 + $0x78] sm:$0xff]
        %v2534 = vld [vmem:[#allocation4 + $0x80] sm:$0xff]
        %v2535 = vld [vmem:[#allocation4 + $0x88] sm:$0xff]
        %v2536 = vld [vmem:[#allocation4 + $0x90] sm:$0xff]
        %v2537 = vld [vmem:[#allocation4 + $0x98] sm:$0xff]
        %v2538 = vld [vmem:[#allocation4 + $0xa0] sm:$0xff]
        %v2539 = vld [vmem:[#allocation4 + $0xa8] sm:$0xff]
        %v2540 = vld [vmem:[#allocation4 + $0xb0] sm:$0xff]
        %v2541 = vld [vmem:[#allocation4 + $0xb8] sm:$0xff]
        %v2542 = vld [vmem:[#allocation4 + $0xc0] sm:$0xff]
        %v2543 = vld [vmem:[#allocation4 + $0xc8] sm:$0xff]
        %v2544 = vld [vmem:[#allocation4 + $0xd0] sm:$0xff]
        %v2545 = vld [vmem:[#allocation4 + $0xd8] sm:$0xff]
        %v2546 = vld [vmem:[#allocation4 + $0xe0] sm:$0xff]
        %v2547 = vld [vmem:[#allocation4 + $0xe8] sm:$0xff]
        %v2548 = vld [vmem:[#allocation4 + $0xf0] sm:$0xff]
        %v2549 = vld [vmem:[#allocation4 + $0xf8] sm:$0xff]
        %v2550 = vld [vmem:[#allocation4 + $0x100] sm:$0xff]
        %v2551 = vld [vmem:[#allocation4 + $0x108] sm:$0xff]
        %v2552 = vld [vmem:[#allocation4 + $0x110] sm:$0xff]
        %v2553 = vld [vmem:[#allocation4 + $0x118] sm:$0xff]
        %v2554 = vld [vmem:[#allocation13] sm:$0xff]
        %v2555 = vld [vmem:[#allocation13 + $0x8] sm:$0xff]
        %v2556 = vld [vmem:[#allocation13 + $0x10] sm:$0xff]
        %v2557 = vld [vmem:[#allocation13 + $0x18] sm:$0xff]
        %v2558 = vld [vmem:[#allocation13 + $0x20] sm:$0xf]
        %v2559 = vstv %s300
        %vm2560 = vcmask 293888
        %v2562 = vsel %vm2560, %v2518, 0
        %v2565 = vsel %vm2560, %v2519, 0
        %v2568 = vsel %vm2560, %v2520, 0
        %v2571 = vsel %vm2560, %v2521, 0
        %v2574 = vsel %vm2560, %v2522, 0
        %v2577 = vsel %vm2560, %v2523, 0
        %v2580 = vsel %vm2560, %v2524, 0
        %v2583 = vsel %vm2560, %v2525, 0
        %v2586 = vsel %vm2560, %v2526, 0
        %v2589 = vsel %vm2560, %v2527, 0
        %v2592 = vsel %vm2560, %v2528, 0
        %v2595 = vsel %vm2560, %v2529, 0
        %v2598 = vsel %vm2560, %v2530, 0
        %v2601 = vsel %vm2560, %v2531, 0
        %v2604 = vsel %vm2560, %v2532, 0
        %v2607 = vsel %vm2560, %v2533, 0
        %v2610 = vsel %vm2560, %v2534, 0
        %v2613 = vsel %vm2560, %v2535, 0
        %v2616 = vsel %vm2560, %v2536, 0
        %v2619 = vsel %vm2560, %v2537, 0
        %v2622 = vsel %vm2560, %v2538, 0
        %v2625 = vsel %vm2560, %v2539, 0
        %v2628 = vsel %vm2560, %v2540, 0
        %v2631 = vsel %vm2560, %v2541, 0
        %v2634 = vsel %vm2560, %v2542, 0
        %v2637 = vsel %vm2560, %v2543, 0
        %v2640 = vsel %vm2560, %v2544, 0
        %v2643 = vsel %vm2560, %v2545, 0
        %v2646 = vsel %vm2560, %v2546, 0
        %v2649 = vsel %vm2560, %v2547, 0
        %v2652 = vsel %vm2560, %v2548, 0
        %v2655 = vsel %vm2560, %v2549, 0
        %v2658 = vsel %vm2560, %v2550, 0
        %v2661 = vsel %vm2560, %v2551, 0
        %v2664 = vsel %vm2560, %v2552, 0
        %v2667 = vsel %vm2560, %v2553, 0
        %vm2669 = vcmask 1043456
        %v2671 = vsel %vm2669, %v2558, 0
        %2673 = vmatprep.subr.mxu0 0.0
        %2674 = vmatpush1.msra.mxu0 %v2554
        %2675 = vmatprep.subr.mxu0 0.0
        %2676 = vmatpush1.msra.mxu0 %v2555
        %2677 = vmatprep.subr.mxu0 0.0
        %2678 = vmatpush1.msra.mxu0 %v2556
        %2679 = vmatprep.subr.mxu0 0.0
        %2680 = vmatpush1.msra.mxu0 %v2557
        %2681 = vmatprep.subr.mxu0 0.0
        %2682 = vmatpush1.msra.mxu0 %v2671
        %2683 = vmatprep.subr.mxu0 0.0
        %2684 = vmatpush1.msra.mxu0 0.0
        %2685 = vmatprep.subr.mxu0 0.0
        %2686 = vmatpush1.msra.mxu0 0.0
        %2687 = vmatprep.subr.mxu0 0.0
        %2688 = vmatpush1.msra.mxu0 0.0
        %2689 = vmatprep.subr.mxu0 0.0
        %2690 = vmatpush1.msra.mxu0 0.0
        %2691 = vmatprep.subr.mxu0 0.0
        %2692 = vmatpush1.msra.mxu0 0.0
        %2693 = vmatprep.subr.mxu0 0.0
        %2694 = vmatpush1.msra.mxu0 0.0
        %2695 = vmatprep.subr.mxu0 0.0
        %2696 = vmatpush1.msra.mxu0 0.0
        %2697 = vmatprep.subr.mxu0 0.0
        %2698 = vmatpush1.msra.mxu0 0.0
        %2699 = vmatprep.subr.mxu0 0.0
        %2700 = vmatpush1.msra.mxu0 0.0
        %2701 = vmatprep.subr.mxu0 0.0
        %2702 = vmatpush1.msra.mxu0 0.0
        %2703 = vmatprep.subr.mxu0 0.0
        %2704 = vmatpush1.msra.mxu0 0.0
        %2705 = vmatprep.subr.mxu0 0.0
        %2706 = vmatpush1.msra.mxu0 0.0
        %2707 = vmatprep.subr.mxu0 0.0
        %2708 = vmatpush1.msra.mxu0 0.0
        %2709 = vmatprep.subr.mxu0 0.0
        %2710 = vmatpush1.msra.mxu0 0.0
        %2711 = vmatprep.subr.mxu0 0.0
        %2712 = vmatpush1.msra.mxu0 0.0
        %2713 = vmatprep.subr.mxu0 0.0
        %2714 = vmatpush1.msra.mxu0 0.0
        %2715 = vmatprep.subr.mxu0 0.0
        %2716 = vmatpush1.msra.mxu0 0.0
        %2717 = vmatprep.subr.mxu0 0.0
        %2718 = vmatpush1.msra.mxu0 0.0
        %2719 = vmatprep.subr.mxu0 0.0
        %2720 = vmatpush1.msra.mxu0 0.0
        %2721 = vmatprep.subr.mxu0 0.0
        %2722 = vmatpush1.msra.mxu0 0.0
        %2723 = vmatprep.subr.mxu0 0.0
        %2724 = vmatpush1.msra.mxu0 0.0
        %2725 = vmatprep.subr.mxu0 0.0
        %2726 = vmatpush1.msra.mxu0 0.0
        %2727 = vmatprep.subr.mxu0 0.0
        %2728 = vmatpush1.msra.mxu0 0.0
        %2729 = vmatprep.subr.mxu0 0.0
        %2730 = vmatpush1.msra.mxu0 0.0
        %2731 = vmatprep.subr.mxu0 0.0
        %2732 = vmatpush1.msra.mxu0 0.0
        %2733 = vmatprep.subr.mxu0 0.0
        %2734 = vmatpush1.msra.mxu0 0.0
        %2735 = vmatprep.subr.mxu0 0.0
        %2736 = vmatpush1.msra.mxu0 0.0
        %2737 = vmatprep.mubr.f32.mxu0 0.0
        %2738 = vmatmul.mubr.f32.gmra.mrb[0].mxu0 %v2562
        %v2739 = vpop.f32.mrb[0].mxu0
        %v2740 = vadd.f32 %v2559, %v2739
        %v2741 = vpop.f32.mrb[0].mxu0
        %2742 = vmatprep.mubr.f32.mxu0 0.0
        %2743 = vmatmul.mubr.f32.gmra.mrb[0].mxu0 %v2565
        %v2744 = vpop.f32.mrb[0].mxu0
        %v2745 = vadd.f32 %v2559, %v2744
        %v2746 = vpop.f32.mrb[0].mxu0
        %2747 = vmatprep.mubr.f32.mxu0 0.0
        %2748 = vmatmul.mubr.f32.gmra.mrb[0].mxu0 %v2568
        %v2749 = vpop.f32.mrb[0].mxu0
        %v2750 = vadd.f32 %v2559, %v2749
        %v2751 = vpop.f32.mrb[0].mxu0
        %2752 = vmatprep.mubr.f32.mxu0 0.0
        %2753 = vmatmul.mubr.f32.gmra.mrb[0].mxu0 %v2571
        %v2754 = vpop.f32.mrb[0].mxu0
        %v2755 = vadd.f32 %v2559, %v2754
        %v2756 = vpop.f32.mrb[0].mxu0
        %2757 = vmatprep.mubr.f32.mxu0 0.0
        %2758 = vmatmul.mubr.f32.gmra.mrb[0].mxu0 %v2574
        %v2759 = vpop.f32.mrb[0].mxu0
        %v2760 = vadd.f32 %v2559, %v2759
        %v2761 = vpop.f32.mrb[0].mxu0
        %2762 = vmatprep.mubr.f32.mxu0 0.0
        %2763 = vmatmul.mubr.f32.gmra.mrb[0].mxu0 %v2577
        %v2764 = vpop.f32.mrb[0].mxu0
        %v2765 = vadd.f32 %v2559, %v2764
        %v2766 = vpop.f32.mrb[0].mxu0
        %2767 = vmatprep.mubr.f32.mxu0 0.0
        %2768 = vmatmul.mubr.f32.gmra.mrb[0].mxu0 %v2580
        %v2769 = vpop.f32.mrb[0].mxu0
        %v2770 = vadd.f32 %v2559, %v2769
        %v2771 = vpop.f32.mrb[0].mxu0
        %2772 = vmatprep.mubr.f32.mxu0 0.0
        %2773 = vmatmul.mubr.f32.gmra.mrb[0].mxu0 %v2583
        %v2774 = vpop.f32.mrb[0].mxu0
        %v2775 = vadd.f32 %v2559, %v2774
        %v2776 = vpop.f32.mrb[0].mxu0
        %2777 = vmatprep.mubr.f32.mxu0 0.0
        %2778 = vmatmul.mubr.f32.gmra.mrb[0].mxu0 %v2586
        %v2779 = vpop.f32.mrb[0].mxu0
        %v2780 = vadd.f32 %v2559, %v2779
        %v2781 = vpop.f32.mrb[0].mxu0
        %2782 = vmatprep.mubr.f32.mxu0 0.0
        %2783 = vmatmul.mubr.f32.gmra.mrb[0].mxu0 %v2589
        %v2784 = vpop.f32.mrb[0].mxu0
        %v2785 = vadd.f32 %v2559, %v2784
        %v2786 = vpop.f32.mrb[0].mxu0
        %2787 = vmatprep.mubr.f32.mxu0 0.0
        %2788 = vmatmul.mubr.f32.gmra.mrb[0].mxu0 %v2592
        %v2789 = vpop.f32.mrb[0].mxu0
        %v2790 = vadd.f32 %v2559, %v2789
        %v2791 = vpop.f32.mrb[0].mxu0
        %2792 = vmatprep.mubr.f32.mxu0 0.0
        %2793 = vmatmul.mubr.f32.gmra.mrb[0].mxu0 %v2595
        %v2794 = vpop.f32.mrb[0].mxu0
        %v2795 = vadd.f32 %v2559, %v2794
        %v2796 = vpop.f32.mrb[0].mxu0
        %2797 = vmatprep.mubr.f32.mxu0 0.0
        %2798 = vmatmul.mubr.f32.gmra.mrb[0].mxu0 %v2598
        %v2799 = vpop.f32.mrb[0].mxu0
        %v2800 = vadd.f32 %v2559, %v2799
        %v2801 = vpop.f32.mrb[0].mxu0
        %2802 = vmatprep.mubr.f32.mxu0 0.0
        %2803 = vmatmul.mubr.f32.gmra.mrb[0].mxu0 %v2601
        %v2804 = vpop.f32.mrb[0].mxu0
        %v2805 = vadd.f32 %v2559, %v2804
        %v2806 = vpop.f32.mrb[0].mxu0
        %2807 = vmatprep.mubr.f32.mxu0 0.0
        %2808 = vmatmul.mubr.f32.gmra.mrb[0].mxu0 %v2604
        %v2809 = vpop.f32.mrb[0].mxu0
        %v2810 = vadd.f32 %v2559, %v2809
        %v2811 = vpop.f32.mrb[0].mxu0
        %2812 = vmatprep.mubr.f32.mxu0 0.0
        %2813 = vmatmul.mubr.f32.gmra.mrb[0].mxu0 %v2607
        %v2814 = vpop.f32.mrb[0].mxu0
        %v2815 = vadd.f32 %v2559, %v2814
        %v2816 = vpop.f32.mrb[0].mxu0
        %2817 = vmatprep.mubr.f32.mxu0 0.0
        %2818 = vmatmul.mubr.f32.gmra.mrb[0].mxu0 %v2610
        %v2819 = vpop.f32.mrb[0].mxu0
        %v2820 = vadd.f32 %v2559, %v2819
        %v2821 = vpop.f32.mrb[0].mxu0
        %2822 = vmatprep.mubr.f32.mxu0 0.0
        %2823 = vmatmul.mubr.f32.gmra.mrb[0].mxu0 %v2613
        %v2824 = vpop.f32.mrb[0].mxu0
        %v2825 = vadd.f32 %v2559, %v2824
        %v2826 = vpop.f32.mrb[0].mxu0
        %2827 = vmatprep.mubr.f32.mxu0 0.0
        %2828 = vmatmul.mubr.f32.gmra.mrb[0].mxu0 %v2616
        %v2829 = vpop.f32.mrb[0].mxu0
        %v2830 = vadd.f32 %v2559, %v2829
        %v2831 = vpop.f32.mrb[0].mxu0
        %2832 = vmatprep.mubr.f32.mxu0 0.0
        %2833 = vmatmul.mubr.f32.gmra.mrb[0].mxu0 %v2619
        %v2834 = vpop.f32.mrb[0].mxu0
        %v2835 = vadd.f32 %v2559, %v2834
        %v2836 = vpop.f32.mrb[0].mxu0
        %2837 = vmatprep.mubr.f32.mxu0 0.0
        %2838 = vmatmul.mubr.f32.gmra.mrb[0].mxu0 %v2622
        %v2839 = vpop.f32.mrb[0].mxu0
        %v2840 = vadd.f32 %v2559, %v2839
        %v2841 = vpop.f32.mrb[0].mxu0
        %2842 = vmatprep.mubr.f32.mxu0 0.0
        %2843 = vmatmul.mubr.f32.gmra.mrb[0].mxu0 %v2625
        %v2844 = vpop.f32.mrb[0].mxu0
        %v2845 = vadd.f32 %v2559, %v2844
        %v2846 = vpop.f32.mrb[0].mxu0
        %2847 = vmatprep.mubr.f32.mxu0 0.0
        %2848 = vmatmul.mubr.f32.gmra.mrb[0].mxu0 %v2628
        %v2849 = vpop.f32.mrb[0].mxu0
        %v2850 = vadd.f32 %v2559, %v2849
        %v2851 = vpop.f32.mrb[0].mxu0
        %2852 = vmatprep.mubr.f32.mxu0 0.0
        %2853 = vmatmul.mubr.f32.gmra.mrb[0].mxu0 %v2631
        %v2854 = vpop.f32.mrb[0].mxu0
        %v2855 = vadd.f32 %v2559, %v2854
        %v2856 = vpop.f32.mrb[0].mxu0
        %2857 = vmatprep.mubr.f32.mxu0 0.0
        %2858 = vmatmul.mubr.f32.gmra.mrb[0].mxu0 %v2634
        %v2859 = vpop.f32.mrb[0].mxu0
        %v2860 = vadd.f32 %v2559, %v2859
        %v2861 = vpop.f32.mrb[0].mxu0
        %2862 = vmatprep.mubr.f32.mxu0 0.0
        %2863 = vmatmul.mubr.f32.gmra.mrb[0].mxu0 %v2637
        %v2864 = vpop.f32.mrb[0].mxu0
        %v2865 = vadd.f32 %v2559, %v2864
        %v2866 = vpop.f32.mrb[0].mxu0
        %2867 = vmatprep.mubr.f32.mxu0 0.0
        %2868 = vmatmul.mubr.f32.gmra.mrb[0].mxu0 %v2640
        %v2869 = vpop.f32.mrb[0].mxu0
        %v2870 = vadd.f32 %v2559, %v2869
        %v2871 = vpop.f32.mrb[0].mxu0
        %2872 = vmatprep.mubr.f32.mxu0 0.0
        %2873 = vmatmul.mubr.f32.gmra.mrb[0].mxu0 %v2643
        %v2874 = vpop.f32.mrb[0].mxu0
        %v2875 = vadd.f32 %v2559, %v2874
        %v2876 = vpop.f32.mrb[0].mxu0
        %2877 = vmatprep.mubr.f32.mxu0 0.0
        %2878 = vmatmul.mubr.f32.gmra.mrb[0].mxu0 %v2646
        %v2879 = vpop.f32.mrb[0].mxu0
        %v2880 = vadd.f32 %v2559, %v2879
        %v2881 = vpop.f32.mrb[0].mxu0
        %2882 = vmatprep.mubr.f32.mxu0 0.0
        %2883 = vmatmul.mubr.f32.gmra.mrb[0].mxu0 %v2649
        %v2884 = vpop.f32.mrb[0].mxu0
        %v2885 = vadd.f32 %v2559, %v2884
        %v2886 = vpop.f32.mrb[0].mxu0
        %2887 = vmatprep.mubr.f32.mxu0 0.0
        %2888 = vmatmul.mubr.f32.gmra.mrb[0].mxu0 %v2652
        %v2889 = vpop.f32.mrb[0].mxu0
        %v2890 = vadd.f32 %v2559, %v2889
        %v2891 = vpop.f32.mrb[0].mxu0
        %2892 = vmatprep.mubr.f32.mxu0 0.0
        %2893 = vmatmul.mubr.f32.gmra.mrb[0].mxu0 %v2655
        %v2894 = vpop.f32.mrb[0].mxu0
        %v2895 = vadd.f32 %v2559, %v2894
        %v2896 = vpop.f32.mrb[0].mxu0
        %2897 = vmatprep.mubr.f32.mxu0 0.0
        %2898 = vmatmul.mubr.f32.gmra.mrb[0].mxu0 %v2658
        %v2899 = vpop.f32.mrb[0].mxu0
        %v2900 = vadd.f32 %v2559, %v2899
        %v2901 = vpop.f32.mrb[0].mxu0
        %2902 = vmatprep.mubr.f32.mxu0 0.0
        %2903 = vmatmul.mubr.f32.gmra.mrb[0].mxu0 %v2661
        %v2904 = vpop.f32.mrb[0].mxu0
        %v2905 = vadd.f32 %v2559, %v2904
        %v2906 = vpop.f32.mrb[0].mxu0
        %2907 = vmatprep.mubr.f32.mxu0 0.0
        %2908 = vmatmul.mubr.f32.gmra.mrb[0].mxu0 %v2664
        %v2909 = vpop.f32.mrb[0].mxu0
        %v2910 = vadd.f32 %v2559, %v2909
        %v2911 = vpop.f32.mrb[0].mxu0
        %2912 = vmatprep.mubr.f32.mxu0 0.0
        %2913 = vmatmul.mubr.f32.gmra.mrb[0].mxu0 %v2667
        %v2914 = vpop.f32.mrb[0].mxu0
        %v2915 = vadd.f32 %v2559, %v2914
        %v2916 = vpop.f32.mrb[0].mxu0
        %2917 = vdwg.mxu0
        %v2918 = vmax.f32 %v2740, 0.0
        %v2919 = vmax.f32 %v2745, 0.0
        %v2920 = vmax.f32 %v2750, 0.0
        %v2921 = vmax.f32 %v2755, 0.0
        %v2922 = vmax.f32 %v2760, 0.0
        %v2923 = vmax.f32 %v2765, 0.0
        %v2924 = vmax.f32 %v2770, 0.0
        %v2925 = vmax.f32 %v2775, 0.0
        %v2926 = vmax.f32 %v2780, 0.0
        %v2927 = vmax.f32 %v2785, 0.0
        %v2928 = vmax.f32 %v2790, 0.0
        %v2929 = vmax.f32 %v2795, 0.0
        %v2930 = vmax.f32 %v2800, 0.0
        %v2931 = vmax.f32 %v2805, 0.0
        %v2932 = vmax.f32 %v2810, 0.0
        %v2933 = vmax.f32 %v2815, 0.0
        %v2934 = vmax.f32 %v2820, 0.0
        %v2935 = vmax.f32 %v2825, 0.0
        %v2936 = vmax.f32 %v2830, 0.0
        %v2937 = vmax.f32 %v2835, 0.0
        %v2938 = vmax.f32 %v2840, 0.0
        %v2939 = vmax.f32 %v2845, 0.0
        %v2940 = vmax.f32 %v2850, 0.0
        %v2941 = vmax.f32 %v2855, 0.0
        %v2942 = vmax.f32 %v2860, 0.0
        %v2943 = vmax.f32 %v2865, 0.0
        %v2944 = vmax.f32 %v2870, 0.0
        %v2945 = vmax.f32 %v2875, 0.0
        %v2946 = vmax.f32 %v2880, 0.0
        %v2947 = vmax.f32 %v2885, 0.0
        %v2948 = vmax.f32 %v2890, 0.0
        %v2949 = vmax.f32 %v2895, 0.0
        %v2950 = vmax.f32 %v2900, 0.0
        %v2951 = vmax.f32 %v2905, 0.0
        %v2952 = vmax.f32 %v2910, 0.0
        %v2953 = vmax.f32 %v2915, 0.0
        %v2954 = vstv %s301
        %v2955 = vadd.f32 %v2918, %v2954
        %v2956 = vadd.f32 %v2919, %v2954
        %v2957 = vadd.f32 %v2920, %v2954
        %v2958 = vadd.f32 %v2921, %v2954
        %v2959 = vadd.f32 %v2922, %v2954
        %v2960 = vadd.f32 %v2923, %v2954
        %v2961 = vadd.f32 %v2924, %v2954
        %v2962 = vadd.f32 %v2925, %v2954
        %v2963 = vadd.f32 %v2926, %v2954
        %v2964 = vadd.f32 %v2927, %v2954
        %v2965 = vadd.f32 %v2928, %v2954
        %v2966 = vadd.f32 %v2929, %v2954
        %v2967 = vadd.f32 %v2930, %v2954
        %v2968 = vadd.f32 %v2931, %v2954
        %v2969 = vadd.f32 %v2932, %v2954
        %v2970 = vadd.f32 %v2933, %v2954
        %v2971 = vadd.f32 %v2934, %v2954
        %v2972 = vadd.f32 %v2935, %v2954
        %v2973 = vadd.f32 %v2936, %v2954
        %v2974 = vadd.f32 %v2937, %v2954
        %v2975 = vadd.f32 %v2938, %v2954
        %v2976 = vadd.f32 %v2939, %v2954
        %v2977 = vadd.f32 %v2940, %v2954
        %v2978 = vadd.f32 %v2941, %v2954
        %v2979 = vadd.f32 %v2942, %v2954
        %v2980 = vadd.f32 %v2943, %v2954
        %v2981 = vadd.f32 %v2944, %v2954
        %v2982 = vadd.f32 %v2945, %v2954
        %v2983 = vadd.f32 %v2946, %v2954
        %v2984 = vadd.f32 %v2947, %v2954
        %v2985 = vadd.f32 %v2948, %v2954
        %v2986 = vadd.f32 %v2949, %v2954
        %v2987 = vadd.f32 %v2950, %v2954
        %v2988 = vadd.f32 %v2951, %v2954
        %v2989 = vadd.f32 %v2952, %v2954
        %v2990 = vadd.f32 %v2953, %v2954
        %v2991 = vmul.f32 %v452, %v2955
        %v2992 = vmul.f32 %v457, %v2956
        %v2993 = vmul.f32 %v462, %v2957
        %v2994 = vmul.f32 %v467, %v2958
        %v2995 = vmul.f32 %v472, %v2959
        %v2996 = vmul.f32 %v477, %v2960
        %v2997 = vmul.f32 %v482, %v2961
        %v2998 = vmul.f32 %v487, %v2962
        %v2999 = vmul.f32 %v492, %v2963
        %v3000 = vmul.f32 %v497, %v2964
        %v3001 = vmul.f32 %v502, %v2965
        %v3002 = vmul.f32 %v507, %v2966
        %v3003 = vmul.f32 %v512, %v2967
        %v3004 = vmul.f32 %v517, %v2968
        %v3005 = vmul.f32 %v522, %v2969
        %v3006 = vmul.f32 %v527, %v2970
        %v3007 = vmul.f32 %v532, %v2971
        %v3008 = vmul.f32 %v537, %v2972
        %v3009 = vmul.f32 %v542, %v2973
        %v3010 = vmul.f32 %v547, %v2974
        %v3011 = vmul.f32 %v552, %v2975
        %v3012 = vmul.f32 %v557, %v2976
        %v3013 = vmul.f32 %v562, %v2977
        %v3014 = vmul.f32 %v567, %v2978
        %v3015 = vmul.f32 %v572, %v2979
        %v3016 = vmul.f32 %v577, %v2980
        %v3017 = vmul.f32 %v582, %v2981
        %v3018 = vmul.f32 %v587, %v2982
        %v3019 = vmul.f32 %v592, %v2983
        %v3020 = vmul.f32 %v597, %v2984
        %v3021 = vmul.f32 %v602, %v2985
        %v3022 = vmul.f32 %v607, %v2986
        %v3023 = vmul.f32 %v612, %v2987
        %v3024 = vmul.f32 %v617, %v2988
        %v3025 = vmul.f32 %v622, %v2989
        %v3026 = vmul.f32 %v627, %v2990
        %3027 = vst.msk [vmem:[#allocation3] sm:$0xff] %vm665, 0.0
        %3028 = vst.msk [vmem:[#allocation3 + $0x8] sm:$0xff] %vm665, 0.0
        %3029 = vst.msk [vmem:[#allocation3 + $0x10] sm:$0x7] %vm668, 0.0
        %3030 = vst.msk [vmem:[#allocation3 + $0x133] sm:$0xff] %vm665, 0.0
        %3031 = vst.msk [vmem:[#allocation3 + $0x13b] sm:$0xff] %vm665, 0.0
        %3032 = vst.msk [vmem:[#allocation3 + $0x143] sm:$0x1f] %vm672, 0.0
        %3033 = vst.msk [vmem:[#allocation3 + $0x13] sm:$0xff] %vm665, %v2991
        %3034 = vst.msk [vmem:[#allocation3 + $0x1b] sm:$0xff] %vm665, %v2992
        %3035 = vst.msk [vmem:[#allocation3 + $0x23] sm:$0xff] %vm665, %v2993
        %3036 = vst.msk [vmem:[#allocation3 + $0x2b] sm:$0xff] %vm665, %v2994
        %3037 = vst.msk [vmem:[#allocation3 + $0x33] sm:$0xff] %vm665, %v2995
        %3038 = vst.msk [vmem:[#allocation3 + $0x3b] sm:$0xff] %vm665, %v2996
        %3039 = vst.msk [vmem:[#allocation3 + $0x43] sm:$0xff] %vm665, %v2997
        %3040 = vst.msk [vmem:[#allocation3 + $0x4b] sm:$0xff] %vm665, %v2998
        %3041 = vst.msk [vmem:[#allocation3 + $0x53] sm:$0xff] %vm665, %v2999
        %3042 = vst.msk [vmem:[#allocation3 + $0x5b] sm:$0xff] %vm665, %v3000
        %3043 = vst.msk [vmem:[#allocation3 + $0x63] sm:$0xff] %vm665, %v3001
        %3044 = vst.msk [vmem:[#allocation3 + $0x6b] sm:$0xff] %vm665, %v3002
        %3045 = vst.msk [vmem:[#allocation3 + $0x73] sm:$0xff] %vm665, %v3003
        %3046 = vst.msk [vmem:[#allocation3 + $0x7b] sm:$0xff] %vm665, %v3004
        %3047 = vst.msk [vmem:[#allocation3 + $0x83] sm:$0xff] %vm665, %v3005
        %3048 = vst.msk [vmem:[#allocation3 + $0x8b] sm:$0xff] %vm665, %v3006
        %3049 = vst.msk [vmem:[#allocation3 + $0x93] sm:$0xff] %vm665, %v3007
        %3050 = vst.msk [vmem:[#allocation3 + $0x9b] sm:$0xff] %vm665, %v3008
        %3051 = vst.msk [vmem:[#allocation3 + $0xa3] sm:$0xff] %vm665, %v3009
        %3052 = vst.msk [vmem:[#allocation3 + $0xab] sm:$0xff] %vm665, %v3010
        %3053 = vst.msk [vmem:[#allocation3 + $0xb3] sm:$0xff] %vm665, %v3011
        %3054 = vst.msk [vmem:[#allocation3 + $0xbb] sm:$0xff] %vm665, %v3012
        %3055 = vst.msk [vmem:[#allocation3 + $0xc3] sm:$0xff] %vm665, %v3013
        %3056 = vst.msk [vmem:[#allocation3 + $0xcb] sm:$0xff] %vm665, %v3014
        %3057 = vst.msk [vmem:[#allocation3 + $0xd3] sm:$0xff] %vm665, %v3015
        %3058 = vst.msk [vmem:[#allocation3 + $0xdb] sm:$0xff] %vm665, %v3016
        %3059 = vst.msk [vmem:[#allocation3 + $0xe3] sm:$0xff] %vm665, %v3017
        %3060 = vst.msk [vmem:[#allocation3 + $0xeb] sm:$0xff] %vm665, %v3018
        %3061 = vst.msk [vmem:[#allocation3 + $0xf3] sm:$0xff] %vm665, %v3019
        %3062 = vst.msk [vmem:[#allocation3 + $0xfb] sm:$0xff] %vm665, %v3020
        %3063 = vst.msk [vmem:[#allocation3 + $0x103] sm:$0xff] %vm665, %v3021
        %3064 = vst.msk [vmem:[#allocation3 + $0x10b] sm:$0xff] %vm665, %v3022
        %3065 = vst.msk [vmem:[#allocation3 + $0x113] sm:$0xff] %vm665, %v3023
        %3066 = vst.msk [vmem:[#allocation3 + $0x11b] sm:$0xff] %vm665, %v3024
        %3067 = vst.msk [vmem:[#allocation3 + $0x123] sm:$0xff] %vm665, %v3025
        %3068 = vst.msk [vmem:[#allocation3 + $0x12b] sm:$0xff] %vm665, %v3026
        %v3069 = vld [vmem:[#allocation3] sm:$0xff]
        %v3070 = vld [vmem:[#allocation3 + $0x8] sm:$0xff]
        %v3071 = vld [vmem:[#allocation3 + $0x10] sm:$0xff]
        %v3072 = vld [vmem:[#allocation3 + $0x18] sm:$0xff]
        %v3073 = vld [vmem:[#allocation3 + $0x20] sm:$0xff]
        %v3074 = vld [vmem:[#allocation3 + $0x28] sm:$0xff]
        %v3075 = vld [vmem:[#allocation3 + $0x30] sm:$0xff]
        %v3076 = vld [vmem:[#allocation3 + $0x38] sm:$0xff]
        %v3077 = vld [vmem:[#allocation3 + $0x40] sm:$0xff]
        %v3078 = vld [vmem:[#allocation3 + $0x48] sm:$0xff]
        %v3079 = vld [vmem:[#allocation3 + $0x50] sm:$0xff]
        %v3080 = vld [vmem:[#allocation3 + $0x58] sm:$0xff]
        %v3081 = vld [vmem:[#allocation3 + $0x60] sm:$0xff]
        %v3082 = vld [vmem:[#allocation3 + $0x68] sm:$0xff]
        %v3083 = vld [vmem:[#allocation3 + $0x70] sm:$0xff]
        %v3084 = vld [vmem:[#allocation3 + $0x78] sm:$0xff]
        %v3085 = vld [vmem:[#allocation3 + $0x80] sm:$0xff]
        %v3086 = vld [vmem:[#allocation3 + $0x88] sm:$0xff]
        %v3087 = vld [vmem:[#allocation3 + $0x90] sm:$0xff]
        %v3088 = vld [vmem:[#allocation3 + $0x98] sm:$0xff]
        %v3089 = vld [vmem:[#allocation3 + $0xa0] sm:$0xff]
        %v3090 = vld [vmem:[#allocation3 + $0xa8] sm:$0xff]
        %v3091 = vld [vmem:[#allocation3 + $0xb0] sm:$0xff]
        %v3092 = vld [vmem:[#allocation3 + $0xb8] sm:$0xff]
        %v3093 = vld [vmem:[#allocation3 + $0xc0] sm:$0xff]
        %v3094 = vld [vmem:[#allocation3 + $0xc8] sm:$0xff]
        %v3095 = vld [vmem:[#allocation3 + $0xd0] sm:$0xff]
        %v3096 = vld [vmem:[#allocation3 + $0xd8] sm:$0xff]
        %v3097 = vld [vmem:[#allocation3 + $0xe0] sm:$0xff]
        %v3098 = vld [vmem:[#allocation3 + $0xe8] sm:$0xff]
        %v3099 = vld [vmem:[#allocation3 + $0xf0] sm:$0xff]
        %v3100 = vld [vmem:[#allocation3 + $0xf8] sm:$0xff]
        %v3101 = vld [vmem:[#allocation3 + $0x100] sm:$0xff]
        %v3102 = vld [vmem:[#allocation3 + $0x108] sm:$0xff]
        %v3103 = vld [vmem:[#allocation3 + $0x110] sm:$0xff]
        %v3104 = vld [vmem:[#allocation3 + $0x118] sm:$0xff]
        %3105 = vst.msk [vmem:[#allocation5] sm:$0xff] %vm665, %v3069
        %3106 = vst.msk [vmem:[#allocation5 + $0x8] sm:$0xff] %vm665, %v3070
        %3107 = vst.msk [vmem:[#allocation5 + $0x10] sm:$0xff] %vm665, %v3071
        %3108 = vst.msk [vmem:[#allocation5 + $0x18] sm:$0xff] %vm665, %v3072
        %3109 = vst.msk [vmem:[#allocation5 + $0x20] sm:$0xff] %vm665, %v3073
        %3110 = vst.msk [vmem:[#allocation5 + $0x28] sm:$0xff] %vm665, %v3074
        %3111 = vst.msk [vmem:[#allocation5 + $0x30] sm:$0xff] %vm665, %v3075
        %3112 = vst.msk [vmem:[#allocation5 + $0x38] sm:$0xff] %vm665, %v3076
        %3113 = vst.msk [vmem:[#allocation5 + $0x40] sm:$0xff] %vm665, %v3077
        %3114 = vst.msk [vmem:[#allocation5 + $0x48] sm:$0xff] %vm665, %v3078
        %3115 = vst.msk [vmem:[#allocation5 + $0x50] sm:$0xff] %vm665, %v3079
        %3116 = vst.msk [vmem:[#allocation5 + $0x58] sm:$0xff] %vm665, %v3080
        %3117 = vst.msk [vmem:[#allocation5 + $0x60] sm:$0xff] %vm665, %v3081
        %3118 = vst.msk [vmem:[#allocation5 + $0x68] sm:$0xff] %vm665, %v3082
        %3119 = vst.msk [vmem:[#allocation5 + $0x70] sm:$0xff] %vm665, %v3083
        %3120 = vst.msk [vmem:[#allocation5 + $0x78] sm:$0xff] %vm665, %v3084
        %3121 = vst.msk [vmem:[#allocation5 + $0x80] sm:$0xff] %vm665, %v3085
        %3122 = vst.msk [vmem:[#allocation5 + $0x88] sm:$0xff] %vm665, %v3086
        %3123 = vst.msk [vmem:[#allocation5 + $0x90] sm:$0xff] %vm665, %v3087
        %3124 = vst.msk [vmem:[#allocation5 + $0x98] sm:$0xff] %vm665, %v3088
        %3125 = vst.msk [vmem:[#allocation5 + $0xa0] sm:$0xff] %vm665, %v3089
        %3126 = vst.msk [vmem:[#allocation5 + $0xa8] sm:$0xff] %vm665, %v3090
        %3127 = vst.msk [vmem:[#allocation5 + $0xb0] sm:$0xff] %vm665, %v3091
        %3128 = vst.msk [vmem:[#allocation5 + $0xb8] sm:$0xff] %vm665, %v3092
        %3129 = vst.msk [vmem:[#allocation5 + $0xc0] sm:$0xff] %vm665, %v3093
        %3130 = vst.msk [vmem:[#allocation5 + $0xc8] sm:$0xff] %vm665, %v3094
        %3131 = vst.msk [vmem:[#allocation5 + $0xd0] sm:$0xff] %vm665, %v3095
        %3132 = vst.msk [vmem:[#allocation5 + $0xd8] sm:$0xff] %vm665, %v3096
        %3133 = vst.msk [vmem:[#allocation5 + $0xe0] sm:$0xff] %vm665, %v3097
        %3134 = vst.msk [vmem:[#allocation5 + $0xe8] sm:$0xff] %vm665, %v3098
        %3135 = vst.msk [vmem:[#allocation5 + $0xf0] sm:$0xff] %vm665, %v3099
        %3136 = vst.msk [vmem:[#allocation5 + $0xf8] sm:$0xff] %vm665, %v3100
        %3137 = vst.msk [vmem:[#allocation5 + $0x100] sm:$0xff] %vm665, %v3101
        %3138 = vst.msk [vmem:[#allocation5 + $0x108] sm:$0xff] %vm665, %v3102
        %3139 = vst.msk [vmem:[#allocation5 + $0x110] sm:$0xff] %vm665, %v3103
        %3140 = vst.msk [vmem:[#allocation5 + $0x118] sm:$0xff] %vm665, %v3104
        %v3141 = vld [vmem:[#allocation3 + $0x1] sm:$0xff]
        %v3142 = vld [vmem:[#allocation3 + $0x9] sm:$0xff]
        %v3143 = vld [vmem:[#allocation3 + $0x11] sm:$0xff]
        %v3144 = vld [vmem:[#allocation3 + $0x19] sm:$0xff]
        %v3145 = vld [vmem:[#allocation3 + $0x21] sm:$0xff]
        %v3146 = vld [vmem:[#allocation3 + $0x29] sm:$0xff]
        %v3147 = vld [vmem:[#allocation3 + $0x31] sm:$0xff]
        %v3148 = vld [vmem:[#allocation3 + $0x39] sm:$0xff]
        %v3149 = vld [vmem:[#allocation3 + $0x41] sm:$0xff]
        %v3150 = vld [vmem:[#allocation3 + $0x49] sm:$0xff]
        %v3151 = vld [vmem:[#allocation3 + $0x51] sm:$0xff]
        %v3152 = vld [vmem:[#allocation3 + $0x59] sm:$0xff]
        %v3153 = vld [vmem:[#allocation3 + $0x61] sm:$0xff]
        %v3154 = vld [vmem:[#allocation3 + $0x69] sm:$0xff]
        %v3155 = vld [vmem:[#allocation3 + $0x71] sm:$0xff]
        %v3156 = vld [vmem:[#allocation3 + $0x79] sm:$0xff]
        %v3157 = vld [vmem:[#allocation3 + $0x81] sm:$0xff]
        %v3158 = vld [vmem:[#allocation3 + $0x89] sm:$0xff]
        %v3159 = vld [vmem:[#allocation3 + $0x91] sm:$0xff]
        %v3160 = vld [vmem:[#allocation3 + $0x99] sm:$0xff]
        %v3161 = vld [vmem:[#allocation3 + $0xa1] sm:$0xff]
        %v3162 = vld [vmem:[#allocation3 + $0xa9] sm:$0xff]
        %v3163 = vld [vmem:[#allocation3 + $0xb1] sm:$0xff]
        %v3164 = vld [vmem:[#allocation3 + $0xb9] sm:$0xff]
        %v3165 = vld [vmem:[#allocation3 + $0xc1] sm:$0xff]
        %v3166 = vld [vmem:[#allocation3 + $0xc9] sm:$0xff]
        %v3167 = vld [vmem:[#allocation3 + $0xd1] sm:$0xff]
        %v3168 = vld [vmem:[#allocation3 + $0xd9] sm:$0xff]
        %v3169 = vld [vmem:[#allocation3 + $0xe1] sm:$0xff]
        %v3170 = vld [vmem:[#allocation3 + $0xe9] sm:$0xff]
        %v3171 = vld [vmem:[#allocation3 + $0xf1] sm:$0xff]
        %v3172 = vld [vmem:[#allocation3 + $0xf9] sm:$0xff]
        %v3173 = vld [vmem:[#allocation3 + $0x101] sm:$0xff]
        %v3174 = vld [vmem:[#allocation3 + $0x109] sm:$0xff]
        %v3175 = vld [vmem:[#allocation3 + $0x111] sm:$0xff]
        %v3176 = vld [vmem:[#allocation3 + $0x119] sm:$0xff]
        %3213 = vrot.lane.b32.xlu0 %v3141, 4
        %v3214 = vpop.permute.xlu0 %3213
        %3215 = vrot.lane.b32.xlu0 %v3142, 4
        %v3216 = vpop.permute.xlu0 %3215
        %3217 = vrot.lane.b32.xlu0 %v3143, 4
        %v3218 = vpop.permute.xlu0 %3217
        %3219 = vrot.lane.b32.xlu0 %v3144, 4
        %v3220 = vpop.permute.xlu0 %3219
        %3221 = vrot.lane.b32.xlu0 %v3145, 4
        %v3222 = vpop.permute.xlu0 %3221
        %3223 = vrot.lane.b32.xlu0 %v3146, 4
        %v3224 = vpop.permute.xlu0 %3223
        %3225 = vrot.lane.b32.xlu0 %v3147, 4
        %v3226 = vpop.permute.xlu0 %3225
        %3227 = vrot.lane.b32.xlu0 %v3148, 4
        %v3228 = vpop.permute.xlu0 %3227
        %3229 = vrot.lane.b32.xlu0 %v3149, 4
        %v3230 = vpop.permute.xlu0 %3229
        %3231 = vrot.lane.b32.xlu0 %v3150, 4
        %v3232 = vpop.permute.xlu0 %3231
        %3233 = vrot.lane.b32.xlu0 %v3151, 4
        %v3234 = vpop.permute.xlu0 %3233
        %3235 = vrot.lane.b32.xlu0 %v3152, 4
        %v3236 = vpop.permute.xlu0 %3235
        %3237 = vrot.lane.b32.xlu0 %v3153, 4
        %v3238 = vpop.permute.xlu0 %3237
        %3239 = vrot.lane.b32.xlu0 %v3154, 4
        %v3240 = vpop.permute.xlu0 %3239
        %3241 = vrot.lane.b32.xlu0 %v3155, 4
        %v3242 = vpop.permute.xlu0 %3241
        %3243 = vrot.lane.b32.xlu0 %v3156, 4
        %v3244 = vpop.permute.xlu0 %3243
        %3245 = vrot.lane.b32.xlu0 %v3157, 4
        %v3246 = vpop.permute.xlu0 %3245
        %3247 = vrot.lane.b32.xlu0 %v3158, 4
        %v3248 = vpop.permute.xlu0 %3247
        %3249 = vrot.lane.b32.xlu0 %v3159, 4
        %v3250 = vpop.permute.xlu0 %3249
        %3251 = vrot.lane.b32.xlu0 %v3160, 4
        %v3252 = vpop.permute.xlu0 %3251
        %3253 = vrot.lane.b32.xlu0 %v3161, 4
        %v3254 = vpop.permute.xlu0 %3253
        %3255 = vrot.lane.b32.xlu0 %v3162, 4
        %v3256 = vpop.permute.xlu0 %3255
        %3257 = vrot.lane.b32.xlu0 %v3163, 4
        %v3258 = vpop.permute.xlu0 %3257
        %3259 = vrot.lane.b32.xlu0 %v3164, 4
        %v3260 = vpop.permute.xlu0 %3259
        %3261 = vrot.lane.b32.xlu0 %v3165, 4
        %v3262 = vpop.permute.xlu0 %3261
        %3263 = vrot.lane.b32.xlu0 %v3166, 4
        %v3264 = vpop.permute.xlu0 %3263
        %3265 = vrot.lane.b32.xlu0 %v3167, 4
        %v3266 = vpop.permute.xlu0 %3265
        %3267 = vrot.lane.b32.xlu0 %v3168, 4
        %v3268 = vpop.permute.xlu0 %3267
        %3269 = vrot.lane.b32.xlu0 %v3169, 4
        %v3270 = vpop.permute.xlu0 %3269
        %3271 = vrot.lane.b32.xlu0 %v3170, 4
        %v3272 = vpop.permute.xlu0 %3271
        %3273 = vrot.lane.b32.xlu0 %v3171, 4
        %v3274 = vpop.permute.xlu0 %3273
        %3275 = vrot.lane.b32.xlu0 %v3172, 4
        %v3276 = vpop.permute.xlu0 %3275
        %3277 = vrot.lane.b32.xlu0 %v3173, 4
        %v3278 = vpop.permute.xlu0 %3277
        %3279 = vrot.lane.b32.xlu0 %v3174, 4
        %v3280 = vpop.permute.xlu0 %3279
        %3281 = vrot.lane.b32.xlu0 %v3175, 4
        %v3282 = vpop.permute.xlu0 %3281
        %3283 = vrot.lane.b32.xlu0 %v3176, 4
        %v3284 = vpop.permute.xlu0 %3283
        %3321 = vst.msk [vmem:[#allocation5] sm:$0xff] %vm962, %v3214
        %3322 = vst.msk [vmem:[#allocation5 + $0x8] sm:$0xff] %vm962, %v3216
        %3323 = vst.msk [vmem:[#allocation5 + $0x10] sm:$0xff] %vm962, %v3218
        %3324 = vst.msk [vmem:[#allocation5 + $0x18] sm:$0xff] %vm962, %v3220
        %3325 = vst.msk [vmem:[#allocation5 + $0x20] sm:$0xff] %vm962, %v3222
        %3326 = vst.msk [vmem:[#allocation5 + $0x28] sm:$0xff] %vm962, %v3224
        %3327 = vst.msk [vmem:[#allocation5 + $0x30] sm:$0xff] %vm962, %v3226
        %3328 = vst.msk [vmem:[#allocation5 + $0x38] sm:$0xff] %vm962, %v3228
        %3329 = vst.msk [vmem:[#allocation5 + $0x40] sm:$0xff] %vm962, %v3230
        %3330 = vst.msk [vmem:[#allocation5 + $0x48] sm:$0xff] %vm962, %v3232
        %3331 = vst.msk [vmem:[#allocation5 + $0x50] sm:$0xff] %vm962, %v3234
        %3332 = vst.msk [vmem:[#allocation5 + $0x58] sm:$0xff] %vm962, %v3236
        %3333 = vst.msk [vmem:[#allocation5 + $0x60] sm:$0xff] %vm962, %v3238
        %3334 = vst.msk [vmem:[#allocation5 + $0x68] sm:$0xff] %vm962, %v3240
        %3335 = vst.msk [vmem:[#allocation5 + $0x70] sm:$0xff] %vm962, %v3242
        %3336 = vst.msk [vmem:[#allocation5 + $0x78] sm:$0xff] %vm962, %v3244
        %3337 = vst.msk [vmem:[#allocation5 + $0x80] sm:$0xff] %vm962, %v3246
        %3338 = vst.msk [vmem:[#allocation5 + $0x88] sm:$0xff] %vm962, %v3248
        %3339 = vst.msk [vmem:[#allocation5 + $0x90] sm:$0xff] %vm962, %v3250
        %3340 = vst.msk [vmem:[#allocation5 + $0x98] sm:$0xff] %vm962, %v3252
        %3341 = vst.msk [vmem:[#allocation5 + $0xa0] sm:$0xff] %vm962, %v3254
        %3342 = vst.msk [vmem:[#allocation5 + $0xa8] sm:$0xff] %vm962, %v3256
        %3343 = vst.msk [vmem:[#allocation5 + $0xb0] sm:$0xff] %vm962, %v3258
        %3344 = vst.msk [vmem:[#allocation5 + $0xb8] sm:$0xff] %vm962, %v3260
        %3345 = vst.msk [vmem:[#allocation5 + $0xc0] sm:$0xff] %vm962, %v3262
        %3346 = vst.msk [vmem:[#allocation5 + $0xc8] sm:$0xff] %vm962, %v3264
        %3347 = vst.msk [vmem:[#allocation5 + $0xd0] sm:$0xff] %vm962, %v3266
        %3348 = vst.msk [vmem:[#allocation5 + $0xd8] sm:$0xff] %vm962, %v3268
        %3349 = vst.msk [vmem:[#allocation5 + $0xe0] sm:$0xff] %vm962, %v3270
        %3350 = vst.msk [vmem:[#allocation5 + $0xe8] sm:$0xff] %vm962, %v3272
        %3351 = vst.msk [vmem:[#allocation5 + $0xf0] sm:$0xff] %vm962, %v3274
        %3352 = vst.msk [vmem:[#allocation5 + $0xf8] sm:$0xff] %vm962, %v3276
        %3353 = vst.msk [vmem:[#allocation5 + $0x100] sm:$0xff] %vm962, %v3278
        %3354 = vst.msk [vmem:[#allocation5 + $0x108] sm:$0xff] %vm962, %v3280
        %3355 = vst.msk [vmem:[#allocation5 + $0x110] sm:$0xff] %vm962, %v3282
        %3356 = vst.msk [vmem:[#allocation5 + $0x118] sm:$0xff] %vm962, %v3284
        %v3357 = vld [vmem:[#allocation3 + $0x2] sm:$0xff]
        %v3358 = vld [vmem:[#allocation3 + $0xa] sm:$0xff]
        %v3359 = vld [vmem:[#allocation3 + $0x12] sm:$0xff]
        %v3360 = vld [vmem:[#allocation3 + $0x1a] sm:$0xff]
        %v3361 = vld [vmem:[#allocation3 + $0x22] sm:$0xff]
        %v3362 = vld [vmem:[#allocation3 + $0x2a] sm:$0xff]
        %v3363 = vld [vmem:[#allocation3 + $0x32] sm:$0xff]
        %v3364 = vld [vmem:[#allocation3 + $0x3a] sm:$0xff]
        %v3365 = vld [vmem:[#allocation3 + $0x42] sm:$0xff]
        %v3366 = vld [vmem:[#allocation3 + $0x4a] sm:$0xff]
        %v3367 = vld [vmem:[#allocation3 + $0x52] sm:$0xff]
        %v3368 = vld [vmem:[#allocation3 + $0x5a] sm:$0xff]
        %v3369 = vld [vmem:[#allocation3 + $0x62] sm:$0xff]
        %v3370 = vld [vmem:[#allocation3 + $0x6a] sm:$0xff]
        %v3371 = vld [vmem:[#allocation3 + $0x72] sm:$0xff]
        %v3372 = vld [vmem:[#allocation3 + $0x7a] sm:$0xff]
        %v3373 = vld [vmem:[#allocation3 + $0x82] sm:$0xff]
        %v3374 = vld [vmem:[#allocation3 + $0x8a] sm:$0xff]
        %v3375 = vld [vmem:[#allocation3 + $0x92] sm:$0xff]
        %v3376 = vld [vmem:[#allocation3 + $0x9a] sm:$0xff]
        %v3377 = vld [vmem:[#allocation3 + $0xa2] sm:$0xff]
        %v3378 = vld [vmem:[#allocation3 + $0xaa] sm:$0xff]
        %v3379 = vld [vmem:[#allocation3 + $0xb2] sm:$0xff]
        %v3380 = vld [vmem:[#allocation3 + $0xba] sm:$0xff]
        %v3381 = vld [vmem:[#allocation3 + $0xc2] sm:$0xff]
        %v3382 = vld [vmem:[#allocation3 + $0xca] sm:$0xff]
        %v3383 = vld [vmem:[#allocation3 + $0xd2] sm:$0xff]
        %v3384 = vld [vmem:[#allocation3 + $0xda] sm:$0xff]
        %v3385 = vld [vmem:[#allocation3 + $0xe2] sm:$0xff]
        %v3386 = vld [vmem:[#allocation3 + $0xea] sm:$0xff]
        %v3387 = vld [vmem:[#allocation3 + $0xf2] sm:$0xff]
        %v3388 = vld [vmem:[#allocation3 + $0xfa] sm:$0xff]
        %v3389 = vld [vmem:[#allocation3 + $0x102] sm:$0xff]
        %v3390 = vld [vmem:[#allocation3 + $0x10a] sm:$0xff]
        %v3391 = vld [vmem:[#allocation3 + $0x112] sm:$0xff]
        %v3392 = vld [vmem:[#allocation3 + $0x11a] sm:$0xff]
        %3429 = vrot.lane.b32.xlu0 %v3357, 8
        %v3430 = vpop.permute.xlu0 %3429
        %3431 = vrot.lane.b32.xlu0 %v3358, 8
        %v3432 = vpop.permute.xlu0 %3431
        %3433 = vrot.lane.b32.xlu0 %v3359, 8
        %v3434 = vpop.permute.xlu0 %3433
        %3435 = vrot.lane.b32.xlu0 %v3360, 8
        %v3436 = vpop.permute.xlu0 %3435
        %3437 = vrot.lane.b32.xlu0 %v3361, 8
        %v3438 = vpop.permute.xlu0 %3437
        %3439 = vrot.lane.b32.xlu0 %v3362, 8
        %v3440 = vpop.permute.xlu0 %3439
        %3441 = vrot.lane.b32.xlu0 %v3363, 8
        %v3442 = vpop.permute.xlu0 %3441
        %3443 = vrot.lane.b32.xlu0 %v3364, 8
        %v3444 = vpop.permute.xlu0 %3443
        %3445 = vrot.lane.b32.xlu0 %v3365, 8
        %v3446 = vpop.permute.xlu0 %3445
        %3447 = vrot.lane.b32.xlu0 %v3366, 8
        %v3448 = vpop.permute.xlu0 %3447
        %3449 = vrot.lane.b32.xlu0 %v3367, 8
        %v3450 = vpop.permute.xlu0 %3449
        %3451 = vrot.lane.b32.xlu0 %v3368, 8
        %v3452 = vpop.permute.xlu0 %3451
        %3453 = vrot.lane.b32.xlu0 %v3369, 8
        %v3454 = vpop.permute.xlu0 %3453
        %3455 = vrot.lane.b32.xlu0 %v3370, 8
        %v3456 = vpop.permute.xlu0 %3455
        %3457 = vrot.lane.b32.xlu0 %v3371, 8
        %v3458 = vpop.permute.xlu0 %3457
        %3459 = vrot.lane.b32.xlu0 %v3372, 8
        %v3460 = vpop.permute.xlu0 %3459
        %3461 = vrot.lane.b32.xlu0 %v3373, 8
        %v3462 = vpop.permute.xlu0 %3461
        %3463 = vrot.lane.b32.xlu0 %v3374, 8
        %v3464 = vpop.permute.xlu0 %3463
        %3465 = vrot.lane.b32.xlu0 %v3375, 8
        %v3466 = vpop.permute.xlu0 %3465
        %3467 = vrot.lane.b32.xlu0 %v3376, 8
        %v3468 = vpop.permute.xlu0 %3467
        %3469 = vrot.lane.b32.xlu0 %v3377, 8
        %v3470 = vpop.permute.xlu0 %3469
        %3471 = vrot.lane.b32.xlu0 %v3378, 8
        %v3472 = vpop.permute.xlu0 %3471
        %3473 = vrot.lane.b32.xlu0 %v3379, 8
        %v3474 = vpop.permute.xlu0 %3473
        %3475 = vrot.lane.b32.xlu0 %v3380, 8
        %v3476 = vpop.permute.xlu0 %3475
        %3477 = vrot.lane.b32.xlu0 %v3381, 8
        %v3478 = vpop.permute.xlu0 %3477
        %3479 = vrot.lane.b32.xlu0 %v3382, 8
        %v3480 = vpop.permute.xlu0 %3479
        %3481 = vrot.lane.b32.xlu0 %v3383, 8
        %v3482 = vpop.permute.xlu0 %3481
        %3483 = vrot.lane.b32.xlu0 %v3384, 8
        %v3484 = vpop.permute.xlu0 %3483
        %3485 = vrot.lane.b32.xlu0 %v3385, 8
        %v3486 = vpop.permute.xlu0 %3485
        %3487 = vrot.lane.b32.xlu0 %v3386, 8
        %v3488 = vpop.permute.xlu0 %3487
        %3489 = vrot.lane.b32.xlu0 %v3387, 8
        %v3490 = vpop.permute.xlu0 %3489
        %3491 = vrot.lane.b32.xlu0 %v3388, 8
        %v3492 = vpop.permute.xlu0 %3491
        %3493 = vrot.lane.b32.xlu0 %v3389, 8
        %v3494 = vpop.permute.xlu0 %3493
        %3495 = vrot.lane.b32.xlu0 %v3390, 8
        %v3496 = vpop.permute.xlu0 %3495
        %3497 = vrot.lane.b32.xlu0 %v3391, 8
        %v3498 = vpop.permute.xlu0 %3497
        %3499 = vrot.lane.b32.xlu0 %v3392, 8
        %v3500 = vpop.permute.xlu0 %3499
        %3537 = vst.msk [vmem:[#allocation5] sm:$0xff] %vm1179, %v3430
        %3538 = vst.msk [vmem:[#allocation5 + $0x8] sm:$0xff] %vm1179, %v3432
        %3539 = vst.msk [vmem:[#allocation5 + $0x10] sm:$0xff] %vm1179, %v3434
        %3540 = vst.msk [vmem:[#allocation5 + $0x18] sm:$0xff] %vm1179, %v3436
        %3541 = vst.msk [vmem:[#allocation5 + $0x20] sm:$0xff] %vm1179, %v3438
        %3542 = vst.msk [vmem:[#allocation5 + $0x28] sm:$0xff] %vm1179, %v3440
        %3543 = vst.msk [vmem:[#allocation5 + $0x30] sm:$0xff] %vm1179, %v3442
        %3544 = vst.msk [vmem:[#allocation5 + $0x38] sm:$0xff] %vm1179, %v3444
        %3545 = vst.msk [vmem:[#allocation5 + $0x40] sm:$0xff] %vm1179, %v3446
        %3546 = vst.msk [vmem:[#allocation5 + $0x48] sm:$0xff] %vm1179, %v3448
        %3547 = vst.msk [vmem:[#allocation5 + $0x50] sm:$0xff] %vm1179, %v3450
        %3548 = vst.msk [vmem:[#allocation5 + $0x58] sm:$0xff] %vm1179, %v3452
        %3549 = vst.msk [vmem:[#allocation5 + $0x60] sm:$0xff] %vm1179, %v3454
        %3550 = vst.msk [vmem:[#allocation5 + $0x68] sm:$0xff] %vm1179, %v3456
        %3551 = vst.msk [vmem:[#allocation5 + $0x70] sm:$0xff] %vm1179, %v3458
        %3552 = vst.msk [vmem:[#allocation5 + $0x78] sm:$0xff] %vm1179, %v3460
        %3553 = vst.msk [vmem:[#allocation5 + $0x80] sm:$0xff] %vm1179, %v3462
        %3554 = vst.msk [vmem:[#allocation5 + $0x88] sm:$0xff] %vm1179, %v3464
        %3555 = vst.msk [vmem:[#allocation5 + $0x90] sm:$0xff] %vm1179, %v3466
        %3556 = vst.msk [vmem:[#allocation5 + $0x98] sm:$0xff] %vm1179, %v3468
        %3557 = vst.msk [vmem:[#allocation5 + $0xa0] sm:$0xff] %vm1179, %v3470
        %3558 = vst.msk [vmem:[#allocation5 + $0xa8] sm:$0xff] %vm1179, %v3472
        %3559 = vst.msk [vmem:[#allocation5 + $0xb0] sm:$0xff] %vm1179, %v3474
        %3560 = vst.msk [vmem:[#allocation5 + $0xb8] sm:$0xff] %vm1179, %v3476
        %3561 = vst.msk [vmem:[#allocation5 + $0xc0] sm:$0xff] %vm1179, %v3478
        %3562 = vst.msk [vmem:[#allocation5 + $0xc8] sm:$0xff] %vm1179, %v3480
        %3563 = vst.msk [vmem:[#allocation5 + $0xd0] sm:$0xff] %vm1179, %v3482
        %3564 = vst.msk [vmem:[#allocation5 + $0xd8] sm:$0xff] %vm1179, %v3484
        %3565 = vst.msk [vmem:[#allocation5 + $0xe0] sm:$0xff] %vm1179, %v3486
        %3566 = vst.msk [vmem:[#allocation5 + $0xe8] sm:$0xff] %vm1179, %v3488
        %3567 = vst.msk [vmem:[#allocation5 + $0xf0] sm:$0xff] %vm1179, %v3490
        %3568 = vst.msk [vmem:[#allocation5 + $0xf8] sm:$0xff] %vm1179, %v3492
        %3569 = vst.msk [vmem:[#allocation5 + $0x100] sm:$0xff] %vm1179, %v3494
        %3570 = vst.msk [vmem:[#allocation5 + $0x108] sm:$0xff] %vm1179, %v3496
        %3571 = vst.msk [vmem:[#allocation5 + $0x110] sm:$0xff] %vm1179, %v3498
        %3572 = vst.msk [vmem:[#allocation5 + $0x118] sm:$0xff] %vm1179, %v3500
        %v3573 = vld [vmem:[#allocation3 + $0x12] sm:$0xff]
        %v3574 = vld [vmem:[#allocation3 + $0x1a] sm:$0xff]
        %v3575 = vld [vmem:[#allocation3 + $0x22] sm:$0xff]
        %v3576 = vld [vmem:[#allocation3 + $0x2a] sm:$0xff]
        %v3577 = vld [vmem:[#allocation3 + $0x32] sm:$0xff]
        %v3578 = vld [vmem:[#allocation3 + $0x3a] sm:$0xff]
        %v3579 = vld [vmem:[#allocation3 + $0x42] sm:$0xff]
        %v3580 = vld [vmem:[#allocation3 + $0x4a] sm:$0xff]
        %v3581 = vld [vmem:[#allocation3 + $0x52] sm:$0xff]
        %v3582 = vld [vmem:[#allocation3 + $0x5a] sm:$0xff]
        %v3583 = vld [vmem:[#allocation3 + $0x62] sm:$0xff]
        %v3584 = vld [vmem:[#allocation3 + $0x6a] sm:$0xff]
        %v3585 = vld [vmem:[#allocation3 + $0x72] sm:$0xff]
        %v3586 = vld [vmem:[#allocation3 + $0x7a] sm:$0xff]
        %v3587 = vld [vmem:[#allocation3 + $0x82] sm:$0xff]
        %v3588 = vld [vmem:[#allocation3 + $0x8a] sm:$0xff]
        %v3589 = vld [vmem:[#allocation3 + $0x92] sm:$0xff]
        %v3590 = vld [vmem:[#allocation3 + $0x9a] sm:$0xff]
        %v3591 = vld [vmem:[#allocation3 + $0xa2] sm:$0xff]
        %v3592 = vld [vmem:[#allocation3 + $0xaa] sm:$0xff]
        %v3593 = vld [vmem:[#allocation3 + $0xb2] sm:$0xff]
        %v3594 = vld [vmem:[#allocation3 + $0xba] sm:$0xff]
        %v3595 = vld [vmem:[#allocation3 + $0xc2] sm:$0xff]
        %v3596 = vld [vmem:[#allocation3 + $0xca] sm:$0xff]
        %v3597 = vld [vmem:[#allocation3 + $0xd2] sm:$0xff]
        %v3598 = vld [vmem:[#allocation3 + $0xda] sm:$0xff]
        %v3599 = vld [vmem:[#allocation3 + $0xe2] sm:$0xff]
        %v3600 = vld [vmem:[#allocation3 + $0xea] sm:$0xff]
        %v3601 = vld [vmem:[#allocation3 + $0xf2] sm:$0xff]
        %v3602 = vld [vmem:[#allocation3 + $0xfa] sm:$0xff]
        %v3603 = vld [vmem:[#allocation3 + $0x102] sm:$0xff]
        %v3604 = vld [vmem:[#allocation3 + $0x10a] sm:$0xff]
        %v3605 = vld [vmem:[#allocation3 + $0x112] sm:$0xff]
        %v3606 = vld [vmem:[#allocation3 + $0x11a] sm:$0xff]
        %v3607 = vld [vmem:[#allocation3 + $0x122] sm:$0xff]
        %v3608 = vld [vmem:[#allocation3 + $0x12a] sm:$0xff]
        %3645 = vrot.lane.b32.xlu0 %v3573, 12
        %v3646 = vpop.permute.xlu0 %3645
        %3647 = vrot.lane.b32.xlu0 %v3574, 12
        %v3648 = vpop.permute.xlu0 %3647
        %3649 = vrot.lane.b32.xlu0 %v3575, 12
        %v3650 = vpop.permute.xlu0 %3649
        %3651 = vrot.lane.b32.xlu0 %v3576, 12
        %v3652 = vpop.permute.xlu0 %3651
        %3653 = vrot.lane.b32.xlu0 %v3577, 12
        %v3654 = vpop.permute.xlu0 %3653
        %3655 = vrot.lane.b32.xlu0 %v3578, 12
        %v3656 = vpop.permute.xlu0 %3655
        %3657 = vrot.lane.b32.xlu0 %v3579, 12
        %v3658 = vpop.permute.xlu0 %3657
        %3659 = vrot.lane.b32.xlu0 %v3580, 12
        %v3660 = vpop.permute.xlu0 %3659
        %3661 = vrot.lane.b32.xlu0 %v3581, 12
        %v3662 = vpop.permute.xlu0 %3661
        %3663 = vrot.lane.b32.xlu0 %v3582, 12
        %v3664 = vpop.permute.xlu0 %3663
        %3665 = vrot.lane.b32.xlu0 %v3583, 12
        %v3666 = vpop.permute.xlu0 %3665
        %3667 = vrot.lane.b32.xlu0 %v3584, 12
        %v3668 = vpop.permute.xlu0 %3667
        %3669 = vrot.lane.b32.xlu0 %v3585, 12
        %v3670 = vpop.permute.xlu0 %3669
        %3671 = vrot.lane.b32.xlu0 %v3586, 12
        %v3672 = vpop.permute.xlu0 %3671
        %3673 = vrot.lane.b32.xlu0 %v3587, 12
        %v3674 = vpop.permute.xlu0 %3673
        %3675 = vrot.lane.b32.xlu0 %v3588, 12
        %v3676 = vpop.permute.xlu0 %3675
        %3677 = vrot.lane.b32.xlu0 %v3589, 12
        %v3678 = vpop.permute.xlu0 %3677
        %3679 = vrot.lane.b32.xlu0 %v3590, 12
        %v3680 = vpop.permute.xlu0 %3679
        %3681 = vrot.lane.b32.xlu0 %v3591, 12
        %v3682 = vpop.permute.xlu0 %3681
        %3683 = vrot.lane.b32.xlu0 %v3592, 12
        %v3684 = vpop.permute.xlu0 %3683
        %3685 = vrot.lane.b32.xlu0 %v3593, 12
        %v3686 = vpop.permute.xlu0 %3685
        %3687 = vrot.lane.b32.xlu0 %v3594, 12
        %v3688 = vpop.permute.xlu0 %3687
        %3689 = vrot.lane.b32.xlu0 %v3595, 12
        %v3690 = vpop.permute.xlu0 %3689
        %3691 = vrot.lane.b32.xlu0 %v3596, 12
        %v3692 = vpop.permute.xlu0 %3691
        %3693 = vrot.lane.b32.xlu0 %v3597, 12
        %v3694 = vpop.permute.xlu0 %3693
        %3695 = vrot.lane.b32.xlu0 %v3598, 12
        %v3696 = vpop.permute.xlu0 %3695
        %3697 = vrot.lane.b32.xlu0 %v3599, 12
        %v3698 = vpop.permute.xlu0 %3697
        %3699 = vrot.lane.b32.xlu0 %v3600, 12
        %v3700 = vpop.permute.xlu0 %3699
        %3701 = vrot.lane.b32.xlu0 %v3601, 12
        %v3702 = vpop.permute.xlu0 %3701
        %3703 = vrot.lane.b32.xlu0 %v3602, 12
        %v3704 = vpop.permute.xlu0 %3703
        %3705 = vrot.lane.b32.xlu0 %v3603, 12
        %v3706 = vpop.permute.xlu0 %3705
        %3707 = vrot.lane.b32.xlu0 %v3604, 12
        %v3708 = vpop.permute.xlu0 %3707
        %3709 = vrot.lane.b32.xlu0 %v3605, 12
        %v3710 = vpop.permute.xlu0 %3709
        %3711 = vrot.lane.b32.xlu0 %v3606, 12
        %v3712 = vpop.permute.xlu0 %3711
        %3713 = vrot.lane.b32.xlu0 %v3607, 12
        %v3714 = vpop.permute.xlu0 %3713
        %3715 = vrot.lane.b32.xlu0 %v3608, 12
        %v3716 = vpop.permute.xlu0 %3715
        %3753 = vst.msk [vmem:[#allocation5] sm:$0xff] %vm1396, %v3646
        %3754 = vst.msk [vmem:[#allocation5 + $0x8] sm:$0xff] %vm1396, %v3648
        %3755 = vst.msk [vmem:[#allocation5 + $0x10] sm:$0xff] %vm1396, %v3650
        %3756 = vst.msk [vmem:[#allocation5 + $0x18] sm:$0xff] %vm1396, %v3652
        %3757 = vst.msk [vmem:[#allocation5 + $0x20] sm:$0xff] %vm1396, %v3654
        %3758 = vst.msk [vmem:[#allocation5 + $0x28] sm:$0xff] %vm1396, %v3656
        %3759 = vst.msk [vmem:[#allocation5 + $0x30] sm:$0xff] %vm1396, %v3658
        %3760 = vst.msk [vmem:[#allocation5 + $0x38] sm:$0xff] %vm1396, %v3660
        %3761 = vst.msk [vmem:[#allocation5 + $0x40] sm:$0xff] %vm1396, %v3662
        %3762 = vst.msk [vmem:[#allocation5 + $0x48] sm:$0xff] %vm1396, %v3664
        %3763 = vst.msk [vmem:[#allocation5 + $0x50] sm:$0xff] %vm1396, %v3666
        %3764 = vst.msk [vmem:[#allocation5 + $0x58] sm:$0xff] %vm1396, %v3668
        %3765 = vst.msk [vmem:[#allocation5 + $0x60] sm:$0xff] %vm1396, %v3670
        %3766 = vst.msk [vmem:[#allocation5 + $0x68] sm:$0xff] %vm1396, %v3672
        %3767 = vst.msk [vmem:[#allocation5 + $0x70] sm:$0xff] %vm1396, %v3674
        %3768 = vst.msk [vmem:[#allocation5 + $0x78] sm:$0xff] %vm1396, %v3676
        %3769 = vst.msk [vmem:[#allocation5 + $0x80] sm:$0xff] %vm1396, %v3678
        %3770 = vst.msk [vmem:[#allocation5 + $0x88] sm:$0xff] %vm1396, %v3680
        %3771 = vst.msk [vmem:[#allocation5 + $0x90] sm:$0xff] %vm1396, %v3682
        %3772 = vst.msk [vmem:[#allocation5 + $0x98] sm:$0xff] %vm1396, %v3684
        %3773 = vst.msk [vmem:[#allocation5 + $0xa0] sm:$0xff] %vm1396, %v3686
        %3774 = vst.msk [vmem:[#allocation5 + $0xa8] sm:$0xff] %vm1396, %v3688
        %3775 = vst.msk [vmem:[#allocation5 + $0xb0] sm:$0xff] %vm1396, %v3690
        %3776 = vst.msk [vmem:[#allocation5 + $0xb8] sm:$0xff] %vm1396, %v3692
        %3777 = vst.msk [vmem:[#allocation5 + $0xc0] sm:$0xff] %vm1396, %v3694
        %3778 = vst.msk [vmem:[#allocation5 + $0xc8] sm:$0xff] %vm1396, %v3696
        %3779 = vst.msk [vmem:[#allocation5 + $0xd0] sm:$0xff] %vm1396, %v3698
        %3780 = vst.msk [vmem:[#allocation5 + $0xd8] sm:$0xff] %vm1396, %v3700
        %3781 = vst.msk [vmem:[#allocation5 + $0xe0] sm:$0xff] %vm1396, %v3702
        %3782 = vst.msk [vmem:[#allocation5 + $0xe8] sm:$0xff] %vm1396, %v3704
        %3783 = vst.msk [vmem:[#allocation5 + $0xf0] sm:$0xff] %vm1396, %v3706
        %3784 = vst.msk [vmem:[#allocation5 + $0xf8] sm:$0xff] %vm1396, %v3708
        %3785 = vst.msk [vmem:[#allocation5 + $0x100] sm:$0xff] %vm1396, %v3710
        %3786 = vst.msk [vmem:[#allocation5 + $0x108] sm:$0xff] %vm1396, %v3712
        %3787 = vst.msk [vmem:[#allocation5 + $0x110] sm:$0xff] %vm1396, %v3714
        %3788 = vst.msk [vmem:[#allocation5 + $0x118] sm:$0xff] %vm1396, %v3716
        %v3789 = vld [vmem:[#allocation3 + $0x13] sm:$0xff]
        %v3790 = vld [vmem:[#allocation3 + $0x1b] sm:$0xff]
        %v3791 = vld [vmem:[#allocation3 + $0x23] sm:$0xff]
        %v3792 = vld [vmem:[#allocation3 + $0x2b] sm:$0xff]
        %v3793 = vld [vmem:[#allocation3 + $0x33] sm:$0xff]
        %v3794 = vld [vmem:[#allocation3 + $0x3b] sm:$0xff]
        %v3795 = vld [vmem:[#allocation3 + $0x43] sm:$0xff]
        %v3796 = vld [vmem:[#allocation3 + $0x4b] sm:$0xff]
        %v3797 = vld [vmem:[#allocation3 + $0x53] sm:$0xff]
        %v3798 = vld [vmem:[#allocation3 + $0x5b] sm:$0xff]
        %v3799 = vld [vmem:[#allocation3 + $0x63] sm:$0xff]
        %v3800 = vld [vmem:[#allocation3 + $0x6b] sm:$0xff]
        %v3801 = vld [vmem:[#allocation3 + $0x73] sm:$0xff]
        %v3802 = vld [vmem:[#allocation3 + $0x7b] sm:$0xff]
        %v3803 = vld [vmem:[#allocation3 + $0x83] sm:$0xff]
        %v3804 = vld [vmem:[#allocation3 + $0x8b] sm:$0xff]
        %v3805 = vld [vmem:[#allocation3 + $0x93] sm:$0xff]
        %v3806 = vld [vmem:[#allocation3 + $0x9b] sm:$0xff]
        %v3807 = vld [vmem:[#allocation3 + $0xa3] sm:$0xff]
        %v3808 = vld [vmem:[#allocation3 + $0xab] sm:$0xff]
        %v3809 = vld [vmem:[#allocation3 + $0xb3] sm:$0xff]
        %v3810 = vld [vmem:[#allocation3 + $0xbb] sm:$0xff]
        %v3811 = vld [vmem:[#allocation3 + $0xc3] sm:$0xff]
        %v3812 = vld [vmem:[#allocation3 + $0xcb] sm:$0xff]
        %v3813 = vld [vmem:[#allocation3 + $0xd3] sm:$0xff]
        %v3814 = vld [vmem:[#allocation3 + $0xdb] sm:$0xff]
        %v3815 = vld [vmem:[#allocation3 + $0xe3] sm:$0xff]
        %v3816 = vld [vmem:[#allocation3 + $0xeb] sm:$0xff]
        %v3817 = vld [vmem:[#allocation3 + $0xf3] sm:$0xff]
        %v3818 = vld [vmem:[#allocation3 + $0xfb] sm:$0xff]
        %v3819 = vld [vmem:[#allocation3 + $0x103] sm:$0xff]
        %v3820 = vld [vmem:[#allocation3 + $0x10b] sm:$0xff]
        %v3821 = vld [vmem:[#allocation3 + $0x113] sm:$0xff]
        %v3822 = vld [vmem:[#allocation3 + $0x11b] sm:$0xff]
        %v3823 = vld [vmem:[#allocation3 + $0x123] sm:$0xff]
        %v3824 = vld [vmem:[#allocation3 + $0x12b] sm:$0xff]
        %3861 = vrot.lane.b32.xlu0 %v3789, 16
        %v3862 = vpop.permute.xlu0 %3861
        %3863 = vrot.lane.b32.xlu0 %v3790, 16
        %v3864 = vpop.permute.xlu0 %3863
        %3865 = vrot.lane.b32.xlu0 %v3791, 16
        %v3866 = vpop.permute.xlu0 %3865
        %3867 = vrot.lane.b32.xlu0 %v3792, 16
        %v3868 = vpop.permute.xlu0 %3867
        %3869 = vrot.lane.b32.xlu0 %v3793, 16
        %v3870 = vpop.permute.xlu0 %3869
        %3871 = vrot.lane.b32.xlu0 %v3794, 16
        %v3872 = vpop.permute.xlu0 %3871
        %3873 = vrot.lane.b32.xlu0 %v3795, 16
        %v3874 = vpop.permute.xlu0 %3873
        %3875 = vrot.lane.b32.xlu0 %v3796, 16
        %v3876 = vpop.permute.xlu0 %3875
        %3877 = vrot.lane.b32.xlu0 %v3797, 16
        %v3878 = vpop.permute.xlu0 %3877
        %3879 = vrot.lane.b32.xlu0 %v3798, 16
        %v3880 = vpop.permute.xlu0 %3879
        %3881 = vrot.lane.b32.xlu0 %v3799, 16
        %v3882 = vpop.permute.xlu0 %3881
        %3883 = vrot.lane.b32.xlu0 %v3800, 16
        %v3884 = vpop.permute.xlu0 %3883
        %3885 = vrot.lane.b32.xlu0 %v3801, 16
        %v3886 = vpop.permute.xlu0 %3885
        %3887 = vrot.lane.b32.xlu0 %v3802, 16
        %v3888 = vpop.permute.xlu0 %3887
        %3889 = vrot.lane.b32.xlu0 %v3803, 16
        %v3890 = vpop.permute.xlu0 %3889
        %3891 = vrot.lane.b32.xlu0 %v3804, 16
        %v3892 = vpop.permute.xlu0 %3891
        %3893 = vrot.lane.b32.xlu0 %v3805, 16
        %v3894 = vpop.permute.xlu0 %3893
        %3895 = vrot.lane.b32.xlu0 %v3806, 16
        %v3896 = vpop.permute.xlu0 %3895
        %3897 = vrot.lane.b32.xlu0 %v3807, 16
        %v3898 = vpop.permute.xlu0 %3897
        %3899 = vrot.lane.b32.xlu0 %v3808, 16
        %v3900 = vpop.permute.xlu0 %3899
        %3901 = vrot.lane.b32.xlu0 %v3809, 16
        %v3902 = vpop.permute.xlu0 %3901
        %3903 = vrot.lane.b32.xlu0 %v3810, 16
        %v3904 = vpop.permute.xlu0 %3903
        %3905 = vrot.lane.b32.xlu0 %v3811, 16
        %v3906 = vpop.permute.xlu0 %3905
        %3907 = vrot.lane.b32.xlu0 %v3812, 16
        %v3908 = vpop.permute.xlu0 %3907
        %3909 = vrot.lane.b32.xlu0 %v3813, 16
        %v3910 = vpop.permute.xlu0 %3909
        %3911 = vrot.lane.b32.xlu0 %v3814, 16
        %v3912 = vpop.permute.xlu0 %3911
        %3913 = vrot.lane.b32.xlu0 %v3815, 16
        %v3914 = vpop.permute.xlu0 %3913
        %3915 = vrot.lane.b32.xlu0 %v3816, 16
        %v3916 = vpop.permute.xlu0 %3915
        %3917 = vrot.lane.b32.xlu0 %v3817, 16
        %v3918 = vpop.permute.xlu0 %3917
        %3919 = vrot.lane.b32.xlu0 %v3818, 16
        %v3920 = vpop.permute.xlu0 %3919
        %3921 = vrot.lane.b32.xlu0 %v3819, 16
        %v3922 = vpop.permute.xlu0 %3921
        %3923 = vrot.lane.b32.xlu0 %v3820, 16
        %v3924 = vpop.permute.xlu0 %3923
        %3925 = vrot.lane.b32.xlu0 %v3821, 16
        %v3926 = vpop.permute.xlu0 %3925
        %3927 = vrot.lane.b32.xlu0 %v3822, 16
        %v3928 = vpop.permute.xlu0 %3927
        %3929 = vrot.lane.b32.xlu0 %v3823, 16
        %v3930 = vpop.permute.xlu0 %3929
        %3931 = vrot.lane.b32.xlu0 %v3824, 16
        %v3932 = vpop.permute.xlu0 %3931
        %3969 = vst.msk [vmem:[#allocation5] sm:$0xff] %vm1613, %v3862
        %3970 = vst.msk [vmem:[#allocation5 + $0x8] sm:$0xff] %vm1613, %v3864
        %3971 = vst.msk [vmem:[#allocation5 + $0x10] sm:$0xff] %vm1613, %v3866
        %3972 = vst.msk [vmem:[#allocation5 + $0x18] sm:$0xff] %vm1613, %v3868
        %3973 = vst.msk [vmem:[#allocation5 + $0x20] sm:$0xff] %vm1613, %v3870
        %3974 = vst.msk [vmem:[#allocation5 + $0x28] sm:$0xff] %vm1613, %v3872
        %3975 = vst.msk [vmem:[#allocation5 + $0x30] sm:$0xff] %vm1613, %v3874
        %3976 = vst.msk [vmem:[#allocation5 + $0x38] sm:$0xff] %vm1613, %v3876
        %3977 = vst.msk [vmem:[#allocation5 + $0x40] sm:$0xff] %vm1613, %v3878
        %3978 = vst.msk [vmem:[#allocation5 + $0x48] sm:$0xff] %vm1613, %v3880
        %3979 = vst.msk [vmem:[#allocation5 + $0x50] sm:$0xff] %vm1613, %v3882
        %3980 = vst.msk [vmem:[#allocation5 + $0x58] sm:$0xff] %vm1613, %v3884
        %3981 = vst.msk [vmem:[#allocation5 + $0x60] sm:$0xff] %vm1613, %v3886
        %3982 = vst.msk [vmem:[#allocation5 + $0x68] sm:$0xff] %vm1613, %v3888
        %3983 = vst.msk [vmem:[#allocation5 + $0x70] sm:$0xff] %vm1613, %v3890
        %3984 = vst.msk [vmem:[#allocation5 + $0x78] sm:$0xff] %vm1613, %v3892
        %3985 = vst.msk [vmem:[#allocation5 + $0x80] sm:$0xff] %vm1613, %v3894
        %3986 = vst.msk [vmem:[#allocation5 + $0x88] sm:$0xff] %vm1613, %v3896
        %3987 = vst.msk [vmem:[#allocation5 + $0x90] sm:$0xff] %vm1613, %v3898
        %3988 = vst.msk [vmem:[#allocation5 + $0x98] sm:$0xff] %vm1613, %v3900
        %3989 = vst.msk [vmem:[#allocation5 + $0xa0] sm:$0xff] %vm1613, %v3902
        %3990 = vst.msk [vmem:[#allocation5 + $0xa8] sm:$0xff] %vm1613, %v3904
        %3991 = vst.msk [vmem:[#allocation5 + $0xb0] sm:$0xff] %vm1613, %v3906
        %3992 = vst.msk [vmem:[#allocation5 + $0xb8] sm:$0xff] %vm1613, %v3908
        %3993 = vst.msk [vmem:[#allocation5 + $0xc0] sm:$0xff] %vm1613, %v3910
        %3994 = vst.msk [vmem:[#allocation5 + $0xc8] sm:$0xff] %vm1613, %v3912
        %3995 = vst.msk [vmem:[#allocation5 + $0xd0] sm:$0xff] %vm1613, %v3914
        %3996 = vst.msk [vmem:[#allocation5 + $0xd8] sm:$0xff] %vm1613, %v3916
        %3997 = vst.msk [vmem:[#allocation5 + $0xe0] sm:$0xff] %vm1613, %v3918
        %3998 = vst.msk [vmem:[#allocation5 + $0xe8] sm:$0xff] %vm1613, %v3920
        %3999 = vst.msk [vmem:[#allocation5 + $0xf0] sm:$0xff] %vm1613, %v3922
        %4000 = vst.msk [vmem:[#allocation5 + $0xf8] sm:$0xff] %vm1613, %v3924
        %4001 = vst.msk [vmem:[#allocation5 + $0x100] sm:$0xff] %vm1613, %v3926
        %4002 = vst.msk [vmem:[#allocation5 + $0x108] sm:$0xff] %vm1613, %v3928
        %4003 = vst.msk [vmem:[#allocation5 + $0x110] sm:$0xff] %vm1613, %v3930
        %4004 = vst.msk [vmem:[#allocation5 + $0x118] sm:$0xff] %vm1613, %v3932
        %v4005 = vld [vmem:[#allocation3 + $0x14] sm:$0xff]
        %v4006 = vld [vmem:[#allocation3 + $0x1c] sm:$0xff]
        %v4007 = vld [vmem:[#allocation3 + $0x24] sm:$0xff]
        %v4008 = vld [vmem:[#allocation3 + $0x2c] sm:$0xff]
        %v4009 = vld [vmem:[#allocation3 + $0x34] sm:$0xff]
        %v4010 = vld [vmem:[#allocation3 + $0x3c] sm:$0xff]
        %v4011 = vld [vmem:[#allocation3 + $0x44] sm:$0xff]
        %v4012 = vld [vmem:[#allocation3 + $0x4c] sm:$0xff]
        %v4013 = vld [vmem:[#allocation3 + $0x54] sm:$0xff]
        %v4014 = vld [vmem:[#allocation3 + $0x5c] sm:$0xff]
        %v4015 = vld [vmem:[#allocation3 + $0x64] sm:$0xff]
        %v4016 = vld [vmem:[#allocation3 + $0x6c] sm:$0xff]
        %v4017 = vld [vmem:[#allocation3 + $0x74] sm:$0xff]
        %v4018 = vld [vmem:[#allocation3 + $0x7c] sm:$0xff]
        %v4019 = vld [vmem:[#allocation3 + $0x84] sm:$0xff]
        %v4020 = vld [vmem:[#allocation3 + $0x8c] sm:$0xff]
        %v4021 = vld [vmem:[#allocation3 + $0x94] sm:$0xff]
        %v4022 = vld [vmem:[#allocation3 + $0x9c] sm:$0xff]
        %v4023 = vld [vmem:[#allocation3 + $0xa4] sm:$0xff]
        %v4024 = vld [vmem:[#allocation3 + $0xac] sm:$0xff]
        %v4025 = vld [vmem:[#allocation3 + $0xb4] sm:$0xff]
        %v4026 = vld [vmem:[#allocation3 + $0xbc] sm:$0xff]
        %v4027 = vld [vmem:[#allocation3 + $0xc4] sm:$0xff]
        %v4028 = vld [vmem:[#allocation3 + $0xcc] sm:$0xff]
        %v4029 = vld [vmem:[#allocation3 + $0xd4] sm:$0xff]
        %v4030 = vld [vmem:[#allocation3 + $0xdc] sm:$0xff]
        %v4031 = vld [vmem:[#allocation3 + $0xe4] sm:$0xff]
        %v4032 = vld [vmem:[#allocation3 + $0xec] sm:$0xff]
        %v4033 = vld [vmem:[#allocation3 + $0xf4] sm:$0xff]
        %v4034 = vld [vmem:[#allocation3 + $0xfc] sm:$0xff]
        %v4035 = vld [vmem:[#allocation3 + $0x104] sm:$0xff]
        %v4036 = vld [vmem:[#allocation3 + $0x10c] sm:$0xff]
        %v4037 = vld [vmem:[#allocation3 + $0x114] sm:$0xff]
        %v4038 = vld [vmem:[#allocation3 + $0x11c] sm:$0xff]
        %v4039 = vld [vmem:[#allocation3 + $0x124] sm:$0xff]
        %v4040 = vld [vmem:[#allocation3 + $0x12c] sm:$0xff]
        %4077 = vrot.lane.b32.xlu0 %v4005, 20
        %v4078 = vpop.permute.xlu0 %4077
        %4079 = vrot.lane.b32.xlu0 %v4006, 20
        %v4080 = vpop.permute.xlu0 %4079
        %4081 = vrot.lane.b32.xlu0 %v4007, 20
        %v4082 = vpop.permute.xlu0 %4081
        %4083 = vrot.lane.b32.xlu0 %v4008, 20
        %v4084 = vpop.permute.xlu0 %4083
        %4085 = vrot.lane.b32.xlu0 %v4009, 20
        %v4086 = vpop.permute.xlu0 %4085
        %4087 = vrot.lane.b32.xlu0 %v4010, 20
        %v4088 = vpop.permute.xlu0 %4087
        %4089 = vrot.lane.b32.xlu0 %v4011, 20
        %v4090 = vpop.permute.xlu0 %4089
        %4091 = vrot.lane.b32.xlu0 %v4012, 20
        %v4092 = vpop.permute.xlu0 %4091
        %4093 = vrot.lane.b32.xlu0 %v4013, 20
        %v4094 = vpop.permute.xlu0 %4093
        %4095 = vrot.lane.b32.xlu0 %v4014, 20
        %v4096 = vpop.permute.xlu0 %4095
        %4097 = vrot.lane.b32.xlu0 %v4015, 20
        %v4098 = vpop.permute.xlu0 %4097
        %4099 = vrot.lane.b32.xlu0 %v4016, 20
        %v4100 = vpop.permute.xlu0 %4099
        %4101 = vrot.lane.b32.xlu0 %v4017, 20
        %v4102 = vpop.permute.xlu0 %4101
        %4103 = vrot.lane.b32.xlu0 %v4018, 20
        %v4104 = vpop.permute.xlu0 %4103
        %4105 = vrot.lane.b32.xlu0 %v4019, 20
        %v4106 = vpop.permute.xlu0 %4105
        %4107 = vrot.lane.b32.xlu0 %v4020, 20
        %v4108 = vpop.permute.xlu0 %4107
        %4109 = vrot.lane.b32.xlu0 %v4021, 20
        %v4110 = vpop.permute.xlu0 %4109
        %4111 = vrot.lane.b32.xlu0 %v4022, 20
        %v4112 = vpop.permute.xlu0 %4111
        %4113 = vrot.lane.b32.xlu0 %v4023, 20
        %v4114 = vpop.permute.xlu0 %4113
        %4115 = vrot.lane.b32.xlu0 %v4024, 20
        %v4116 = vpop.permute.xlu0 %4115
        %4117 = vrot.lane.b32.xlu0 %v4025, 20
        %v4118 = vpop.permute.xlu0 %4117
        %4119 = vrot.lane.b32.xlu0 %v4026, 20
        %v4120 = vpop.permute.xlu0 %4119
        %4121 = vrot.lane.b32.xlu0 %v4027, 20
        %v4122 = vpop.permute.xlu0 %4121
        %4123 = vrot.lane.b32.xlu0 %v4028, 20
        %v4124 = vpop.permute.xlu0 %4123
        %4125 = vrot.lane.b32.xlu0 %v4029, 20
        %v4126 = vpop.permute.xlu0 %4125
        %4127 = vrot.lane.b32.xlu0 %v4030, 20
        %v4128 = vpop.permute.xlu0 %4127
        %4129 = vrot.lane.b32.xlu0 %v4031, 20
        %v4130 = vpop.permute.xlu0 %4129
        %4131 = vrot.lane.b32.xlu0 %v4032, 20
        %v4132 = vpop.permute.xlu0 %4131
        %4133 = vrot.lane.b32.xlu0 %v4033, 20
        %v4134 = vpop.permute.xlu0 %4133
        %4135 = vrot.lane.b32.xlu0 %v4034, 20
        %v4136 = vpop.permute.xlu0 %4135
        %4137 = vrot.lane.b32.xlu0 %v4035, 20
        %v4138 = vpop.permute.xlu0 %4137
        %4139 = vrot.lane.b32.xlu0 %v4036, 20
        %v4140 = vpop.permute.xlu0 %4139
        %4141 = vrot.lane.b32.xlu0 %v4037, 20
        %v4142 = vpop.permute.xlu0 %4141
        %4143 = vrot.lane.b32.xlu0 %v4038, 20
        %v4144 = vpop.permute.xlu0 %4143
        %4145 = vrot.lane.b32.xlu0 %v4039, 20
        %v4146 = vpop.permute.xlu0 %4145
        %4147 = vrot.lane.b32.xlu0 %v4040, 20
        %v4148 = vpop.permute.xlu0 %4147
        %4185 = vst.msk [vmem:[#allocation5] sm:$0xff] %vm1830, %v4078
        %4186 = vst.msk [vmem:[#allocation5 + $0x8] sm:$0xff] %vm1830, %v4080
        %4187 = vst.msk [vmem:[#allocation5 + $0x10] sm:$0xff] %vm1830, %v4082
        %4188 = vst.msk [vmem:[#allocation5 + $0x18] sm:$0xff] %vm1830, %v4084
        %4189 = vst.msk [vmem:[#allocation5 + $0x20] sm:$0xff] %vm1830, %v4086
        %4190 = vst.msk [vmem:[#allocation5 + $0x28] sm:$0xff] %vm1830, %v4088
        %4191 = vst.msk [vmem:[#allocation5 + $0x30] sm:$0xff] %vm1830, %v4090
        %4192 = vst.msk [vmem:[#allocation5 + $0x38] sm:$0xff] %vm1830, %v4092
        %4193 = vst.msk [vmem:[#allocation5 + $0x40] sm:$0xff] %vm1830, %v4094
        %4194 = vst.msk [vmem:[#allocation5 + $0x48] sm:$0xff] %vm1830, %v4096
        %4195 = vst.msk [vmem:[#allocation5 + $0x50] sm:$0xff] %vm1830, %v4098
        %4196 = vst.msk [vmem:[#allocation5 + $0x58] sm:$0xff] %vm1830, %v4100
        %4197 = vst.msk [vmem:[#allocation5 + $0x60] sm:$0xff] %vm1830, %v4102
        %4198 = vst.msk [vmem:[#allocation5 + $0x68] sm:$0xff] %vm1830, %v4104
        %4199 = vst.msk [vmem:[#allocation5 + $0x70] sm:$0xff] %vm1830, %v4106
        %4200 = vst.msk [vmem:[#allocation5 + $0x78] sm:$0xff] %vm1830, %v4108
        %4201 = vst.msk [vmem:[#allocation5 + $0x80] sm:$0xff] %vm1830, %v4110
        %4202 = vst.msk [vmem:[#allocation5 + $0x88] sm:$0xff] %vm1830, %v4112
        %4203 = vst.msk [vmem:[#allocation5 + $0x90] sm:$0xff] %vm1830, %v4114
        %4204 = vst.msk [vmem:[#allocation5 + $0x98] sm:$0xff] %vm1830, %v4116
        %4205 = vst.msk [vmem:[#allocation5 + $0xa0] sm:$0xff] %vm1830, %v4118
        %4206 = vst.msk [vmem:[#allocation5 + $0xa8] sm:$0xff] %vm1830, %v4120
        %4207 = vst.msk [vmem:[#allocation5 + $0xb0] sm:$0xff] %vm1830, %v4122
        %4208 = vst.msk [vmem:[#allocation5 + $0xb8] sm:$0xff] %vm1830, %v4124
        %4209 = vst.msk [vmem:[#allocation5 + $0xc0] sm:$0xff] %vm1830, %v4126
        %4210 = vst.msk [vmem:[#allocation5 + $0xc8] sm:$0xff] %vm1830, %v4128
        %4211 = vst.msk [vmem:[#allocation5 + $0xd0] sm:$0xff] %vm1830, %v4130
        %4212 = vst.msk [vmem:[#allocation5 + $0xd8] sm:$0xff] %vm1830, %v4132
        %4213 = vst.msk [vmem:[#allocation5 + $0xe0] sm:$0xff] %vm1830, %v4134
        %4214 = vst.msk [vmem:[#allocation5 + $0xe8] sm:$0xff] %vm1830, %v4136
        %4215 = vst.msk [vmem:[#allocation5 + $0xf0] sm:$0xff] %vm1830, %v4138
        %4216 = vst.msk [vmem:[#allocation5 + $0xf8] sm:$0xff] %vm1830, %v4140
        %4217 = vst.msk [vmem:[#allocation5 + $0x100] sm:$0xff] %vm1830, %v4142
        %4218 = vst.msk [vmem:[#allocation5 + $0x108] sm:$0xff] %vm1830, %v4144
        %4219 = vst.msk [vmem:[#allocation5 + $0x110] sm:$0xff] %vm1830, %v4146
        %4220 = vst.msk [vmem:[#allocation5 + $0x118] sm:$0xff] %vm1830, %v4148
        %v4221 = vld [vmem:[#allocation3 + $0x24] sm:$0xff]
        %v4222 = vld [vmem:[#allocation3 + $0x2c] sm:$0xff]
        %v4223 = vld [vmem:[#allocation3 + $0x34] sm:$0xff]
        %v4224 = vld [vmem:[#allocation3 + $0x3c] sm:$0xff]
        %v4225 = vld [vmem:[#allocation3 + $0x44] sm:$0xff]
        %v4226 = vld [vmem:[#allocation3 + $0x4c] sm:$0xff]
        %v4227 = vld [vmem:[#allocation3 + $0x54] sm:$0xff]
        %v4228 = vld [vmem:[#allocation3 + $0x5c] sm:$0xff]
        %v4229 = vld [vmem:[#allocation3 + $0x64] sm:$0xff]
        %v4230 = vld [vmem:[#allocation3 + $0x6c] sm:$0xff]
        %v4231 = vld [vmem:[#allocation3 + $0x74] sm:$0xff]
        %v4232 = vld [vmem:[#allocation3 + $0x7c] sm:$0xff]
        %v4233 = vld [vmem:[#allocation3 + $0x84] sm:$0xff]
        %v4234 = vld [vmem:[#allocation3 + $0x8c] sm:$0xff]
        %v4235 = vld [vmem:[#allocation3 + $0x94] sm:$0xff]
        %v4236 = vld [vmem:[#allocation3 + $0x9c] sm:$0xff]
        %v4237 = vld [vmem:[#allocation3 + $0xa4] sm:$0xff]
        %v4238 = vld [vmem:[#allocation3 + $0xac] sm:$0xff]
        %v4239 = vld [vmem:[#allocation3 + $0xb4] sm:$0xff]
        %v4240 = vld [vmem:[#allocation3 + $0xbc] sm:$0xff]
        %v4241 = vld [vmem:[#allocation3 + $0xc4] sm:$0xff]
        %v4242 = vld [vmem:[#allocation3 + $0xcc] sm:$0xff]
        %v4243 = vld [vmem:[#allocation3 + $0xd4] sm:$0xff]
        %v4244 = vld [vmem:[#allocation3 + $0xdc] sm:$0xff]
        %v4245 = vld [vmem:[#allocation3 + $0xe4] sm:$0xff]
        %v4246 = vld [vmem:[#allocation3 + $0xec] sm:$0xff]
        %v4247 = vld [vmem:[#allocation3 + $0xf4] sm:$0xff]
        %v4248 = vld [vmem:[#allocation3 + $0xfc] sm:$0xff]
        %v4249 = vld [vmem:[#allocation3 + $0x104] sm:$0xff]
        %v4250 = vld [vmem:[#allocation3 + $0x10c] sm:$0xff]
        %v4251 = vld [vmem:[#allocation3 + $0x114] sm:$0xff]
        %v4252 = vld [vmem:[#allocation3 + $0x11c] sm:$0xff]
        %v4253 = vld [vmem:[#allocation3 + $0x124] sm:$0xff]
        %v4254 = vld [vmem:[#allocation3 + $0x12c] sm:$0xff]
        %v4255 = vld [vmem:[#allocation3 + $0x134] sm:$0xff]
        %v4256 = vld [vmem:[#allocation3 + $0x13c] sm:$0xff]
        %4293 = vrot.lane.b32.xlu0 %v4221, 24
        %v4294 = vpop.permute.xlu0 %4293
        %4295 = vrot.lane.b32.xlu0 %v4222, 24
        %v4296 = vpop.permute.xlu0 %4295
        %4297 = vrot.lane.b32.xlu0 %v4223, 24
        %v4298 = vpop.permute.xlu0 %4297
        %4299 = vrot.lane.b32.xlu0 %v4224, 24
        %v4300 = vpop.permute.xlu0 %4299
        %4301 = vrot.lane.b32.xlu0 %v4225, 24
        %v4302 = vpop.permute.xlu0 %4301
        %4303 = vrot.lane.b32.xlu0 %v4226, 24
        %v4304 = vpop.permute.xlu0 %4303
        %4305 = vrot.lane.b32.xlu0 %v4227, 24
        %v4306 = vpop.permute.xlu0 %4305
        %4307 = vrot.lane.b32.xlu0 %v4228, 24
        %v4308 = vpop.permute.xlu0 %4307
        %4309 = vrot.lane.b32.xlu0 %v4229, 24
        %v4310 = vpop.permute.xlu0 %4309
        %4311 = vrot.lane.b32.xlu0 %v4230, 24
        %v4312 = vpop.permute.xlu0 %4311
        %4313 = vrot.lane.b32.xlu0 %v4231, 24
        %v4314 = vpop.permute.xlu0 %4313
        %4315 = vrot.lane.b32.xlu0 %v4232, 24
        %v4316 = vpop.permute.xlu0 %4315
        %4317 = vrot.lane.b32.xlu0 %v4233, 24
        %v4318 = vpop.permute.xlu0 %4317
        %4319 = vrot.lane.b32.xlu0 %v4234, 24
        %v4320 = vpop.permute.xlu0 %4319
        %4321 = vrot.lane.b32.xlu0 %v4235, 24
        %v4322 = vpop.permute.xlu0 %4321
        %4323 = vrot.lane.b32.xlu0 %v4236, 24
        %v4324 = vpop.permute.xlu0 %4323
        %4325 = vrot.lane.b32.xlu0 %v4237, 24
        %v4326 = vpop.permute.xlu0 %4325
        %4327 = vrot.lane.b32.xlu0 %v4238, 24
        %v4328 = vpop.permute.xlu0 %4327
        %4329 = vrot.lane.b32.xlu0 %v4239, 24
        %v4330 = vpop.permute.xlu0 %4329
        %4331 = vrot.lane.b32.xlu0 %v4240, 24
        %v4332 = vpop.permute.xlu0 %4331
        %4333 = vrot.lane.b32.xlu0 %v4241, 24
        %v4334 = vpop.permute.xlu0 %4333
        %4335 = vrot.lane.b32.xlu0 %v4242, 24
        %v4336 = vpop.permute.xlu0 %4335
        %4337 = vrot.lane.b32.xlu0 %v4243, 24
        %v4338 = vpop.permute.xlu0 %4337
        %4339 = vrot.lane.b32.xlu0 %v4244, 24
        %v4340 = vpop.permute.xlu0 %4339
        %4341 = vrot.lane.b32.xlu0 %v4245, 24
        %v4342 = vpop.permute.xlu0 %4341
        %4343 = vrot.lane.b32.xlu0 %v4246, 24
        %v4344 = vpop.permute.xlu0 %4343
        %4345 = vrot.lane.b32.xlu0 %v4247, 24
        %v4346 = vpop.permute.xlu0 %4345
        %4347 = vrot.lane.b32.xlu0 %v4248, 24
        %v4348 = vpop.permute.xlu0 %4347
        %4349 = vrot.lane.b32.xlu0 %v4249, 24
        %v4350 = vpop.permute.xlu0 %4349
        %4351 = vrot.lane.b32.xlu0 %v4250, 24
        %v4352 = vpop.permute.xlu0 %4351
        %4353 = vrot.lane.b32.xlu0 %v4251, 24
        %v4354 = vpop.permute.xlu0 %4353
        %4355 = vrot.lane.b32.xlu0 %v4252, 24
        %v4356 = vpop.permute.xlu0 %4355
        %4357 = vrot.lane.b32.xlu0 %v4253, 24
        %v4358 = vpop.permute.xlu0 %4357
        %4359 = vrot.lane.b32.xlu0 %v4254, 24
        %v4360 = vpop.permute.xlu0 %4359
        %4361 = vrot.lane.b32.xlu0 %v4255, 24
        %v4362 = vpop.permute.xlu0 %4361
        %4363 = vrot.lane.b32.xlu0 %v4256, 24
        %v4364 = vpop.permute.xlu0 %4363
        %4401 = vst.msk [vmem:[#allocation5] sm:$0xff] %vm2047, %v4294
        %4402 = vst.msk [vmem:[#allocation5 + $0x8] sm:$0xff] %vm2047, %v4296
        %4403 = vst.msk [vmem:[#allocation5 + $0x10] sm:$0xff] %vm2047, %v4298
        %4404 = vst.msk [vmem:[#allocation5 + $0x18] sm:$0xff] %vm2047, %v4300
        %4405 = vst.msk [vmem:[#allocation5 + $0x20] sm:$0xff] %vm2047, %v4302
        %4406 = vst.msk [vmem:[#allocation5 + $0x28] sm:$0xff] %vm2047, %v4304
        %4407 = vst.msk [vmem:[#allocation5 + $0x30] sm:$0xff] %vm2047, %v4306
        %4408 = vst.msk [vmem:[#allocation5 + $0x38] sm:$0xff] %vm2047, %v4308
        %4409 = vst.msk [vmem:[#allocation5 + $0x40] sm:$0xff] %vm2047, %v4310
        %4410 = vst.msk [vmem:[#allocation5 + $0x48] sm:$0xff] %vm2047, %v4312
        %4411 = vst.msk [vmem:[#allocation5 + $0x50] sm:$0xff] %vm2047, %v4314
        %4412 = vst.msk [vmem:[#allocation5 + $0x58] sm:$0xff] %vm2047, %v4316
        %4413 = vst.msk [vmem:[#allocation5 + $0x60] sm:$0xff] %vm2047, %v4318
        %4414 = vst.msk [vmem:[#allocation5 + $0x68] sm:$0xff] %vm2047, %v4320
        %4415 = vst.msk [vmem:[#allocation5 + $0x70] sm:$0xff] %vm2047, %v4322
        %4416 = vst.msk [vmem:[#allocation5 + $0x78] sm:$0xff] %vm2047, %v4324
        %4417 = vst.msk [vmem:[#allocation5 + $0x80] sm:$0xff] %vm2047, %v4326
        %4418 = vst.msk [vmem:[#allocation5 + $0x88] sm:$0xff] %vm2047, %v4328
        %4419 = vst.msk [vmem:[#allocation5 + $0x90] sm:$0xff] %vm2047, %v4330
        %4420 = vst.msk [vmem:[#allocation5 + $0x98] sm:$0xff] %vm2047, %v4332
        %4421 = vst.msk [vmem:[#allocation5 + $0xa0] sm:$0xff] %vm2047, %v4334
        %4422 = vst.msk [vmem:[#allocation5 + $0xa8] sm:$0xff] %vm2047, %v4336
        %4423 = vst.msk [vmem:[#allocation5 + $0xb0] sm:$0xff] %vm2047, %v4338
        %4424 = vst.msk [vmem:[#allocation5 + $0xb8] sm:$0xff] %vm2047, %v4340
        %4425 = vst.msk [vmem:[#allocation5 + $0xc0] sm:$0xff] %vm2047, %v4342
        %4426 = vst.msk [vmem:[#allocation5 + $0xc8] sm:$0xff] %vm2047, %v4344
        %4427 = vst.msk [vmem:[#allocation5 + $0xd0] sm:$0xff] %vm2047, %v4346
        %4428 = vst.msk [vmem:[#allocation5 + $0xd8] sm:$0xff] %vm2047, %v4348
        %4429 = vst.msk [vmem:[#allocation5 + $0xe0] sm:$0xff] %vm2047, %v4350
        %4430 = vst.msk [vmem:[#allocation5 + $0xe8] sm:$0xff] %vm2047, %v4352
        %4431 = vst.msk [vmem:[#allocation5 + $0xf0] sm:$0xff] %vm2047, %v4354
        %4432 = vst.msk [vmem:[#allocation5 + $0xf8] sm:$0xff] %vm2047, %v4356
        %4433 = vst.msk [vmem:[#allocation5 + $0x100] sm:$0xff] %vm2047, %v4358
        %4434 = vst.msk [vmem:[#allocation5 + $0x108] sm:$0xff] %vm2047, %v4360
        %4435 = vst.msk [vmem:[#allocation5 + $0x110] sm:$0xff] %vm2047, %v4362
        %4436 = vst.msk [vmem:[#allocation5 + $0x118] sm:$0xff] %vm2047, %v4364
        %v4437 = vld [vmem:[#allocation3 + $0x25] sm:$0xff]
        %v4438 = vld [vmem:[#allocation3 + $0x2d] sm:$0xff]
        %v4439 = vld [vmem:[#allocation3 + $0x35] sm:$0xff]
        %v4440 = vld [vmem:[#allocation3 + $0x3d] sm:$0xff]
        %v4441 = vld [vmem:[#allocation3 + $0x45] sm:$0xff]
        %v4442 = vld [vmem:[#allocation3 + $0x4d] sm:$0xff]
        %v4443 = vld [vmem:[#allocation3 + $0x55] sm:$0xff]
        %v4444 = vld [vmem:[#allocation3 + $0x5d] sm:$0xff]
        %v4445 = vld [vmem:[#allocation3 + $0x65] sm:$0xff]
        %v4446 = vld [vmem:[#allocation3 + $0x6d] sm:$0xff]
        %v4447 = vld [vmem:[#allocation3 + $0x75] sm:$0xff]
        %v4448 = vld [vmem:[#allocation3 + $0x7d] sm:$0xff]
        %v4449 = vld [vmem:[#allocation3 + $0x85] sm:$0xff]
        %v4450 = vld [vmem:[#allocation3 + $0x8d] sm:$0xff]
        %v4451 = vld [vmem:[#allocation3 + $0x95] sm:$0xff]
        %v4452 = vld [vmem:[#allocation3 + $0x9d] sm:$0xff]
        %v4453 = vld [vmem:[#allocation3 + $0xa5] sm:$0xff]
        %v4454 = vld [vmem:[#allocation3 + $0xad] sm:$0xff]
        %v4455 = vld [vmem:[#allocation3 + $0xb5] sm:$0xff]
        %v4456 = vld [vmem:[#allocation3 + $0xbd] sm:$0xff]
        %v4457 = vld [vmem:[#allocation3 + $0xc5] sm:$0xff]
        %v4458 = vld [vmem:[#allocation3 + $0xcd] sm:$0xff]
        %v4459 = vld [vmem:[#allocation3 + $0xd5] sm:$0xff]
        %v4460 = vld [vmem:[#allocation3 + $0xdd] sm:$0xff]
        %v4461 = vld [vmem:[#allocation3 + $0xe5] sm:$0xff]
        %v4462 = vld [vmem:[#allocation3 + $0xed] sm:$0xff]
        %v4463 = vld [vmem:[#allocation3 + $0xf5] sm:$0xff]
        %v4464 = vld [vmem:[#allocation3 + $0xfd] sm:$0xff]
        %v4465 = vld [vmem:[#allocation3 + $0x105] sm:$0xff]
        %v4466 = vld [vmem:[#allocation3 + $0x10d] sm:$0xff]
        %v4467 = vld [vmem:[#allocation3 + $0x115] sm:$0xff]
        %v4468 = vld [vmem:[#allocation3 + $0x11d] sm:$0xff]
        %v4469 = vld [vmem:[#allocation3 + $0x125] sm:$0xff]
        %v4470 = vld [vmem:[#allocation3 + $0x12d] sm:$0xff]
        %v4471 = vld [vmem:[#allocation3 + $0x135] sm:$0xff]
        %v4472 = vld [vmem:[#allocation3 + $0x13d] sm:$0xff]
        %4509 = vrot.lane.b32.xlu0 %v4437, 28
        %v4510 = vpop.permute.xlu0 %4509
        %4511 = vrot.lane.b32.xlu0 %v4438, 28
        %v4512 = vpop.permute.xlu0 %4511
        %4513 = vrot.lane.b32.xlu0 %v4439, 28
        %v4514 = vpop.permute.xlu0 %4513
        %4515 = vrot.lane.b32.xlu0 %v4440, 28
        %v4516 = vpop.permute.xlu0 %4515
        %4517 = vrot.lane.b32.xlu0 %v4441, 28
        %v4518 = vpop.permute.xlu0 %4517
        %4519 = vrot.lane.b32.xlu0 %v4442, 28
        %v4520 = vpop.permute.xlu0 %4519
        %4521 = vrot.lane.b32.xlu0 %v4443, 28
        %v4522 = vpop.permute.xlu0 %4521
        %4523 = vrot.lane.b32.xlu0 %v4444, 28
        %v4524 = vpop.permute.xlu0 %4523
        %4525 = vrot.lane.b32.xlu0 %v4445, 28
        %v4526 = vpop.permute.xlu0 %4525
        %4527 = vrot.lane.b32.xlu0 %v4446, 28
        %v4528 = vpop.permute.xlu0 %4527
        %4529 = vrot.lane.b32.xlu0 %v4447, 28
        %v4530 = vpop.permute.xlu0 %4529
        %4531 = vrot.lane.b32.xlu0 %v4448, 28
        %v4532 = vpop.permute.xlu0 %4531
        %4533 = vrot.lane.b32.xlu0 %v4449, 28
        %v4534 = vpop.permute.xlu0 %4533
        %4535 = vrot.lane.b32.xlu0 %v4450, 28
        %v4536 = vpop.permute.xlu0 %4535
        %4537 = vrot.lane.b32.xlu0 %v4451, 28
        %v4538 = vpop.permute.xlu0 %4537
        %4539 = vrot.lane.b32.xlu0 %v4452, 28
        %v4540 = vpop.permute.xlu0 %4539
        %4541 = vrot.lane.b32.xlu0 %v4453, 28
        %v4542 = vpop.permute.xlu0 %4541
        %4543 = vrot.lane.b32.xlu0 %v4454, 28
        %v4544 = vpop.permute.xlu0 %4543
        %4545 = vrot.lane.b32.xlu0 %v4455, 28
        %v4546 = vpop.permute.xlu0 %4545
        %4547 = vrot.lane.b32.xlu0 %v4456, 28
        %v4548 = vpop.permute.xlu0 %4547
        %4549 = vrot.lane.b32.xlu0 %v4457, 28
        %v4550 = vpop.permute.xlu0 %4549
        %4551 = vrot.lane.b32.xlu0 %v4458, 28
        %v4552 = vpop.permute.xlu0 %4551
        %4553 = vrot.lane.b32.xlu0 %v4459, 28
        %v4554 = vpop.permute.xlu0 %4553
        %4555 = vrot.lane.b32.xlu0 %v4460, 28
        %v4556 = vpop.permute.xlu0 %4555
        %4557 = vrot.lane.b32.xlu0 %v4461, 28
        %v4558 = vpop.permute.xlu0 %4557
        %4559 = vrot.lane.b32.xlu0 %v4462, 28
        %v4560 = vpop.permute.xlu0 %4559
        %4561 = vrot.lane.b32.xlu0 %v4463, 28
        %v4562 = vpop.permute.xlu0 %4561
        %4563 = vrot.lane.b32.xlu0 %v4464, 28
        %v4564 = vpop.permute.xlu0 %4563
        %4565 = vrot.lane.b32.xlu0 %v4465, 28
        %v4566 = vpop.permute.xlu0 %4565
        %4567 = vrot.lane.b32.xlu0 %v4466, 28
        %v4568 = vpop.permute.xlu0 %4567
        %4569 = vrot.lane.b32.xlu0 %v4467, 28
        %v4570 = vpop.permute.xlu0 %4569
        %4571 = vrot.lane.b32.xlu0 %v4468, 28
        %v4572 = vpop.permute.xlu0 %4571
        %4573 = vrot.lane.b32.xlu0 %v4469, 28
        %v4574 = vpop.permute.xlu0 %4573
        %4575 = vrot.lane.b32.xlu0 %v4470, 28
        %v4576 = vpop.permute.xlu0 %4575
        %4577 = vrot.lane.b32.xlu0 %v4471, 28
        %v4578 = vpop.permute.xlu0 %4577
        %4579 = vrot.lane.b32.xlu0 %v4472, 28
        %v4580 = vpop.permute.xlu0 %4579
        %4617 = vst.msk [vmem:[#allocation5] sm:$0xff] %vm2264, %v4510
        %4618 = vst.msk [vmem:[#allocation5 + $0x8] sm:$0xff] %vm2264, %v4512
        %4619 = vst.msk [vmem:[#allocation5 + $0x10] sm:$0xff] %vm2264, %v4514
        %4620 = vst.msk [vmem:[#allocation5 + $0x18] sm:$0xff] %vm2264, %v4516
        %4621 = vst.msk [vmem:[#allocation5 + $0x20] sm:$0xff] %vm2264, %v4518
        %4622 = vst.msk [vmem:[#allocation5 + $0x28] sm:$0xff] %vm2264, %v4520
        %4623 = vst.msk [vmem:[#allocation5 + $0x30] sm:$0xff] %vm2264, %v4522
        %4624 = vst.msk [vmem:[#allocation5 + $0x38] sm:$0xff] %vm2264, %v4524
        %4625 = vst.msk [vmem:[#allocation5 + $0x40] sm:$0xff] %vm2264, %v4526
        %4626 = vst.msk [vmem:[#allocation5 + $0x48] sm:$0xff] %vm2264, %v4528
        %4627 = vst.msk [vmem:[#allocation5 + $0x50] sm:$0xff] %vm2264, %v4530
        %4628 = vst.msk [vmem:[#allocation5 + $0x58] sm:$0xff] %vm2264, %v4532
        %4629 = vst.msk [vmem:[#allocation5 + $0x60] sm:$0xff] %vm2264, %v4534
        %4630 = vst.msk [vmem:[#allocation5 + $0x68] sm:$0xff] %vm2264, %v4536
        %4631 = vst.msk [vmem:[#allocation5 + $0x70] sm:$0xff] %vm2264, %v4538
        %4632 = vst.msk [vmem:[#allocation5 + $0x78] sm:$0xff] %vm2264, %v4540
        %4633 = vst.msk [vmem:[#allocation5 + $0x80] sm:$0xff] %vm2264, %v4542
        %4634 = vst.msk [vmem:[#allocation5 + $0x88] sm:$0xff] %vm2264, %v4544
        %4635 = vst.msk [vmem:[#allocation5 + $0x90] sm:$0xff] %vm2264, %v4546
        %4636 = vst.msk [vmem:[#allocation5 + $0x98] sm:$0xff] %vm2264, %v4548
        %4637 = vst.msk [vmem:[#allocation5 + $0xa0] sm:$0xff] %vm2264, %v4550
        %4638 = vst.msk [vmem:[#allocation5 + $0xa8] sm:$0xff] %vm2264, %v4552
        %4639 = vst.msk [vmem:[#allocation5 + $0xb0] sm:$0xff] %vm2264, %v4554
        %4640 = vst.msk [vmem:[#allocation5 + $0xb8] sm:$0xff] %vm2264, %v4556
        %4641 = vst.msk [vmem:[#allocation5 + $0xc0] sm:$0xff] %vm2264, %v4558
        %4642 = vst.msk [vmem:[#allocation5 + $0xc8] sm:$0xff] %vm2264, %v4560
        %4643 = vst.msk [vmem:[#allocation5 + $0xd0] sm:$0xff] %vm2264, %v4562
        %4644 = vst.msk [vmem:[#allocation5 + $0xd8] sm:$0xff] %vm2264, %v4564
        %4645 = vst.msk [vmem:[#allocation5 + $0xe0] sm:$0xff] %vm2264, %v4566
        %4646 = vst.msk [vmem:[#allocation5 + $0xe8] sm:$0xff] %vm2264, %v4568
        %4647 = vst.msk [vmem:[#allocation5 + $0xf0] sm:$0xff] %vm2264, %v4570
        %4648 = vst.msk [vmem:[#allocation5 + $0xf8] sm:$0xff] %vm2264, %v4572
        %4649 = vst.msk [vmem:[#allocation5 + $0x100] sm:$0xff] %vm2264, %v4574
        %4650 = vst.msk [vmem:[#allocation5 + $0x108] sm:$0xff] %vm2264, %v4576
        %4651 = vst.msk [vmem:[#allocation5 + $0x110] sm:$0xff] %vm2264, %v4578
        %4652 = vst.msk [vmem:[#allocation5 + $0x118] sm:$0xff] %vm2264, %v4580
        %v4653 = vld [vmem:[#allocation3 + $0x26] sm:$0xff]
        %v4654 = vld [vmem:[#allocation3 + $0x2e] sm:$0xff]
        %v4655 = vld [vmem:[#allocation3 + $0x36] sm:$0xff]
        %v4656 = vld [vmem:[#allocation3 + $0x3e] sm:$0xff]
        %v4657 = vld [vmem:[#allocation3 + $0x46] sm:$0xff]
        %v4658 = vld [vmem:[#allocation3 + $0x4e] sm:$0xff]
        %v4659 = vld [vmem:[#allocation3 + $0x56] sm:$0xff]
        %v4660 = vld [vmem:[#allocation3 + $0x5e] sm:$0xff]
        %v4661 = vld [vmem:[#allocation3 + $0x66] sm:$0xff]
        %v4662 = vld [vmem:[#allocation3 + $0x6e] sm:$0xff]
        %v4663 = vld [vmem:[#allocation3 + $0x76] sm:$0xff]
        %v4664 = vld [vmem:[#allocation3 + $0x7e] sm:$0xff]
        %v4665 = vld [vmem:[#allocation3 + $0x86] sm:$0xff]
        %v4666 = vld [vmem:[#allocation3 + $0x8e] sm:$0xff]
        %v4667 = vld [vmem:[#allocation3 + $0x96] sm:$0xff]
        %v4668 = vld [vmem:[#allocation3 + $0x9e] sm:$0xff]
        %v4669 = vld [vmem:[#allocation3 + $0xa6] sm:$0xff]
        %v4670 = vld [vmem:[#allocation3 + $0xae] sm:$0xff]
        %v4671 = vld [vmem:[#allocation3 + $0xb6] sm:$0xff]
        %v4672 = vld [vmem:[#allocation3 + $0xbe] sm:$0xff]
        %v4673 = vld [vmem:[#allocation3 + $0xc6] sm:$0xff]
        %v4674 = vld [vmem:[#allocation3 + $0xce] sm:$0xff]
        %v4675 = vld [vmem:[#allocation3 + $0xd6] sm:$0xff]
        %v4676 = vld [vmem:[#allocation3 + $0xde] sm:$0xff]
        %v4677 = vld [vmem:[#allocation3 + $0xe6] sm:$0xff]
        %v4678 = vld [vmem:[#allocation3 + $0xee] sm:$0xff]
        %v4679 = vld [vmem:[#allocation3 + $0xf6] sm:$0xff]
        %v4680 = vld [vmem:[#allocation3 + $0xfe] sm:$0xff]
        %v4681 = vld [vmem:[#allocation3 + $0x106] sm:$0xff]
        %v4682 = vld [vmem:[#allocation3 + $0x10e] sm:$0xff]
        %v4683 = vld [vmem:[#allocation3 + $0x116] sm:$0xff]
        %v4684 = vld [vmem:[#allocation3 + $0x11e] sm:$0xff]
        %v4685 = vld [vmem:[#allocation3 + $0x126] sm:$0xff]
        %v4686 = vld [vmem:[#allocation3 + $0x12e] sm:$0xff]
        %v4687 = vld [vmem:[#allocation3 + $0x136] sm:$0xff]
        %v4688 = vld [vmem:[#allocation3 + $0x13e] sm:$0xff]
        %4725 = vrot.lane.b32.xlu0 %v4653, 32
        %v4726 = vpop.permute.xlu0 %4725
        %4727 = vrot.lane.b32.xlu0 %v4654, 32
        %v4728 = vpop.permute.xlu0 %4727
        %4729 = vrot.lane.b32.xlu0 %v4655, 32
        %v4730 = vpop.permute.xlu0 %4729
        %4731 = vrot.lane.b32.xlu0 %v4656, 32
        %v4732 = vpop.permute.xlu0 %4731
        %4733 = vrot.lane.b32.xlu0 %v4657, 32
        %v4734 = vpop.permute.xlu0 %4733
        %4735 = vrot.lane.b32.xlu0 %v4658, 32
        %v4736 = vpop.permute.xlu0 %4735
        %4737 = vrot.lane.b32.xlu0 %v4659, 32
        %v4738 = vpop.permute.xlu0 %4737
        %4739 = vrot.lane.b32.xlu0 %v4660, 32
        %v4740 = vpop.permute.xlu0 %4739
        %4741 = vrot.lane.b32.xlu0 %v4661, 32
        %v4742 = vpop.permute.xlu0 %4741
        %4743 = vrot.lane.b32.xlu0 %v4662, 32
        %v4744 = vpop.permute.xlu0 %4743
        %4745 = vrot.lane.b32.xlu0 %v4663, 32
        %v4746 = vpop.permute.xlu0 %4745
        %4747 = vrot.lane.b32.xlu0 %v4664, 32
        %v4748 = vpop.permute.xlu0 %4747
        %4749 = vrot.lane.b32.xlu0 %v4665, 32
        %v4750 = vpop.permute.xlu0 %4749
        %4751 = vrot.lane.b32.xlu0 %v4666, 32
        %v4752 = vpop.permute.xlu0 %4751
        %4753 = vrot.lane.b32.xlu0 %v4667, 32
        %v4754 = vpop.permute.xlu0 %4753
        %4755 = vrot.lane.b32.xlu0 %v4668, 32
        %v4756 = vpop.permute.xlu0 %4755
        %4757 = vrot.lane.b32.xlu0 %v4669, 32
        %v4758 = vpop.permute.xlu0 %4757
        %4759 = vrot.lane.b32.xlu0 %v4670, 32
        %v4760 = vpop.permute.xlu0 %4759
        %4761 = vrot.lane.b32.xlu0 %v4671, 32
        %v4762 = vpop.permute.xlu0 %4761
        %4763 = vrot.lane.b32.xlu0 %v4672, 32
        %v4764 = vpop.permute.xlu0 %4763
        %4765 = vrot.lane.b32.xlu0 %v4673, 32
        %v4766 = vpop.permute.xlu0 %4765
        %4767 = vrot.lane.b32.xlu0 %v4674, 32
        %v4768 = vpop.permute.xlu0 %4767
        %4769 = vrot.lane.b32.xlu0 %v4675, 32
        %v4770 = vpop.permute.xlu0 %4769
        %4771 = vrot.lane.b32.xlu0 %v4676, 32
        %v4772 = vpop.permute.xlu0 %4771
        %4773 = vrot.lane.b32.xlu0 %v4677, 32
        %v4774 = vpop.permute.xlu0 %4773
        %4775 = vrot.lane.b32.xlu0 %v4678, 32
        %v4776 = vpop.permute.xlu0 %4775
        %4777 = vrot.lane.b32.xlu0 %v4679, 32
        %v4778 = vpop.permute.xlu0 %4777
        %4779 = vrot.lane.b32.xlu0 %v4680, 32
        %v4780 = vpop.permute.xlu0 %4779
        %4781 = vrot.lane.b32.xlu0 %v4681, 32
        %v4782 = vpop.permute.xlu0 %4781
        %4783 = vrot.lane.b32.xlu0 %v4682, 32
        %v4784 = vpop.permute.xlu0 %4783
        %4785 = vrot.lane.b32.xlu0 %v4683, 32
        %v4786 = vpop.permute.xlu0 %4785
        %4787 = vrot.lane.b32.xlu0 %v4684, 32
        %v4788 = vpop.permute.xlu0 %4787
        %4789 = vrot.lane.b32.xlu0 %v4685, 32
        %v4790 = vpop.permute.xlu0 %4789
        %4791 = vrot.lane.b32.xlu0 %v4686, 32
        %v4792 = vpop.permute.xlu0 %4791
        %4793 = vrot.lane.b32.xlu0 %v4687, 32
        %v4794 = vpop.permute.xlu0 %4793
        %4795 = vrot.lane.b32.xlu0 %v4688, 32
        %v4796 = vpop.permute.xlu0 %4795
        %4833 = vst.msk [vmem:[#allocation5] sm:$0xff] %vm2481, %v4726
        %4834 = vst.msk [vmem:[#allocation5 + $0x8] sm:$0xff] %vm2481, %v4728
        %4835 = vst.msk [vmem:[#allocation5 + $0x10] sm:$0xff] %vm2481, %v4730
        %4836 = vst.msk [vmem:[#allocation5 + $0x18] sm:$0xff] %vm2481, %v4732
        %4837 = vst.msk [vmem:[#allocation5 + $0x20] sm:$0xff] %vm2481, %v4734
        %4838 = vst.msk [vmem:[#allocation5 + $0x28] sm:$0xff] %vm2481, %v4736
        %4839 = vst.msk [vmem:[#allocation5 + $0x30] sm:$0xff] %vm2481, %v4738
        %4840 = vst.msk [vmem:[#allocation5 + $0x38] sm:$0xff] %vm2481, %v4740
        %4841 = vst.msk [vmem:[#allocation5 + $0x40] sm:$0xff] %vm2481, %v4742
        %4842 = vst.msk [vmem:[#allocation5 + $0x48] sm:$0xff] %vm2481, %v4744
        %4843 = vst.msk [vmem:[#allocation5 + $0x50] sm:$0xff] %vm2481, %v4746
        %4844 = vst.msk [vmem:[#allocation5 + $0x58] sm:$0xff] %vm2481, %v4748
        %4845 = vst.msk [vmem:[#allocation5 + $0x60] sm:$0xff] %vm2481, %v4750
        %4846 = vst.msk [vmem:[#allocation5 + $0x68] sm:$0xff] %vm2481, %v4752
        %4847 = vst.msk [vmem:[#allocation5 + $0x70] sm:$0xff] %vm2481, %v4754
        %4848 = vst.msk [vmem:[#allocation5 + $0x78] sm:$0xff] %vm2481, %v4756
        %4849 = vst.msk [vmem:[#allocation5 + $0x80] sm:$0xff] %vm2481, %v4758
        %4850 = vst.msk [vmem:[#allocation5 + $0x88] sm:$0xff] %vm2481, %v4760
        %4851 = vst.msk [vmem:[#allocation5 + $0x90] sm:$0xff] %vm2481, %v4762
        %4852 = vst.msk [vmem:[#allocation5 + $0x98] sm:$0xff] %vm2481, %v4764
        %4853 = vst.msk [vmem:[#allocation5 + $0xa0] sm:$0xff] %vm2481, %v4766
        %4854 = vst.msk [vmem:[#allocation5 + $0xa8] sm:$0xff] %vm2481, %v4768
        %4855 = vst.msk [vmem:[#allocation5 + $0xb0] sm:$0xff] %vm2481, %v4770
        %4856 = vst.msk [vmem:[#allocation5 + $0xb8] sm:$0xff] %vm2481, %v4772
        %4857 = vst.msk [vmem:[#allocation5 + $0xc0] sm:$0xff] %vm2481, %v4774
        %4858 = vst.msk [vmem:[#allocation5 + $0xc8] sm:$0xff] %vm2481, %v4776
        %4859 = vst.msk [vmem:[#allocation5 + $0xd0] sm:$0xff] %vm2481, %v4778
        %4860 = vst.msk [vmem:[#allocation5 + $0xd8] sm:$0xff] %vm2481, %v4780
        %4861 = vst.msk [vmem:[#allocation5 + $0xe0] sm:$0xff] %vm2481, %v4782
        %4862 = vst.msk [vmem:[#allocation5 + $0xe8] sm:$0xff] %vm2481, %v4784
        %4863 = vst.msk [vmem:[#allocation5 + $0xf0] sm:$0xff] %vm2481, %v4786
        %4864 = vst.msk [vmem:[#allocation5 + $0xf8] sm:$0xff] %vm2481, %v4788
        %4865 = vst.msk [vmem:[#allocation5 + $0x100] sm:$0xff] %vm2481, %v4790
        %4866 = vst.msk [vmem:[#allocation5 + $0x108] sm:$0xff] %vm2481, %v4792
        %4867 = vst.msk [vmem:[#allocation5 + $0x110] sm:$0xff] %vm2481, %v4794
        %4868 = vst.msk [vmem:[#allocation5 + $0x118] sm:$0xff] %vm2481, %v4796
        %v4869 = vld [vmem:[#allocation5] sm:$0xff]
        %v4870 = vld [vmem:[#allocation5 + $0x8] sm:$0xff]
        %v4871 = vld [vmem:[#allocation5 + $0x10] sm:$0xff]
        %v4872 = vld [vmem:[#allocation5 + $0x18] sm:$0xff]
        %v4873 = vld [vmem:[#allocation5 + $0x20] sm:$0xff]
        %v4874 = vld [vmem:[#allocation5 + $0x28] sm:$0xff]
        %v4875 = vld [vmem:[#allocation5 + $0x30] sm:$0xff]
        %v4876 = vld [vmem:[#allocation5 + $0x38] sm:$0xff]
        %v4877 = vld [vmem:[#allocation5 + $0x40] sm:$0xff]
        %v4878 = vld [vmem:[#allocation5 + $0x48] sm:$0xff]
        %v4879 = vld [vmem:[#allocation5 + $0x50] sm:$0xff]
        %v4880 = vld [vmem:[#allocation5 + $0x58] sm:$0xff]
        %v4881 = vld [vmem:[#allocation5 + $0x60] sm:$0xff]
        %v4882 = vld [vmem:[#allocation5 + $0x68] sm:$0xff]
        %v4883 = vld [vmem:[#allocation5 + $0x70] sm:$0xff]
        %v4884 = vld [vmem:[#allocation5 + $0x78] sm:$0xff]
        %v4885 = vld [vmem:[#allocation5 + $0x80] sm:$0xff]
        %v4886 = vld [vmem:[#allocation5 + $0x88] sm:$0xff]
        %v4887 = vld [vmem:[#allocation5 + $0x90] sm:$0xff]
        %v4888 = vld [vmem:[#allocation5 + $0x98] sm:$0xff]
        %v4889 = vld [vmem:[#allocation5 + $0xa0] sm:$0xff]
        %v4890 = vld [vmem:[#allocation5 + $0xa8] sm:$0xff]
        %v4891 = vld [vmem:[#allocation5 + $0xb0] sm:$0xff]
        %v4892 = vld [vmem:[#allocation5 + $0xb8] sm:$0xff]
        %v4893 = vld [vmem:[#allocation5 + $0xc0] sm:$0xff]
        %v4894 = vld [vmem:[#allocation5 + $0xc8] sm:$0xff]
        %v4895 = vld [vmem:[#allocation5 + $0xd0] sm:$0xff]
        %v4896 = vld [vmem:[#allocation5 + $0xd8] sm:$0xff]
        %v4897 = vld [vmem:[#allocation5 + $0xe0] sm:$0xff]
        %v4898 = vld [vmem:[#allocation5 + $0xe8] sm:$0xff]
        %v4899 = vld [vmem:[#allocation5 + $0xf0] sm:$0xff]
        %v4900 = vld [vmem:[#allocation5 + $0xf8] sm:$0xff]
        %v4901 = vld [vmem:[#allocation5 + $0x100] sm:$0xff]
        %v4902 = vld [vmem:[#allocation5 + $0x108] sm:$0xff]
        %v4903 = vld [vmem:[#allocation5 + $0x110] sm:$0xff]
        %v4904 = vld [vmem:[#allocation5 + $0x118] sm:$0xff]
        %v4905 = vld [vmem:[#allocation14] sm:$0xff]
        %v4906 = vld [vmem:[#allocation14 + $0x8] sm:$0xff]
        %v4907 = vld [vmem:[#allocation14 + $0x10] sm:$0xff]
        %v4908 = vld [vmem:[#allocation14 + $0x18] sm:$0xff]
        %v4909 = vld [vmem:[#allocation14 + $0x20] sm:$0xf]
        %v4911 = vsel %vm2560, %v4869, 0
        %v4914 = vsel %vm2560, %v4870, 0
        %v4917 = vsel %vm2560, %v4871, 0
        %v4920 = vsel %vm2560, %v4872, 0
        %v4923 = vsel %vm2560, %v4873, 0
        %v4926 = vsel %vm2560, %v4874, 0
        %v4929 = vsel %vm2560, %v4875, 0
        %v4932 = vsel %vm2560, %v4876, 0
        %v4935 = vsel %vm2560, %v4877, 0
        %v4938 = vsel %vm2560, %v4878, 0
        %v4941 = vsel %vm2560, %v4879, 0
        %v4944 = vsel %vm2560, %v4880, 0
        %v4947 = vsel %vm2560, %v4881, 0
        %v4950 = vsel %vm2560, %v4882, 0
        %v4953 = vsel %vm2560, %v4883, 0
        %v4956 = vsel %vm2560, %v4884, 0
        %v4959 = vsel %vm2560, %v4885, 0
        %v4962 = vsel %vm2560, %v4886, 0
        %v4965 = vsel %vm2560, %v4887, 0
        %v4968 = vsel %vm2560, %v4888, 0
        %v4971 = vsel %vm2560, %v4889, 0
        %v4974 = vsel %vm2560, %v4890, 0
        %v4977 = vsel %vm2560, %v4891, 0
        %v4980 = vsel %vm2560, %v4892, 0
        %v4983 = vsel %vm2560, %v4893, 0
        %v4986 = vsel %vm2560, %v4894, 0
        %v4989 = vsel %vm2560, %v4895, 0
        %v4992 = vsel %vm2560, %v4896, 0
        %v4995 = vsel %vm2560, %v4897, 0
        %v4998 = vsel %vm2560, %v4898, 0
        %v5001 = vsel %vm2560, %v4899, 0
        %v5004 = vsel %vm2560, %v4900, 0
        %v5007 = vsel %vm2560, %v4901, 0
        %v5010 = vsel %vm2560, %v4902, 0
        %v5013 = vsel %vm2560, %v4903, 0
        %v5016 = vsel %vm2560, %v4904, 0
        %v5019 = vsel %vm2669, %v4909, 0
        %5021 = vmatprep.subr.mxu0 0.0
        %5022 = vmatpush1.msra.mxu0 %v4905
        %5023 = vmatprep.subr.mxu0 0.0
        %5024 = vmatpush1.msra.mxu0 %v4906
        %5025 = vmatprep.subr.mxu0 0.0
        %5026 = vmatpush1.msra.mxu0 %v4907
        %5027 = vmatprep.subr.mxu0 0.0
        %5028 = vmatpush1.msra.mxu0 %v4908
        %5029 = vmatprep.subr.mxu0 0.0
        %5030 = vmatpush1.msra.mxu0 %v5019
        %5031 = vmatprep.subr.mxu0 0.0
        %5032 = vmatpush1.msra.mxu0 0.0
        %5033 = vmatprep.subr.mxu0 0.0
        %5034 = vmatpush1.msra.mxu0 0.0
        %5035 = vmatprep.subr.mxu0 0.0
        %5036 = vmatpush1.msra.mxu0 0.0
        %5037 = vmatprep.subr.mxu0 0.0
        %5038 = vmatpush1.msra.mxu0 0.0
        %5039 = vmatprep.subr.mxu0 0.0
        %5040 = vmatpush1.msra.mxu0 0.0
        %5041 = vmatprep.subr.mxu0 0.0
        %5042 = vmatpush1.msra.mxu0 0.0
        %5043 = vmatprep.subr.mxu0 0.0
        %5044 = vmatpush1.msra.mxu0 0.0
        %5045 = vmatprep.subr.mxu0 0.0
        %5046 = vmatpush1.msra.mxu0 0.0
        %5047 = vmatprep.subr.mxu0 0.0
        %5048 = vmatpush1.msra.mxu0 0.0
        %5049 = vmatprep.subr.mxu0 0.0
        %5050 = vmatpush1.msra.mxu0 0.0
        %5051 = vmatprep.subr.mxu0 0.0
        %5052 = vmatpush1.msra.mxu0 0.0
        %5053 = vmatprep.subr.mxu0 0.0
        %5054 = vmatpush1.msra.mxu0 0.0
        %5055 = vmatprep.subr.mxu0 0.0
        %5056 = vmatpush1.msra.mxu0 0.0
        %5057 = vmatprep.subr.mxu0 0.0
        %5058 = vmatpush1.msra.mxu0 0.0
        %5059 = vmatprep.subr.mxu0 0.0
        %5060 = vmatpush1.msra.mxu0 0.0
        %5061 = vmatprep.subr.mxu0 0.0
        %5062 = vmatpush1.msra.mxu0 0.0
        %5063 = vmatprep.subr.mxu0 0.0
        %5064 = vmatpush1.msra.mxu0 0.0
        %5065 = vmatprep.subr.mxu0 0.0
        %5066 = vmatpush1.msra.mxu0 0.0
        %5067 = vmatprep.subr.mxu0 0.0
        %5068 = vmatpush1.msra.mxu0 0.0
        %5069 = vmatprep.subr.mxu0 0.0
        %5070 = vmatpush1.msra.mxu0 0.0
        %5071 = vmatprep.subr.mxu0 0.0
        %5072 = vmatpush1.msra.mxu0 0.0
        %5073 = vmatprep.subr.mxu0 0.0
        %5074 = vmatpush1.msra.mxu0 0.0
        %5075 = vmatprep.subr.mxu0 0.0
        %5076 = vmatpush1.msra.mxu0 0.0
        %5077 = vmatprep.subr.mxu0 0.0
        %5078 = vmatpush1.msra.mxu0 0.0
        %5079 = vmatprep.subr.mxu0 0.0
        %5080 = vmatpush1.msra.mxu0 0.0
        %5081 = vmatprep.subr.mxu0 0.0
        %5082 = vmatpush1.msra.mxu0 0.0
        %5083 = vmatprep.subr.mxu0 0.0
        %5084 = vmatpush1.msra.mxu0 0.0
        %5085 = vmatprep.mubr.f32.mxu0 0.0
        %5086 = vmatmul.mubr.f32.gmra.mrb[0].mxu0 %v4911
        %v5087 = vpop.f32.mrb[0].mxu0
        %v5088 = vadd.f32 0.0, %v5087
        %v5089 = vpop.f32.mrb[0].mxu0
        %5090 = vmatprep.mubr.f32.mxu0 0.0
        %5091 = vmatmul.mubr.f32.gmra.mrb[0].mxu0 %v4914
        %v5092 = vpop.f32.mrb[0].mxu0
        %v5093 = vadd.f32 0.0, %v5092
        %v5094 = vpop.f32.mrb[0].mxu0
        %5095 = vmatprep.mubr.f32.mxu0 0.0
        %5096 = vmatmul.mubr.f32.gmra.mrb[0].mxu0 %v4917
        %v5097 = vpop.f32.mrb[0].mxu0
        %v5098 = vadd.f32 0.0, %v5097
        %v5099 = vpop.f32.mrb[0].mxu0
        %5100 = vmatprep.mubr.f32.mxu0 0.0
        %5101 = vmatmul.mubr.f32.gmra.mrb[0].mxu0 %v4920
        %v5102 = vpop.f32.mrb[0].mxu0
        %v5103 = vadd.f32 0.0, %v5102
        %v5104 = vpop.f32.mrb[0].mxu0
        %5105 = vmatprep.mubr.f32.mxu0 0.0
        %5106 = vmatmul.mubr.f32.gmra.mrb[0].mxu0 %v4923
        %v5107 = vpop.f32.mrb[0].mxu0
        %v5108 = vadd.f32 0.0, %v5107
        %v5109 = vpop.f32.mrb[0].mxu0
        %5110 = vmatprep.mubr.f32.mxu0 0.0
        %5111 = vmatmul.mubr.f32.gmra.mrb[0].mxu0 %v4926
        %v5112 = vpop.f32.mrb[0].mxu0
        %v5113 = vadd.f32 0.0, %v5112
        %v5114 = vpop.f32.mrb[0].mxu0
        %5115 = vmatprep.mubr.f32.mxu0 0.0
        %5116 = vmatmul.mubr.f32.gmra.mrb[0].mxu0 %v4929
        %v5117 = vpop.f32.mrb[0].mxu0
        %v5118 = vadd.f32 0.0, %v5117
        %v5119 = vpop.f32.mrb[0].mxu0
        %5120 = vmatprep.mubr.f32.mxu0 0.0
        %5121 = vmatmul.mubr.f32.gmra.mrb[0].mxu0 %v4932
        %v5122 = vpop.f32.mrb[0].mxu0
        %v5123 = vadd.f32 0.0, %v5122
        %v5124 = vpop.f32.mrb[0].mxu0
        %5125 = vmatprep.mubr.f32.mxu0 0.0
        %5126 = vmatmul.mubr.f32.gmra.mrb[0].mxu0 %v4935
        %v5127 = vpop.f32.mrb[0].mxu0
        %v5128 = vadd.f32 0.0, %v5127
        %v5129 = vpop.f32.mrb[0].mxu0
        %5130 = vmatprep.mubr.f32.mxu0 0.0
        %5131 = vmatmul.mubr.f32.gmra.mrb[0].mxu0 %v4938
        %v5132 = vpop.f32.mrb[0].mxu0
        %v5133 = vadd.f32 0.0, %v5132
        %v5134 = vpop.f32.mrb[0].mxu0
        %5135 = vmatprep.mubr.f32.mxu0 0.0
        %5136 = vmatmul.mubr.f32.gmra.mrb[0].mxu0 %v4941
        %v5137 = vpop.f32.mrb[0].mxu0
        %v5138 = vadd.f32 0.0, %v5137
        %v5139 = vpop.f32.mrb[0].mxu0
        %5140 = vmatprep.mubr.f32.mxu0 0.0
        %5141 = vmatmul.mubr.f32.gmra.mrb[0].mxu0 %v4944
        %v5142 = vpop.f32.mrb[0].mxu0
        %v5143 = vadd.f32 0.0, %v5142
        %v5144 = vpop.f32.mrb[0].mxu0
        %5145 = vmatprep.mubr.f32.mxu0 0.0
        %5146 = vmatmul.mubr.f32.gmra.mrb[0].mxu0 %v4947
        %v5147 = vpop.f32.mrb[0].mxu0
        %v5148 = vadd.f32 0.0, %v5147
        %v5149 = vpop.f32.mrb[0].mxu0
        %5150 = vmatprep.mubr.f32.mxu0 0.0
        %5151 = vmatmul.mubr.f32.gmra.mrb[0].mxu0 %v4950
        %v5152 = vpop.f32.mrb[0].mxu0
        %v5153 = vadd.f32 0.0, %v5152
        %v5154 = vpop.f32.mrb[0].mxu0
        %5155 = vmatprep.mubr.f32.mxu0 0.0
        %5156 = vmatmul.mubr.f32.gmra.mrb[0].mxu0 %v4953
        %v5157 = vpop.f32.mrb[0].mxu0
        %v5158 = vadd.f32 0.0, %v5157
        %v5159 = vpop.f32.mrb[0].mxu0
        %5160 = vmatprep.mubr.f32.mxu0 0.0
        %5161 = vmatmul.mubr.f32.gmra.mrb[0].mxu0 %v4956
        %v5162 = vpop.f32.mrb[0].mxu0
        %v5163 = vadd.f32 0.0, %v5162
        %v5164 = vpop.f32.mrb[0].mxu0
        %5165 = vmatprep.mubr.f32.mxu0 0.0
        %5166 = vmatmul.mubr.f32.gmra.mrb[0].mxu0 %v4959
        %v5167 = vpop.f32.mrb[0].mxu0
        %v5168 = vadd.f32 0.0, %v5167
        %v5169 = vpop.f32.mrb[0].mxu0
        %5170 = vmatprep.mubr.f32.mxu0 0.0
        %5171 = vmatmul.mubr.f32.gmra.mrb[0].mxu0 %v4962
        %v5172 = vpop.f32.mrb[0].mxu0
        %v5173 = vadd.f32 0.0, %v5172
        %v5174 = vpop.f32.mrb[0].mxu0
        %5175 = vmatprep.mubr.f32.mxu0 0.0
        %5176 = vmatmul.mubr.f32.gmra.mrb[0].mxu0 %v4965
        %v5177 = vpop.f32.mrb[0].mxu0
        %v5178 = vadd.f32 0.0, %v5177
        %v5179 = vpop.f32.mrb[0].mxu0
        %5180 = vmatprep.mubr.f32.mxu0 0.0
        %5181 = vmatmul.mubr.f32.gmra.mrb[0].mxu0 %v4968
        %v5182 = vpop.f32.mrb[0].mxu0
        %v5183 = vadd.f32 0.0, %v5182
        %v5184 = vpop.f32.mrb[0].mxu0
        %5185 = vmatprep.mubr.f32.mxu0 0.0
        %5186 = vmatmul.mubr.f32.gmra.mrb[0].mxu0 %v4971
        %v5187 = vpop.f32.mrb[0].mxu0
        %v5188 = vadd.f32 0.0, %v5187
        %v5189 = vpop.f32.mrb[0].mxu0
        %5190 = vmatprep.mubr.f32.mxu0 0.0
        %5191 = vmatmul.mubr.f32.gmra.mrb[0].mxu0 %v4974
        %v5192 = vpop.f32.mrb[0].mxu0
        %v5193 = vadd.f32 0.0, %v5192
        %v5194 = vpop.f32.mrb[0].mxu0
        %5195 = vmatprep.mubr.f32.mxu0 0.0
        %5196 = vmatmul.mubr.f32.gmra.mrb[0].mxu0 %v4977
        %v5197 = vpop.f32.mrb[0].mxu0
        %v5198 = vadd.f32 0.0, %v5197
        %v5199 = vpop.f32.mrb[0].mxu0
        %5200 = vmatprep.mubr.f32.mxu0 0.0
        %5201 = vmatmul.mubr.f32.gmra.mrb[0].mxu0 %v4980
        %v5202 = vpop.f32.mrb[0].mxu0
        %v5203 = vadd.f32 0.0, %v5202
        %v5204 = vpop.f32.mrb[0].mxu0
        %5205 = vmatprep.mubr.f32.mxu0 0.0
        %5206 = vmatmul.mubr.f32.gmra.mrb[0].mxu0 %v4983
        %v5207 = vpop.f32.mrb[0].mxu0
        %v5208 = vadd.f32 0.0, %v5207
        %v5209 = vpop.f32.mrb[0].mxu0
        %5210 = vmatprep.mubr.f32.mxu0 0.0
        %5211 = vmatmul.mubr.f32.gmra.mrb[0].mxu0 %v4986
        %v5212 = vpop.f32.mrb[0].mxu0
        %v5213 = vadd.f32 0.0, %v5212
        %v5214 = vpop.f32.mrb[0].mxu0
        %5215 = vmatprep.mubr.f32.mxu0 0.0
        %5216 = vmatmul.mubr.f32.gmra.mrb[0].mxu0 %v4989
        %v5217 = vpop.f32.mrb[0].mxu0
        %v5218 = vadd.f32 0.0, %v5217
        %v5219 = vpop.f32.mrb[0].mxu0
        %5220 = vmatprep.mubr.f32.mxu0 0.0
        %5221 = vmatmul.mubr.f32.gmra.mrb[0].mxu0 %v4992
        %v5222 = vpop.f32.mrb[0].mxu0
        %v5223 = vadd.f32 0.0, %v5222
        %v5224 = vpop.f32.mrb[0].mxu0
        %5225 = vmatprep.mubr.f32.mxu0 0.0
        %5226 = vmatmul.mubr.f32.gmra.mrb[0].mxu0 %v4995
        %v5227 = vpop.f32.mrb[0].mxu0
        %v5228 = vadd.f32 0.0, %v5227
        %v5229 = vpop.f32.mrb[0].mxu0
        %5230 = vmatprep.mubr.f32.mxu0 0.0
        %5231 = vmatmul.mubr.f32.gmra.mrb[0].mxu0 %v4998
        %v5232 = vpop.f32.mrb[0].mxu0
        %v5233 = vadd.f32 0.0, %v5232
        %v5234 = vpop.f32.mrb[0].mxu0
        %5235 = vmatprep.mubr.f32.mxu0 0.0
        %5236 = vmatmul.mubr.f32.gmra.mrb[0].mxu0 %v5001
        %v5237 = vpop.f32.mrb[0].mxu0
        %v5238 = vadd.f32 0.0, %v5237
        %v5239 = vpop.f32.mrb[0].mxu0
        %5240 = vmatprep.mubr.f32.mxu0 0.0
        %5241 = vmatmul.mubr.f32.gmra.mrb[0].mxu0 %v5004
        %v5242 = vpop.f32.mrb[0].mxu0
        %v5243 = vadd.f32 0.0, %v5242
        %v5244 = vpop.f32.mrb[0].mxu0
        %5245 = vmatprep.mubr.f32.mxu0 0.0
        %5246 = vmatmul.mubr.f32.gmra.mrb[0].mxu0 %v5007
        %v5247 = vpop.f32.mrb[0].mxu0
        %v5248 = vadd.f32 0.0, %v5247
        %v5249 = vpop.f32.mrb[0].mxu0
        %5250 = vmatprep.mubr.f32.mxu0 0.0
        %5251 = vmatmul.mubr.f32.gmra.mrb[0].mxu0 %v5010
        %v5252 = vpop.f32.mrb[0].mxu0
        %v5253 = vadd.f32 0.0, %v5252
        %v5254 = vpop.f32.mrb[0].mxu0
        %5255 = vmatprep.mubr.f32.mxu0 0.0
        %5256 = vmatmul.mubr.f32.gmra.mrb[0].mxu0 %v5013
        %v5257 = vpop.f32.mrb[0].mxu0
        %v5258 = vadd.f32 0.0, %v5257
        %v5259 = vpop.f32.mrb[0].mxu0
        %5260 = vmatprep.mubr.f32.mxu0 0.0
        %5261 = vmatmul.mubr.f32.gmra.mrb[0].mxu0 %v5016
        %v5262 = vpop.f32.mrb[0].mxu0
        %v5263 = vadd.f32 0.0, %v5262
        %v5264 = vpop.f32.mrb[0].mxu0
        %5265 = vdwg.mxu0
        %v5266 = vstv %s303
        %v5267 = vmul.f32 %v5088, %v5266
        %v5268 = vmul.f32 %v5093, %v5266
        %v5269 = vmul.f32 %v5098, %v5266
        %v5270 = vmul.f32 %v5103, %v5266
        %v5271 = vmul.f32 %v5108, %v5266
        %v5272 = vmul.f32 %v5113, %v5266
        %v5273 = vmul.f32 %v5118, %v5266
        %v5274 = vmul.f32 %v5123, %v5266
        %v5275 = vmul.f32 %v5128, %v5266
        %v5276 = vmul.f32 %v5133, %v5266
        %v5277 = vmul.f32 %v5138, %v5266
        %v5278 = vmul.f32 %v5143, %v5266
        %v5279 = vmul.f32 %v5148, %v5266
        %v5280 = vmul.f32 %v5153, %v5266
        %v5281 = vmul.f32 %v5158, %v5266
        %v5282 = vmul.f32 %v5163, %v5266
        %v5283 = vmul.f32 %v5168, %v5266
        %v5284 = vmul.f32 %v5173, %v5266
        %v5285 = vmul.f32 %v5178, %v5266
        %v5286 = vmul.f32 %v5183, %v5266
        %v5287 = vmul.f32 %v5188, %v5266
        %v5288 = vmul.f32 %v5193, %v5266
        %v5289 = vmul.f32 %v5198, %v5266
        %v5290 = vmul.f32 %v5203, %v5266
        %v5291 = vmul.f32 %v5208, %v5266
        %v5292 = vmul.f32 %v5213, %v5266
        %v5293 = vmul.f32 %v5218, %v5266
        %v5294 = vmul.f32 %v5223, %v5266
        %v5295 = vmul.f32 %v5228, %v5266
        %v5296 = vmul.f32 %v5233, %v5266
        %v5297 = vmul.f32 %v5238, %v5266
        %v5298 = vmul.f32 %v5243, %v5266
        %v5299 = vmul.f32 %v5248, %v5266
        %v5300 = vmul.f32 %v5253, %v5266
        %v5301 = vmul.f32 %v5258, %v5266
        %v5302 = vmul.f32 %v5263, %v5266
        %v5303 = vstv %s302
        %v5304 = vadd.f32 %v5267, %v5303
        %v5305 = vadd.f32 %v5268, %v5303
        %v5306 = vadd.f32 %v5269, %v5303
        %v5307 = vadd.f32 %v5270, %v5303
        %v5308 = vadd.f32 %v5271, %v5303
        %v5309 = vadd.f32 %v5272, %v5303
        %v5310 = vadd.f32 %v5273, %v5303
        %v5311 = vadd.f32 %v5274, %v5303
        %v5312 = vadd.f32 %v5275, %v5303
        %v5313 = vadd.f32 %v5276, %v5303
        %v5314 = vadd.f32 %v5277, %v5303
        %v5315 = vadd.f32 %v5278, %v5303
        %v5316 = vadd.f32 %v5279, %v5303
        %v5317 = vadd.f32 %v5280, %v5303
        %v5318 = vadd.f32 %v5281, %v5303
        %v5319 = vadd.f32 %v5282, %v5303
        %v5320 = vadd.f32 %v5283, %v5303
        %v5321 = vadd.f32 %v5284, %v5303
        %v5322 = vadd.f32 %v5285, %v5303
        %v5323 = vadd.f32 %v5286, %v5303
        %v5324 = vadd.f32 %v5287, %v5303
        %v5325 = vadd.f32 %v5288, %v5303
        %v5326 = vadd.f32 %v5289, %v5303
        %v5327 = vadd.f32 %v5290, %v5303
        %v5328 = vadd.f32 %v5291, %v5303
        %v5329 = vadd.f32 %v5292, %v5303
        %v5330 = vadd.f32 %v5293, %v5303
        %v5331 = vadd.f32 %v5294, %v5303
        %v5332 = vadd.f32 %v5295, %v5303
        %v5333 = vadd.f32 %v5296, %v5303
        %v5334 = vadd.f32 %v5297, %v5303
        %v5335 = vadd.f32 %v5298, %v5303
        %v5336 = vadd.f32 %v5299, %v5303
        %v5337 = vadd.f32 %v5300, %v5303
        %v5338 = vadd.f32 %v5301, %v5303
        %v5339 = vadd.f32 %v5302, %v5303
        %v5340 = vld [vmem:[%s263] sm:$0xff]
        %v5341 = vld [vmem:[%s263 + $0x8] sm:$0xff]
        %v5342 = vld [vmem:[%s263 + $0x10] sm:$0xff]
        %v5343 = vld [vmem:[%s263 + $0x18] sm:$0xff]
        %v5344 = vld [vmem:[%s263 + $0x20] sm:$0xff]
        %v5345 = vld [vmem:[%s263 + $0x28] sm:$0xff]
        %v5346 = vld [vmem:[%s263 + $0x30] sm:$0xff]
        %v5347 = vld [vmem:[%s263 + $0x38] sm:$0xff]
        %v5348 = vld [vmem:[%s263 + $0x40] sm:$0xff]
        %v5349 = vld [vmem:[%s263 + $0x48] sm:$0xff]
        %v5350 = vld [vmem:[%s263 + $0x50] sm:$0xff]
        %v5351 = vld [vmem:[%s263 + $0x58] sm:$0xff]
        %v5352 = vld [vmem:[%s263 + $0x60] sm:$0xff]
        %v5353 = vld [vmem:[%s263 + $0x68] sm:$0xff]
        %v5354 = vld [vmem:[%s263 + $0x70] sm:$0xff]
        %v5355 = vld [vmem:[%s263 + $0x78] sm:$0xff]
        %v5356 = vld [vmem:[%s263 + $0x80] sm:$0xff]
        %v5357 = vld [vmem:[%s263 + $0x88] sm:$0xff]
        %v5358 = vld [vmem:[%s263 + $0x90] sm:$0xff]
        %v5359 = vld [vmem:[%s263 + $0x98] sm:$0xff]
        %v5360 = vld [vmem:[%s263 + $0xa0] sm:$0xff]
        %v5361 = vld [vmem:[%s263 + $0xa8] sm:$0xff]
        %v5362 = vld [vmem:[%s263 + $0xb0] sm:$0xff]
        %v5363 = vld [vmem:[%s263 + $0xb8] sm:$0xff]
        %v5364 = vld [vmem:[%s263 + $0xc0] sm:$0xff]
        %v5365 = vld [vmem:[%s263 + $0xc8] sm:$0xff]
        %v5366 = vld [vmem:[%s263 + $0xd0] sm:$0xff]
        %v5367 = vld [vmem:[%s263 + $0xd8] sm:$0xff]
        %v5368 = vld [vmem:[%s263 + $0xe0] sm:$0xff]
        %v5369 = vld [vmem:[%s263 + $0xe8] sm:$0xff]
        %v5370 = vld [vmem:[%s263 + $0xf0] sm:$0xff]
        %v5371 = vld [vmem:[%s263 + $0xf8] sm:$0xff]
        %v5372 = vld [vmem:[%s263 + $0x100] sm:$0xff]
        %v5373 = vld [vmem:[%s263 + $0x108] sm:$0xff]
        %v5374 = vld [vmem:[%s263 + $0x110] sm:$0xff]
        %v5375 = vld [vmem:[%s263 + $0x118] sm:$0xff]
        %v5376 = vadd.f32 %v5304, %v5340
        %v5377 = vadd.f32 %v5305, %v5341
        %v5378 = vadd.f32 %v5306, %v5342
        %v5379 = vadd.f32 %v5307, %v5343
        %v5380 = vadd.f32 %v5308, %v5344
        %v5381 = vadd.f32 %v5309, %v5345
        %v5382 = vadd.f32 %v5310, %v5346
        %v5383 = vadd.f32 %v5311, %v5347
        %v5384 = vadd.f32 %v5312, %v5348
        %v5385 = vadd.f32 %v5313, %v5349
        %v5386 = vadd.f32 %v5314, %v5350
        %v5387 = vadd.f32 %v5315, %v5351
        %v5388 = vadd.f32 %v5316, %v5352
        %v5389 = vadd.f32 %v5317, %v5353
        %v5390 = vadd.f32 %v5318, %v5354
        %v5391 = vadd.f32 %v5319, %v5355
        %v5392 = vadd.f32 %v5320, %v5356
        %v5393 = vadd.f32 %v5321, %v5357
        %v5394 = vadd.f32 %v5322, %v5358
        %v5395 = vadd.f32 %v5323, %v5359
        %v5396 = vadd.f32 %v5324, %v5360
        %v5397 = vadd.f32 %v5325, %v5361
        %v5398 = vadd.f32 %v5326, %v5362
        %v5399 = vadd.f32 %v5327, %v5363
        %v5400 = vadd.f32 %v5328, %v5364
        %v5401 = vadd.f32 %v5329, %v5365
        %v5402 = vadd.f32 %v5330, %v5366
        %v5403 = vadd.f32 %v5331, %v5367
        %v5404 = vadd.f32 %v5332, %v5368
        %v5405 = vadd.f32 %v5333, %v5369
        %v5406 = vadd.f32 %v5334, %v5370
        %v5407 = vadd.f32 %v5335, %v5371
        %v5408 = vadd.f32 %v5336, %v5372
        %v5409 = vadd.f32 %v5337, %v5373
        %v5410 = vadd.f32 %v5338, %v5374
        %v5411 = vadd.f32 %v5339, %v5375
        %5412 = vst.msk [vmem:[%s298] sm:$0xff] %vm665, %v5376
        %5413 = vst.msk [vmem:[%s298 + $0x8] sm:$0xff] %vm665, %v5377
        %5414 = vst.msk [vmem:[%s298 + $0x10] sm:$0xff] %vm665, %v5378
        %5415 = vst.msk [vmem:[%s298 + $0x18] sm:$0xff] %vm665, %v5379
        %5416 = vst.msk [vmem:[%s298 + $0x20] sm:$0xff] %vm665, %v5380
        %5417 = vst.msk [vmem:[%s298 + $0x28] sm:$0xff] %vm665, %v5381
        %5418 = vst.msk [vmem:[%s298 + $0x30] sm:$0xff] %vm665, %v5382
        %5419 = vst.msk [vmem:[%s298 + $0x38] sm:$0xff] %vm665, %v5383
        %5420 = vst.msk [vmem:[%s298 + $0x40] sm:$0xff] %vm665, %v5384
        %5421 = vst.msk [vmem:[%s298 + $0x48] sm:$0xff] %vm665, %v5385
        %5422 = vst.msk [vmem:[%s298 + $0x50] sm:$0xff] %vm665, %v5386
        %5423 = vst.msk [vmem:[%s298 + $0x58] sm:$0xff] %vm665, %v5387
        %5424 = vst.msk [vmem:[%s298 + $0x60] sm:$0xff] %vm665, %v5388
        %5425 = vst.msk [vmem:[%s298 + $0x68] sm:$0xff] %vm665, %v5389
        %5426 = vst.msk [vmem:[%s298 + $0x70] sm:$0xff] %vm665, %v5390
        %5427 = vst.msk [vmem:[%s298 + $0x78] sm:$0xff] %vm665, %v5391
        %5428 = vst.msk [vmem:[%s298 + $0x80] sm:$0xff] %vm665, %v5392
        %5429 = vst.msk [vmem:[%s298 + $0x88] sm:$0xff] %vm665, %v5393
        %5430 = vst.msk [vmem:[%s298 + $0x90] sm:$0xff] %vm665, %v5394
        %5431 = vst.msk [vmem:[%s298 + $0x98] sm:$0xff] %vm665, %v5395
        %5432 = vst.msk [vmem:[%s298 + $0xa0] sm:$0xff] %vm665, %v5396
        %5433 = vst.msk [vmem:[%s298 + $0xa8] sm:$0xff] %vm665, %v5397
        %5434 = vst.msk [vmem:[%s298 + $0xb0] sm:$0xff] %vm665, %v5398
        %5435 = vst.msk [vmem:[%s298 + $0xb8] sm:$0xff] %vm665, %v5399
        %5436 = vst.msk [vmem:[%s298 + $0xc0] sm:$0xff] %vm665, %v5400
        %5437 = vst.msk [vmem:[%s298 + $0xc8] sm:$0xff] %vm665, %v5401
        %5438 = vst.msk [vmem:[%s298 + $0xd0] sm:$0xff] %vm665, %v5402
        %5439 = vst.msk [vmem:[%s298 + $0xd8] sm:$0xff] %vm665, %v5403
        %5440 = vst.msk [vmem:[%s298 + $0xe0] sm:$0xff] %vm665, %v5404
        %5441 = vst.msk [vmem:[%s298 + $0xe8] sm:$0xff] %vm665, %v5405
        %5442 = vst.msk [vmem:[%s298 + $0xf0] sm:$0xff] %vm665, %v5406
        %5443 = vst.msk [vmem:[%s298 + $0xf8] sm:$0xff] %vm665, %v5407
        %5444 = vst.msk [vmem:[%s298 + $0x100] sm:$0xff] %vm665, %v5408
        %5445 = vst.msk [vmem:[%s298 + $0x108] sm:$0xff] %vm665, %v5409
        %5446 = vst.msk [vmem:[%s298 + $0x110] sm:$0xff] %vm665, %v5410
        %5447 = vst.msk [vmem:[%s298 + $0x118] sm:$0xff] %vm665, %v5411
        %s5448 = sand.u32 %s143, 1
        %s5449 = scalar_lea.sflag [#allocation8], %s5448
        %s5450 = sand.u32 %s143, 1
        %s5451 = smul.addr %s5450, 288
        %s5452 = scalar_lea.vmem [#allocation16], %s5451
        // Predicated region
        $region61: #{tpu_custom_call.1} parent=39 // pred_check
          %p5453 = pneg %p153
        $region62: #{tpu_custom_call.1} parent=39 // pred_check_branch
          %5455 = sbr.rel (%p5453) target = $region64
        $region63: #{tpu_custom_call.1} parent=39 // pred_region
          %s5457 = ssub.s32 4608, 4608
          %5458 = vsyncadd %s5449, %s5457
          %s5459 = smul.addr %s25, 36
          %s5460 = smul.addr %s5459, 128
          %s5461 = scalar_lea.hbm %s5, %s5460
          %s5462 = sshll.u32 %s5452, 4
          %s5463 = int_to_ptr.vmem [resolvable:$true] %s5462
          %5468 = dma.vmem_to_hbm [thread:$0]  %s5463, 4608, %s5461, %s5449, 128, 128, 8
        $region64: #{tpu_custom_call.1} parent=39 // pred_fallthru
          _
      $region40: #{tpu_custom_call.1} parent=5 // pred_fallthru
        _
      %p5469 = scmp.le.s32.totalorder 2, %s20
      // Predicated region
      $region65: #{tpu_custom_call.1} parent=5 // pred_check
        %p5470 = pneg %p5469
      $region66: #{tpu_custom_call.1} parent=5 // pred_check_branch
        %5472 = sbr.rel (%p5470) target = $region68
      $region67: #{tpu_custom_call.1} parent=5 // pred_region
        %s5473 = ssub.s32 %s20, 2
        // Predicated region
        $region69: #{tpu_custom_call.1} parent=67 // pred_check
          %p5474 = pneg %p159
        $region70: #{tpu_custom_call.1} parent=67 // pred_check_branch
          %5476 = sbr.rel (%p5474) target = $region72
        $region71: #{tpu_custom_call.1} parent=67 // pred_region
          %s5477 = sand.u32 %s144, 1
          %s5478 = scalar_lea.sflag [#allocation8], %s5477
          %s5479 = sand.u32 %s144, 1
          %s5480 = smul.addr %s5479, 288
          %s5481 = scalar_lea.vmem [#allocation16], %s5480
          %5482 = dma.done %s5478, 4608
        $region72: #{tpu_custom_call.1} parent=67 // pred_fallthru
          _
      $region68: #{tpu_custom_call.1} parent=5 // pred_fallthru
        _
    $region6: #{tpu_custom_call.1} parent=1 // loop_footer
      %s24 = sadd.s32 1, %s20
    $region7: #{tpu_custom_call.1} parent=1 // loop_footer_branch
      %19 = sbr.rel target = $region3
    $region8: #{tpu_custom_call.1} parent=1 // loop_exit
      _
    %5483 = vsyncpa [#allocation7], 1
    %s5484 = scalar_lea.sflag [#allocation7], 1
    %5485 = vsyncpa %s5484, 1
    %5486 = vsyncpa [#allocation12], 1
    %s5487 = scalar_lea.sflag [#allocation12], 1
    %5488 = vsyncpa %s5487, 1
    %5489 = vsyncpa [#allocation15], 1
    %5490 = vsyncpa [#allocation8], 1
    %s5491 = scalar_lea.sflag [#allocation8], 1
    %5492 = vsyncpa %s5491, 1
    %5493 = vsyncpa [#allocation9], 1
    %s5494 = scalar_lea.sflag [#allocation9], 1
    %5495 = vsyncpa %s5494, 1

</llo_original>
